<compile_context>
chip_gen: v6e
topology: v6e:2x2x1
jax: 0.10.0
libtpu: 0.0.40
codegen_flags: <defaults>
</compile_context>

<pallas_src>
import functools
import math

import jax
import jax.numpy as jnp
from jax import lax
from jax.experimental import pallas as pl
from jax.experimental.pallas import tpu as pltpu

BETA = 0.1      # self.beta in MUCRP
HIDDEN = 256    # nn.Linear(..., 256)
LANE = 128


def _round_up(x, m):
    return (x + m - 1) // m * m


# ----------------------------- in-kernel math (f32) -----------------------------

def _dot_nt(a, b):
    """a @ b.T contracting the last dims of both (single MXU dot, no transpose)."""
    return lax.dot_general(a, b, (((1,), (1,)), ((), ())),
                           preferred_element_type=jnp.float32)


def _log_normal_rows(x, m, v):
    """x, m, v: (B, D) -> (B, 1). Matches log_normal() summed over dim=-1."""
    d = x.shape[-1]
    const = -0.5 * d * jnp.log(jnp.float32(2.0 * math.pi))
    log_det = -0.5 * jnp.sum(jnp.log(v), axis=-1, keepdims=True)
    log_exp = -0.5 * jnp.sum((x - m) ** 2 / v, axis=-1, keepdims=True)
    return const + log_det + log_exp


def _log_normal_mixture(z, m, v):
    """z: (B, D); m, v: (K, D) -> (B, 1). Gram form: no (B, K, D) broadcast."""
    d = z.shape[-1]
    k = m.shape[0]
    const = -0.5 * d * jnp.log(jnp.float32(2.0 * math.pi))
    inv_v = 1.0 / v                                               # (K, D)
    log_det = -0.5 * jnp.sum(jnp.log(v), axis=-1)[None, :]        # (1, K)
    # sum_d (z-m)^2/v = z^2 @ (1/v)^T - 2 z @ (m/v)^T + sum_d m^2/v
    zz = _dot_nt(z * z, inv_v)                                    # (B, K)
    zm = _dot_nt(z, m * inv_v)                                    # (B, K)
    mm = jnp.sum(m * m * inv_v, axis=-1)[None, :]                 # (1, K)
    log_probs = const + log_det - 0.5 * (zz - 2.0 * zm + mm)      # (B, K)
    mx = jnp.max(log_probs, axis=1, keepdims=True)                # (B, 1)
    lse = mx + jnp.log(jnp.sum(jnp.exp(log_probs - mx), axis=1, keepdims=True))
    return lse - jnp.log(jnp.float32(k))                          # log_mean_exp


def _kl_gmm(z, q_m, q_logv, p_m, p_logv):
    """Matches KL_divergence_gmm(); returns a scalar."""
    q_v = jnp.exp(q_logv)
    p_v = jnp.exp(p_logv)
    log_q = _log_normal_rows(z, q_m, q_v)           # (B, 1)
    log_p = _log_normal_mixture(z, p_m, p_v)        # (B, 1)
    return jnp.sum(log_q - log_p)


def _sq_dist(a, b):
    """||a_i - b_j||^2 via Gram identity; clamped at 0 like the broadcast form."""
    aa = jnp.sum(a * a, axis=1, keepdims=True)      # (R, 1)
    bb = jnp.sum(b * b, axis=1)[None, :]            # (1, C)
    return jnp.maximum(aa + bb - 2.0 * _dot_nt(a, b), 0.0)


def _distance_gmm(mu_s, mu_d, lv_s, lv_d):
    std_s = jnp.exp(0.5 * lv_s)
    std_d = jnp.exp(0.5 * lv_d)
    return _sq_dist(mu_s, mu_d) + _sq_dist(std_s, std_d) + 1e-6


def _cost_mat(cs, ct, tran):
    # Same Gram form as the PyTorch reference cost_mat (no clamp there either).
    ns = cs.shape[0]
    nt = ct.shape[0]
    f1 = jnp.sum(cs ** 2, axis=1, keepdims=True) / ns       # (ns, 1)
    f2 = jnp.sum(ct ** 2, axis=1)[None, :] / nt             # (1, nt)
    inner = _dot_nt(jnp.dot(cs, tran, preferred_element_type=jnp.float32), ct)
    return f1 + f2 - 2.0 * inner


def _fgw_discrepancy(mu, z_mu, logvar, z_logvar, beta):
    """Matches fgw_discrepancy() (tran.detach() irrelevant: forward only)."""
    cost_posterior = _distance_gmm(mu, mu, logvar, logvar)
    cost_prior = _distance_gmm(z_mu, z_mu, z_logvar, z_logvar)
    cost_pp = _distance_gmm(mu, z_mu, logvar, z_logvar)
    ns = cost_posterior.shape[0]
    nt = cost_prior.shape[0]
    p_s = jnp.full((ns, 1), 1.0 / ns, jnp.float32)      # column
    p_t = jnp.full((1, nt), 1.0 / nt, jnp.float32)      # row (no transposes below)
    tran0 = jnp.full((ns, nt), 1.0 / (ns * nt), jnp.float32)
    dual0 = jnp.full((ns, 1), 1.0 / ns, jnp.float32)

    def outer(_, carry):
        tran, dual = carry
        cost = beta * _cost_mat(cost_posterior, cost_prior, tran) + (1.0 - beta) * cost_pp
        inv_scale = pl.reciprocal(jnp.max(jnp.abs(cost), keepdims=True), approx=True)
        kern = jnp.exp(-cost * inv_scale) * tran
        # K^T @ dual as a sublane reduce; K @ b as a lane reduce — zero transposes.
        b = p_t * pl.reciprocal(jnp.sum(kern * dual, axis=0, keepdims=True), approx=True)
        for _ in range(5):   # short fixed inner loop stays unrolled
            dual = p_s * pl.reciprocal(jnp.sum(kern * b, axis=1, keepdims=True), approx=True)
            b = p_t * pl.reciprocal(jnp.sum(kern * dual, axis=0, keepdims=True), approx=True)
        tran = (dual * b) * kern                                     # dual @ b^T * K
        return tran, dual

    tran, _ = lax.fori_loop(0, 10, outer, (tran0, dual0))
    has_nan = jnp.sum(jnp.where(jnp.isnan(tran), 1.0, 0.0)) > 0.0
    tran = jnp.where(has_nan, jnp.full_like(tran, 1.0 / (ns * nt)), tran)
    cost = beta * _cost_mat(cost_posterior, cost_prior, tran) + (1.0 - beta) * cost_pp
    return jnp.sum(cost * tran)


# --------------------------------- kernel ---------------------------------

def mucrp_kernel(
    # packed inputs
    xy_ref,      # (2B, P)   f32  [x_pad ; y_pad]
    w1_ref,      # (P, 2H)   bf16 [w1a_pad | w1b_pad]      (zero pad rows)
    w2_ref,      # (H, 4Z)   bf16 [w21a|w22a|w21b|w22b]
    w3_ref,      # (Z, 2H)   bf16 [w3a | w3b]
    w4_ref,      # (H, 2P)   bf16 [w4a_pad | w4b_pad]      (zero pad cols)
    bias_ref,    # (1, 4H+4Z+2P) f32 [b1a|b1b | b2a_mu|b2a_lv|b2b_mu|b2b_lv | b3a|b3b | b4a_pad|b4b_pad]
    prior_ref,   # (K, 4Z)   f32  [p_mu_a | p_logv_a | p_mu_b | p_logv_b]
    eps_ref,     # (B, 4Z)   f32  [eps_x | eps_y | eps_xr | eps_yr]
    # outputs
    dec_ref,     # (2B, 2P)  HBM (pl.ANY): [preds_x;preds_y2x | preds_x2y;preds_y] (padded)
    lat_ref,     # (B, 4Z)   [z_x | z_y | feat_x_r | feat_y_r]
    loss_ref,    # (1, 128)  lanes 0..4 = kla, klb, align, cyc_x, cyc_y
    # scratch
    dec_vmem,    # (2B, 2P) f32 VMEM staging for the async writeback
    dec_sem,     # DMA semaphore
    *, batch, z_dim, item_pad,
):
    B, Z, P, H = batch, z_dim, item_pad, HIDDEN
    f32, bf16 = jnp.float32, jnp.bfloat16

    def mm(a, w_ref):
        # bf16 MXU matmul with f32 accumulation; loss math elsewhere stays f32.
        return jnp.dot(a.astype(bf16), w_ref[...], preferred_element_type=f32)

    # TODO(synk): nn.Dropout instantiated with p=0.0 -> identity; for p>0 draw a
    # mask in-kernel with pltpu.prng_seed + pltpu.stateful_bernoulli.

    # bias slab slices (all offsets are multiples of 128 for Z=32, P=128)
    b1 = bias_ref[:, 0:2 * H]                        # (1, 2H)  [b1a | b1b]
    b2 = bias_ref[:, 2 * H:2 * H + 4 * Z]            # (1, 4Z)
    b3 = bias_ref[:, 2 * H + 4 * Z:4 * H + 4 * Z]    # (1, 2H)  [b3a | b3b]
    b4 = bias_ref[:, 4 * H + 4 * Z:]                 # (1, 2P)  [b4a | b4b]

    eps = eps_ref[...]
    eps_x, eps_y = eps[:, 0:Z], eps[:, Z:2 * Z]
    eps_xr, eps_yr = eps[:, 2 * Z:3 * Z], eps[:, 3 * Z:4 * Z]

    def encode(inp_stack):
        """inp_stack: (2B, P) = [domain-a rows ; domain-b rows].
        Fused layer-1 + fused mu/logvar head; only ONE weight push per layer.
        Returns ml (2B, 4Z); valid blocks: [:B, :2Z] (domain a), [B:, 2Z:] (domain b)."""
        o1 = jnp.maximum(mm(inp_stack, w1_ref) + b1, 0.0)            # (2B, 2H) block-diag
        h1 = jnp.concatenate([o1[:B, :H], o1[B:, H:]], axis=0)       # (2B, H)
        return mm(h1, w2_ref) + b2                                   # (2B, 4Z) block-diag

    # ---- encode pass: domain a <- x, domain b <- y ----
    # (Z=32 < 128 so the mu/logvar splits below are sub-vreg lane slices; they are
    #  unavoidable here because KL/FGW consume mu/logvar as separate (B, Z) arrays.)
    ml = encode(xy_ref[...])
    mu_a, lv_a = ml[:B, 0:Z], ml[:B, Z:2 * Z]
    mu_b, lv_b = ml[B:, 2 * Z:3 * Z], ml[B:, 3 * Z:4 * Z]
    z_x = mu_a + eps_x * jnp.exp(0.5 * lv_a)
    z_y = mu_b + eps_y * jnp.exp(0.5 * lv_b)

    # ---- decoders: both decoders run ONCE on the stacked (2B, Z) latents ----
    z_xy = jnp.concatenate([z_x, z_y], axis=0)                       # (2B, Z)
    o3 = jnp.maximum(mm(z_xy, w3_ref) + b3, 0.0)                     # (2B, 2H) [h3a | h3b]
    h3_stack = jnp.concatenate([o3[:, :H], o3[:, H:]], axis=0)       # (4B, H)  [h3a ; h3b]
    o4 = mm(h3_stack, w4_ref) + b4                                   # (4B, 2P) block-diag
    dec_a = o4[:2 * B, 0:P]       # decoder a on [z_x;z_y] = [preds_x ; preds_y2x]
    dec_b = o4[2 * B:, P:2 * P]   # decoder b on [z_x;z_y] = [preds_x2y ; preds_y] (pad lanes 0)

    # Stage the packed lane-dense decoder slab in VMEM and push it to HBM with an
    # async DMA so the writeback overlaps the serial FGW/Sinkhorn tail below.
    dec_vmem[...] = jnp.concatenate([dec_a, dec_b], axis=1)          # (2B, 2P)
    dec_copy = pltpu.make_async_copy(dec_vmem, dec_ref, dec_sem)
    dec_copy.start()

    preds_y2x = dec_a[B:]         # (B, P)
    preds_x2y = dec_b[:B]         # (B, P) — pad lanes are exactly zero (zero-pad w4b/b4b)

    # ---- cycle re-encode: domain a <- preds_y2x, domain b <- preds_x2y ----
    mlr = encode(jnp.concatenate([preds_y2x, preds_x2y], axis=0))
    feat_y_r = mlr[:B, 0:Z] + eps_yr * jnp.exp(0.5 * mlr[:B, Z:2 * Z])
    feat_x_r = mlr[B:, 2 * Z:3 * Z] + eps_xr * jnp.exp(0.5 * mlr[B:, 3 * Z:4 * Z])

    # one lane-dense (B, 4Z) latent slab
    lat_ref[...] = jnp.concatenate([z_x, z_y, feat_x_r, feat_y_r], axis=1)

    # ---- losses (f32) ----
    prior = prior_ref[...]
    pmu_a, plv_a = prior[:, 0:Z], prior[:, Z:2 * Z]
    pmu_b, plv_b = prior[:, 2 * Z:3 * Z], prior[:, 3 * Z:4 * Z]
    kla = _kl_gmm(z_x, mu_a, lv_a, pmu_a, plv_a)
    klb = _kl_gmm(z_y, mu_b, lv_b, pmu_b, plv_b)
    cyc_x = jnp.sqrt(jnp.sum((z_x - feat_x_r) ** 2))                 # Frobenius norm
    cyc_y = jnp.sqrt(jnp.sum((z_y - feat_y_r) ** 2))
    align = _fgw_discrepancy(mu_b, mu_a, lv_b, lv_a, BETA)

    # pack the five scalars into a single lane-dense (1, 128) store
    lane = lax.broadcasted_iota(jnp.int32, (1, LANE), 1)
    loss_ref[...] = (jnp.where(lane == 0, kla, 0.0)
                     + jnp.where(lane == 1, klb, 0.0)
                     + jnp.where(lane == 2, align, 0.0)
                     + jnp.where(lane == 3, cyc_x, 0.0)
                     + jnp.where(lane == 4, cyc_y, 0.0))

    dec_copy.wait()   # long since done; guarantees the HBM output is final


# -------------------------------- wrapper ----------------------------------

def mucrp_forward(params, user_1, user_2, batch_user_x, batch_user_y,
                  p_mu_a, p_logv_a, p_mu_b, p_logv_b, eps):
    """Mirrors MUCRP.forward. user_1 / user_2 accepted but unused (the PyTorch
    forward never touches them or the user embeddings)."""
    del user_1, user_2
    B, M = batch_user_x.shape
    _, Nb = batch_user_y.shape
    Z = params["w21a"].shape[1]
    H = HIDDEN
    P = max(_round_up(M, LANE), _round_up(Nb, LANE))   # common lane-dense item width

    f32, bf16 = jnp.float32, jnp.bfloat16

    def pad_to(a, rows=None, cols=None):
        r = a.shape[0] if rows is None else rows
        c = a.shape[1] if cols is None else cols
        return jnp.pad(a, ((0, r - a.shape[0]), (0, c - a.shape[1])))

    # ---- pack inputs into a few lane-dense slabs (8 input DMAs total) ----
    xy = jnp.concatenate([pad_to(batch_user_x.astype(f32), cols=P),
                          pad_to(batch_user_y.astype(f32), cols=P)], axis=0)       # (2B, P)
    w1 = jnp.concatenate([pad_to(params["w1a"], rows=P),
                          pad_to(params["w1b"], rows=P)], axis=1).astype(bf16)     # (P, 2H)
    w2 = jnp.concatenate([params["w21a"], params["w22a"],
                          params["w21b"], params["w22b"]], axis=1).astype(bf16)    # (H, 4Z)
    w3 = jnp.concatenate([params["w3a"], params["w3b"]], axis=1).astype(bf16)      # (Z, 2H)
    w4 = jnp.concatenate([pad_to(params["w4a"], cols=P),
                          pad_to(params["w4b"], cols=P)], axis=1).astype(bf16)     # (H, 2P)
    bias = jnp.concatenate([
        params["b1a"], params["b1b"],
        params["b21a"], params["b22a"], params["b21b"], params["b22b"],
        params["b3a"], params["b3b"],
        pad_to(params["b4a"], cols=P), pad_to(params["b4b"], cols=P)],
        axis=1).astype(f32)                                                        # (1, 4H+4Z+2P)
    prior = jnp.concatenate([p_mu_a, p_logv_a, p_mu_b, p_logv_b], axis=1).astype(f32)   # (K, 4Z)
    eps_pack = jnp.concatenate([eps["x"], eps["y"], eps["xr"], eps["yr"]],
                               axis=1).astype(f32)                                 # (B, 4Z)

    kernel = functools.partial(mucrp_kernel, batch=B, z_dim=Z, item_pad=P)

    vmem = pl.BlockSpec(memory_space=pltpu.MemorySpace.VMEM)
    hbm = pl.BlockSpec(memory_space=pl.ANY)   # decoder slab: manual async writeback

    out_shape = (
        jax.ShapeDtypeStruct((2 * B, 2 * P), f32),   # [preds_x;preds_y2x | preds_x2y;preds_y]
        jax.ShapeDtypeStruct((B, 4 * Z), f32),       # [z_x | z_y | feat_x_r | feat_y_r]
        jax.ShapeDtypeStruct((1, LANE), f32),        # packed scalar losses
    )

    dec, lat, losses = pl.pallas_call(
        kernel,
        out_shape=out_shape,
        in_specs=[vmem] * 8,
        out_specs=(hbm, vmem, vmem),
        scratch_shapes=[pltpu.VMEM((2 * B, 2 * P), f32),
                        pltpu.SemaphoreType.DMA(())],
    )(xy, w1, w2, w3, w4, bias, prior, eps_pack)

    preds_x = dec[:B, :M]
    preds_y2x = dec[B:, :M]
    preds_x2y = dec[:B, P:P + Nb]
    preds_y = dec[B:, P:P + Nb]
    z_x, z_y = lat[:, :Z], lat[:, Z:2 * Z]
    fxr, fyr = lat[:, 2 * Z:3 * Z], lat[:, 3 * Z:]
    kla, klb, align = losses[0, 0], losses[0, 1], losses[0, 2]
    cycx, cycy = losses[0, 3], losses[0, 4]
    # Return order matches MUCRP.forward exactly.
    return (preds_x, preds_y, preds_x2y, preds_y2x, z_x, z_y,
            kla, klb, fxr, fyr, align, cycx, cycy)


# ----------------------------- deterministic init --------------------------

def _init_linear(key, fan_in, fan_out, scale=0.05):
    k1, k2 = jax.random.split(key)
    w = scale * jax.random.normal(k1, (fan_in, fan_out), jnp.float32)
    b = scale * jax.random.normal(k2, (1, fan_out), jnp.float32)
    return w, b


def init_mucrp_params(key, num_movie, num_book, embed_size, hidden=HIDDEN):
    names = [("1a", num_movie, hidden), ("21a", hidden, embed_size),
             ("22a", hidden, embed_size), ("3a", embed_size, hidden),
             ("4a", hidden, num_movie),
             ("1b", num_book, hidden), ("21b", hidden, embed_size),
             ("22b", hidden, embed_size), ("3b", embed_size, hidden),
             ("4b", hidden, num_book)]
    params = {}
    keys = jax.random.split(key, len(names))
    for k, (suffix, fin, fout) in zip(keys, names):
        w, b = _init_linear(k, fin, fout)
        params["w" + suffix] = w
        params["b" + suffix] = b
    return params


# ---------------------------------- main ------------------------------------

if __name__ == "__main__":
    B = 8             # batch of users
    NUM_USER = 16
    NUM_MOVIE = 128
    NUM_BOOK = 64
    EMBED_SIZE = 32   # z_dim
    K_MIX = 4         # number of GMM prior components

    root = jax.random.PRNGKey(0)
    (kp, kx, ky, kpa, kpla, kpb, kplb,
     kex, key_, kexr, keyr, ku1, ku2) = jax.random.split(root, 13)

    params = init_mucrp_params(kp, NUM_MOVIE, NUM_BOOK, EMBED_SIZE)

    # user indices are part of the forward signature but unused by it.
    user_1 = jax.random.randint(ku1, (B,), 0, NUM_USER, jnp.int32)
    user_2 = jax.random.randint(ku2, (B,), 0, NUM_USER, jnp.int32)

    batch_user_x = jax.random.uniform(kx, (B, NUM_MOVIE), jnp.float32)
    batch_user_y = jax.random.uniform(ky, (B, NUM_BOOK), jnp.float32)

    p_mu_a = 0.1 * jax.random.normal(kpa, (K_MIX, EMBED_SIZE), jnp.float32)
    p_logv_a = 0.1 * jax.random.normal(kpla, (K_MIX, EMBED_SIZE), jnp.float32)
    p_mu_b = 0.1 * jax.random.normal(kpb, (K_MIX, EMBED_SIZE), jnp.float32)
    p_logv_b = 0.1 * jax.random.normal(kplb, (K_MIX, EMBED_SIZE), jnp.float32)

    # torch.randn_like noise for the 4 reparameterizations, generated in glue JAX.
    eps = {
        "x": jax.random.normal(kex, (B, EMBED_SIZE), jnp.float32),
        "y": jax.random.normal(key_, (B, EMBED_SIZE), jnp.float32),
        "xr": jax.random.normal(kexr, (B, EMBED_SIZE), jnp.float32),
        "yr": jax.random.normal(keyr, (B, EMBED_SIZE), jnp.float32),
    }

    outs = mucrp_forward(params, user_1, user_2, batch_user_x, batch_user_y,
                         p_mu_a, p_logv_a, p_mu_b, p_logv_b, eps)
    jax.block_until_ready(outs)
    print("KERNEL_OK")
</pallas_src>

<mosaic_0001>
module attributes {stable_mosaic.version = 11 : i64} {
  func.func @mucrp_kernel(%arg0: memref<16x128xf32, #tpu.memory_space<vmem>>, %arg1: memref<128x512xbf16, #tpu.memory_space<vmem>>, %arg2: memref<256x128xbf16, #tpu.memory_space<vmem>>, %arg3: memref<32x512xbf16, #tpu.memory_space<vmem>>, %arg4: memref<256x256xbf16, #tpu.memory_space<vmem>>, %arg5: memref<1x1408xf32, #tpu.memory_space<vmem>>, %arg6: memref<4x128xf32, #tpu.memory_space<vmem>>, %arg7: memref<8x128xf32, #tpu.memory_space<vmem>>, %arg8: memref<16x256xf32, #tpu.memory_space<any>>, %arg9: memref<8x128xf32, #tpu.memory_space<vmem>>, %arg10: memref<1x128xf32, #tpu.memory_space<vmem>>, %arg11: memref<16x256xf32, #tpu.memory_space<vmem>>, %arg12: memref<!tpu.dma_semaphore, #tpu.memory_space<semaphore_mem>>) attributes {dimension_semantics = [], scalar_prefetch = 0 : i64, scratch_operands = 2 : i64, tpu.core_type = #tpu.core_type<tc>} {
    %c0 = arith.constant 0 : index
    %c0_0 = arith.constant 0 : index
    %0 = vector.load %arg5[%c0, %c0_0] : memref<1x1408xf32, #tpu.memory_space<vmem>>, vector<1x512xf32>
    %c0_1 = arith.constant 0 : index
    %c512 = arith.constant 512 : index
    %1 = vector.load %arg5[%c0_1, %c512] : memref<1x1408xf32, #tpu.memory_space<vmem>>, vector<1x128xf32>
    %c0_2 = arith.constant 0 : index
    %c640 = arith.constant 640 : index
    %2 = vector.load %arg5[%c0_2, %c640] : memref<1x1408xf32, #tpu.memory_space<vmem>>, vector<1x512xf32>
    %c0_3 = arith.constant 0 : index
    %c1152 = arith.constant 1152 : index
    %3 = vector.load %arg5[%c0_3, %c1152] : memref<1x1408xf32, #tpu.memory_space<vmem>>, vector<1x256xf32>
    %c0_4 = arith.constant 0 : index
    %c0_5 = arith.constant 0 : index
    %4 = vector.load %arg7[%c0_4, %c0_5] : memref<8x128xf32, #tpu.memory_space<vmem>>, vector<8x128xf32>
    %5 = vector.extract_strided_slice %4 {offsets = [0, 0], sizes = [8, 32], strides = [1, 1]} : vector<8x128xf32> to vector<8x32xf32>
    %6 = vector.extract_strided_slice %4 {offsets = [0, 32], sizes = [8, 32], strides = [1, 1]} : vector<8x128xf32> to vector<8x32xf32>
    %7 = vector.extract_strided_slice %4 {offsets = [0, 64], sizes = [8, 32], strides = [1, 1]} : vector<8x128xf32> to vector<8x32xf32>
    %8 = vector.extract_strided_slice %4 {offsets = [0, 96], sizes = [8, 32], strides = [1, 1]} : vector<8x128xf32> to vector<8x32xf32>
    %c0_6 = arith.constant 0 : index
    %c0_7 = arith.constant 0 : index
    %9 = vector.load %arg0[%c0_6, %c0_7] : memref<16x128xf32, #tpu.memory_space<vmem>>, vector<16x128xf32>
    %10 = arith.truncf %9 : vector<16x128xf32> to vector<16x128xbf16>
    %c0_8 = arith.constant 0 : index
    %c0_9 = arith.constant 0 : index
    %11 = vector.load %arg1[%c0_8, %c0_9] : memref<128x512xbf16, #tpu.memory_space<vmem>>, vector<128x512xbf16>
    %cst = arith.constant dense<0.000000e+00> : vector<16x512xf32>
    %12 = tpu.matmul %10, %11, %cst {dimension_numbers = #tpu.dot_dimension_numbers<[1], [0], [0], [1], [0, 0, 1, 1], [], []>} : vector<16x128xbf16>, vector<128x512xbf16>, vector<16x512xf32> -> vector<16x512xf32>
    %13 = vector.broadcast %0 : vector<1x512xf32> to vector<16x512xf32>
    %14 = arith.addf %12, %13 : vector<16x512xf32>
    %cst_10 = arith.constant 0.000000e+00 : f32
    %15 = vector.broadcast %cst_10 : f32 to vector<16x512xf32>
    %16 = arith.maximumf %14, %15 : vector<16x512xf32>
    %17 = vector.extract_strided_slice %16 {offsets = [0, 0], sizes = [8, 256], strides = [1, 1]} : vector<16x512xf32> to vector<8x256xf32>
    %18 = vector.extract_strided_slice %16 {offsets = [8, 256], sizes = [8, 256], strides = [1, 1]} : vector<16x512xf32> to vector<8x256xf32>
    %19 = tpu.concatenate %17, %18 in 0 : vector<8x256xf32>, vector<8x256xf32> -> vector<16x256xf32>
    %20 = arith.truncf %19 : vector<16x256xf32> to vector<16x256xbf16>
    %c0_11 = arith.constant 0 : index
    %c0_12 = arith.constant 0 : index
    %21 = vector.load %arg2[%c0_11, %c0_12] : memref<256x128xbf16, #tpu.memory_space<vmem>>, vector<256x128xbf16>
    %cst_13 = arith.constant dense<0.000000e+00> : vector<16x128xf32>
    %22 = tpu.matmul %20, %21, %cst_13 {dimension_numbers = #tpu.dot_dimension_numbers<[1], [0], [0], [1], [0, 0, 1, 1], [], []>} : vector<16x256xbf16>, vector<256x128xbf16>, vector<16x128xf32> -> vector<16x128xf32>
    %23 = vector.broadcast %1 : vector<1x128xf32> to vector<16x128xf32>
    %24 = arith.addf %22, %23 : vector<16x128xf32>
    %25 = vector.extract_strided_slice %24 {offsets = [0, 0], sizes = [8, 32], strides = [1, 1]} : vector<16x128xf32> to vector<8x32xf32>
    %26 = vector.extract_strided_slice %24 {offsets = [0, 32], sizes = [8, 32], strides = [1, 1]} : vector<16x128xf32> to vector<8x32xf32>
    %27 = vector.extract_strided_slice %24 {offsets = [8, 64], sizes = [8, 32], strides = [1, 1]} : vector<16x128xf32> to vector<8x32xf32>
    %28 = vector.extract_strided_slice %24 {offsets = [8, 96], sizes = [8, 32], strides = [1, 1]} : vector<16x128xf32> to vector<8x32xf32>
    %cst_14 = arith.constant 5.000000e-01 : f32
    %29 = vector.broadcast %cst_14 : f32 to vector<8x32xf32>
    %30 = arith.mulf %29, %26 : vector<8x32xf32>
    %31 = math.exp %30 : vector<8x32xf32>
    %32 = arith.mulf %5, %31 : vector<8x32xf32>
    %33 = arith.addf %25, %32 : vector<8x32xf32>
    %cst_15 = arith.constant 5.000000e-01 : f32
    %34 = vector.broadcast %cst_15 : f32 to vector<8x32xf32>
    %35 = arith.mulf %34, %28 : vector<8x32xf32>
    %36 = math.exp %35 : vector<8x32xf32>
    %37 = arith.mulf %6, %36 : vector<8x32xf32>
    %38 = arith.addf %27, %37 : vector<8x32xf32>
    %39 = tpu.concatenate %33, %38 in 0 : vector<8x32xf32>, vector<8x32xf32> -> vector<16x32xf32>
    %40 = arith.truncf %39 : vector<16x32xf32> to vector<16x32xbf16>
    %c0_16 = arith.constant 0 : index
    %c0_17 = arith.constant 0 : index
    %41 = vector.load %arg3[%c0_16, %c0_17] : memref<32x512xbf16, #tpu.memory_space<vmem>>, vector<32x512xbf16>
    %cst_18 = arith.constant dense<0.000000e+00> : vector<16x512xf32>
    %42 = tpu.matmul %40, %41, %cst_18 {dimension_numbers = #tpu.dot_dimension_numbers<[1], [0], [0], [1], [0, 0, 1, 1], [], []>} : vector<16x32xbf16>, vector<32x512xbf16>, vector<16x512xf32> -> vector<16x512xf32>
    %43 = vector.broadcast %2 : vector<1x512xf32> to vector<16x512xf32>
    %44 = arith.addf %42, %43 : vector<16x512xf32>
    %cst_19 = arith.constant 0.000000e+00 : f32
    %45 = vector.broadcast %cst_19 : f32 to vector<16x512xf32>
    %46 = arith.maximumf %44, %45 : vector<16x512xf32>
    %47 = vector.extract_strided_slice %46 {offsets = [0, 0], sizes = [16, 256], strides = [1, 1]} : vector<16x512xf32> to vector<16x256xf32>
    %48 = vector.extract_strided_slice %46 {offsets = [0, 256], sizes = [16, 256], strides = [1, 1]} : vector<16x512xf32> to vector<16x256xf32>
    %49 = tpu.concatenate %47, %48 in 0 : vector<16x256xf32>, vector<16x256xf32> -> vector<32x256xf32>
    %50 = arith.truncf %49 : vector<32x256xf32> to vector<32x256xbf16>
    %c0_20 = arith.constant 0 : index
    %c0_21 = arith.constant 0 : index
    %51 = vector.load %arg4[%c0_20, %c0_21] : memref<256x256xbf16, #tpu.memory_space<vmem>>, vector<256x256xbf16>
    %cst_22 = arith.constant dense<0.000000e+00> : vector<32x256xf32>
    %52 = tpu.matmul %50, %51, %cst_22 {dimension_numbers = #tpu.dot_dimension_numbers<[1], [0], [0], [1], [0, 0, 1, 1], [], []>} : vector<32x256xbf16>, vector<256x256xbf16>, vector<32x256xf32> -> vector<32x256xf32>
    %53 = vector.broadcast %3 : vector<1x256xf32> to vector<32x256xf32>
    %54 = arith.addf %52, %53 : vector<32x256xf32>
    %55 = vector.extract_strided_slice %54 {offsets = [0, 0], sizes = [16, 128], strides = [1, 1]} : vector<32x256xf32> to vector<16x128xf32>
    %56 = vector.extract_strided_slice %54 {offsets = [16, 128], sizes = [16, 128], strides = [1, 1]} : vector<32x256xf32> to vector<16x128xf32>
    %57 = tpu.concatenate %55, %56 in 1 : vector<16x128xf32>, vector<16x128xf32> -> vector<16x256xf32>
    %c0_23 = arith.constant 0 : index
    %c0_24 = arith.constant 0 : index
    %58 = vector.load %arg11[%c0_23, %c0_24] : memref<16x256xf32, #tpu.memory_space<vmem>>, vector<16x256xf32>
    tpu.vector_store %arg11[%c0_23, %c0_24], %57 {strides = array<i32>} : memref<16x256xf32, #tpu.memory_space<vmem>>, vector<16x256xf32>,
    tpu.enqueue_dma source(%arg11 : memref<16x256xf32, #tpu.memory_space<vmem>>) target(%arg8 : memref<16x256xf32, #tpu.memory_space<any>>) target_semaphore(%arg12 : memref<!tpu.dma_semaphore, #tpu.memory_space<semaphore_mem>>)
    %59 = vector.extract_strided_slice %55 {offsets = [8, 0], sizes = [8, 128], strides = [1, 1]} : vector<16x128xf32> to vector<8x128xf32>
    %60 = vector.extract_strided_slice %56 {offsets = [0, 0], sizes = [8, 128], strides = [1, 1]} : vector<16x128xf32> to vector<8x128xf32>
    %61 = tpu.concatenate %59, %60 in 0 : vector<8x128xf32>, vector<8x128xf32> -> vector<16x128xf32>
    %62 = arith.truncf %61 : vector<16x128xf32> to vector<16x128xbf16>
    %c0_25 = arith.constant 0 : index
    %c0_26 = arith.constant 0 : index
    %63 = vector.load %arg1[%c0_25, %c0_26] : memref<128x512xbf16, #tpu.memory_space<vmem>>, vector<128x512xbf16>
    %cst_27 = arith.constant dense<0.000000e+00> : vector<16x512xf32>
    %64 = tpu.matmul %62, %63, %cst_27 {dimension_numbers = #tpu.dot_dimension_numbers<[1], [0], [0], [1], [0, 0, 1, 1], [], []>} : vector<16x128xbf16>, vector<128x512xbf16>, vector<16x512xf32> -> vector<16x512xf32>
    %65 = vector.broadcast %0 : vector<1x512xf32> to vector<16x512xf32>
    %66 = arith.addf %64, %65 : vector<16x512xf32>
    %cst_28 = arith.constant 0.000000e+00 : f32
    %67 = vector.broadcast %cst_28 : f32 to vector<16x512xf32>
    %68 = arith.maximumf %66, %67 : vector<16x512xf32>
    %69 = vector.extract_strided_slice %68 {offsets = [0, 0], sizes = [8, 256], strides = [1, 1]} : vector<16x512xf32> to vector<8x256xf32>
    %70 = vector.extract_strided_slice %68 {offsets = [8, 256], sizes = [8, 256], strides = [1, 1]} : vector<16x512xf32> to vector<8x256xf32>
    %71 = tpu.concatenate %69, %70 in 0 : vector<8x256xf32>, vector<8x256xf32> -> vector<16x256xf32>
    %72 = arith.truncf %71 : vector<16x256xf32> to vector<16x256xbf16>
    %c0_29 = arith.constant 0 : index
    %c0_30 = arith.constant 0 : index
    %73 = vector.load %arg2[%c0_29, %c0_30] : memref<256x128xbf16, #tpu.memory_space<vmem>>, vector<256x128xbf16>
    %cst_31 = arith.constant dense<0.000000e+00> : vector<16x128xf32>
    %74 = tpu.matmul %72, %73, %cst_31 {dimension_numbers = #tpu.dot_dimension_numbers<[1], [0], [0], [1], [0, 0, 1, 1], [], []>} : vector<16x256xbf16>, vector<256x128xbf16>, vector<16x128xf32> -> vector<16x128xf32>
    %75 = vector.broadcast %1 : vector<1x128xf32> to vector<16x128xf32>
    %76 = arith.addf %74, %75 : vector<16x128xf32>
    %77 = vector.extract_strided_slice %76 {offsets = [0, 0], sizes = [8, 32], strides = [1, 1]} : vector<16x128xf32> to vector<8x32xf32>
    %78 = vector.extract_strided_slice %76 {offsets = [0, 32], sizes = [8, 32], strides = [1, 1]} : vector<16x128xf32> to vector<8x32xf32>
    %cst_32 = arith.constant 5.000000e-01 : f32
    %79 = vector.broadcast %cst_32 : f32 to vector<8x32xf32>
    %80 = arith.mulf %79, %78 : vector<8x32xf32>
    %81 = math.exp %80 : vector<8x32xf32>
    %82 = arith.mulf %8, %81 : vector<8x32xf32>
    %83 = arith.addf %77, %82 : vector<8x32xf32>
    %84 = vector.extract_strided_slice %76 {offsets = [8, 64], sizes = [8, 32], strides = [1, 1]} : vector<16x128xf32> to vector<8x32xf32>
    %85 = vector.extract_strided_slice %76 {offsets = [8, 96], sizes = [8, 32], strides = [1, 1]} : vector<16x128xf32> to vector<8x32xf32>
    %cst_33 = arith.constant 5.000000e-01 : f32
    %86 = vector.broadcast %cst_33 : f32 to vector<8x32xf32>
    %87 = arith.mulf %86, %85 : vector<8x32xf32>
    %88 = math.exp %87 : vector<8x32xf32>
    %89 = arith.mulf %7, %88 : vector<8x32xf32>
    %90 = arith.addf %84, %89 : vector<8x32xf32>
    %91 = tpu.concatenate %33, %38, %90, %83 in 1 : vector<8x32xf32>, vector<8x32xf32>, vector<8x32xf32>, vector<8x32xf32> -> vector<8x128xf32>
    %c0_34 = arith.constant 0 : index
    %c0_35 = arith.constant 0 : index
    %92 = vector.load %arg9[%c0_34, %c0_35] : memref<8x128xf32, #tpu.memory_space<vmem>>, vector<8x128xf32>
    tpu.vector_store %arg9[%c0_34, %c0_35], %91 {strides = array<i32>} : memref<8x128xf32, #tpu.memory_space<vmem>>, vector<8x128xf32>,
    %c0_36 = arith.constant 0 : index
    %c0_37 = arith.constant 0 : index
    %93 = vector.load %arg6[%c0_36, %c0_37] : memref<4x128xf32, #tpu.memory_space<vmem>>, vector<4x128xf32>
    %94 = vector.extract_strided_slice %93 {offsets = [0, 0], sizes = [4, 32], strides = [1, 1]} : vector<4x128xf32> to vector<4x32xf32>
    %95 = vector.extract_strided_slice %93 {offsets = [0, 32], sizes = [4, 32], strides = [1, 1]} : vector<4x128xf32> to vector<4x32xf32>
    %96 = vector.extract_strided_slice %93 {offsets = [0, 64], sizes = [4, 32], strides = [1, 1]} : vector<4x128xf32> to vector<4x32xf32>
    %97 = vector.extract_strided_slice %93 {offsets = [0, 96], sizes = [4, 32], strides = [1, 1]} : vector<4x128xf32> to vector<4x32xf32>
    %98 = math.exp %26 : vector<8x32xf32>
    %99 = math.exp %95 : vector<4x32xf32>
    %cst_38 = arith.constant 6.28318548 : f32
    %100 = math.log %cst_38 : f32
    %cst_39 = arith.constant -1.600000e+01 : f32
    %101 = arith.mulf %cst_39, %100 : f32
    %102 = math.log %98 : vector<8x32xf32>
    %cst_40 = arith.constant dense<0.000000e+00> : vector<8xf32>
    %103 = vector.multi_reduction <add>, %102, %cst_40 [1] : vector<8x32xf32> to vector<8xf32>
    %104 = vector.shape_cast %103 : vector<8xf32> to vector<8x1xf32>
    %cst_41 = arith.constant -5.000000e-01 : f32
    %105 = vector.broadcast %cst_41 : f32 to vector<8x1xf32>
    %106 = arith.mulf %105, %104 : vector<8x1xf32>
    %107 = arith.subf %33, %25 : vector<8x32xf32>
    %108 = arith.mulf %107, %107 : vector<8x32xf32>
    %109 = arith.divf %108, %98 : vector<8x32xf32>
    %cst_42 = arith.constant dense<0.000000e+00> : vector<8xf32>
    %110 = vector.multi_reduction <add>, %109, %cst_42 [1] : vector<8x32xf32> to vector<8xf32>
    %111 = vector.shape_cast %110 : vector<8xf32> to vector<8x1xf32>
    %cst_43 = arith.constant -5.000000e-01 : f32
    %112 = vector.broadcast %cst_43 : f32 to vector<8x1xf32>
    %113 = arith.mulf %112, %111 : vector<8x1xf32>
    %114 = vector.broadcast %101 : f32 to vector<8x1xf32>
    %115 = arith.addf %114, %106 : vector<8x1xf32>
    %116 = arith.addf %115, %113 : vector<8x1xf32>
    %cst_44 = arith.constant 6.28318548 : f32
    %117 = math.log %cst_44 : f32
    %cst_45 = arith.constant -1.600000e+01 : f32
    %118 = arith.mulf %cst_45, %117 : f32
    %cst_46 = arith.constant 1.000000e+00 : f32
    %119 = vector.broadcast %cst_46 : f32 to vector<4x32xf32>
    %120 = arith.divf %119, %99 : vector<4x32xf32>
    %121 = math.log %99 : vector<4x32xf32>
    %cst_47 = arith.constant dense<0.000000e+00> : vector<4xf32>
    %122 = vector.multi_reduction <add>, %121, %cst_47 [1] : vector<4x32xf32> to vector<4xf32>
    %123 = vector.shape_cast %122 : vector<4xf32> to vector<1x4xf32>
    %cst_48 = arith.constant -5.000000e-01 : f32
    %124 = vector.broadcast %cst_48 : f32 to vector<1x4xf32>
    %125 = arith.mulf %124, %123 : vector<1x4xf32>
    %126 = arith.mulf %33, %33 : vector<8x32xf32>
    %cst_49 = arith.constant dense<0.000000e+00> : vector<8x4xf32>
    %127 = tpu.matmul %126, %120, %cst_49 {dimension_numbers = #tpu.dot_dimension_numbers<[1], [1], [0], [0], [0, 0, 1, 0], [], []>} : vector<8x32xf32>, vector<4x32xf32>, vector<8x4xf32> -> vector<8x4xf32>
    %128 = arith.mulf %94, %120 : vector<4x32xf32>
    %cst_50 = arith.constant dense<0.000000e+00> : vector<8x4xf32>
    %129 = tpu.matmul %33, %128, %cst_50 {dimension_numbers = #tpu.dot_dimension_numbers<[1], [1], [0], [0], [0, 0, 1, 0], [], []>} : vector<8x32xf32>, vector<4x32xf32>, vector<8x4xf32> -> vector<8x4xf32>
    %130 = arith.mulf %94, %94 : vector<4x32xf32>
    %131 = arith.mulf %130, %120 : vector<4x32xf32>
    %cst_51 = arith.constant dense<0.000000e+00> : vector<4xf32>
    %132 = vector.multi_reduction <add>, %131, %cst_51 [1] : vector<4x32xf32> to vector<4xf32>
    %133 = vector.shape_cast %132 : vector<4xf32> to vector<1x4xf32>
    %134 = vector.broadcast %118 : f32 to vector<1x4xf32>
    %135 = arith.addf %134, %125 : vector<1x4xf32>
    %cst_52 = arith.constant 2.000000e+00 : f32
    %136 = vector.broadcast %cst_52 : f32 to vector<8x4xf32>
    %137 = arith.mulf %136, %129 : vector<8x4xf32>
    %138 = arith.subf %127, %137 : vector<8x4xf32>
    %139 = vector.broadcast %133 : vector<1x4xf32> to vector<8x4xf32>
    %140 = arith.addf %138, %139 : vector<8x4xf32>
    %cst_53 = arith.constant 5.000000e-01 : f32
    %141 = vector.broadcast %cst_53 : f32 to vector<8x4xf32>
    %142 = arith.mulf %141, %140 : vector<8x4xf32>
    %143 = vector.broadcast %135 : vector<1x4xf32> to vector<8x4xf32>
    %144 = arith.subf %143, %142 : vector<8x4xf32>
    %cst_54 = arith.constant dense<0xFF800000> : vector<8xf32>
    %145 = vector.multi_reduction <maximumf>, %144, %cst_54 [1] : vector<8x4xf32> to vector<8xf32>
    %146 = vector.shape_cast %145 : vector<8xf32> to vector<8x1xf32>
    %147 = vector.broadcast %146 : vector<8x1xf32> to vector<8x4xf32>
    %148 = arith.subf %144, %147 : vector<8x4xf32>
    %149 = math.exp %148 : vector<8x4xf32>
    %cst_55 = arith.constant dense<0.000000e+00> : vector<8xf32>
    %150 = vector.multi_reduction <add>, %149, %cst_55 [1] : vector<8x4xf32> to vector<8xf32>
    %151 = vector.shape_cast %150 : vector<8xf32> to vector<8x1xf32>
    %152 = math.log %151 : vector<8x1xf32>
    %153 = arith.addf %146, %152 : vector<8x1xf32>
    %cst_56 = arith.constant 4.000000e+00 : f32
    %154 = math.log %cst_56 : f32
    %155 = vector.broadcast %154 : f32 to vector<8x1xf32>
    %156 = arith.subf %153, %155 : vector<8x1xf32>
    %157 = arith.subf %116, %156 : vector<8x1xf32>
    %158 = vector.shape_cast %157 : vector<8x1xf32> to vector<1x8x1xf32>
    %cst_57 = arith.constant dense<0.000000e+00> : vector<1xf32>
    %159 = vector.multi_reduction <add>, %158, %cst_57 [1, 2] : vector<1x8x1xf32> to vector<1xf32>
    %160 = vector.shape_cast %159 : vector<1xf32> to vector<1x1x1xf32>
    %161 = vector.extract %160[0, 0, 0] : f32 from vector<1x1x1xf32>
    %162 = math.exp %28 : vector<8x32xf32>
    %163 = math.exp %97 : vector<4x32xf32>
    %cst_58 = arith.constant 6.28318548 : f32
    %164 = math.log %cst_58 : f32
    %cst_59 = arith.constant -1.600000e+01 : f32
    %165 = arith.mulf %cst_59, %164 : f32
    %166 = math.log %162 : vector<8x32xf32>
    %cst_60 = arith.constant dense<0.000000e+00> : vector<8xf32>
    %167 = vector.multi_reduction <add>, %166, %cst_60 [1] : vector<8x32xf32> to vector<8xf32>
    %168 = vector.shape_cast %167 : vector<8xf32> to vector<8x1xf32>
    %cst_61 = arith.constant -5.000000e-01 : f32
    %169 = vector.broadcast %cst_61 : f32 to vector<8x1xf32>
    %170 = arith.mulf %169, %168 : vector<8x1xf32>
    %171 = arith.subf %38, %27 : vector<8x32xf32>
    %172 = arith.mulf %171, %171 : vector<8x32xf32>
    %173 = arith.divf %172, %162 : vector<8x32xf32>
    %cst_62 = arith.constant dense<0.000000e+00> : vector<8xf32>
    %174 = vector.multi_reduction <add>, %173, %cst_62 [1] : vector<8x32xf32> to vector<8xf32>
    %175 = vector.shape_cast %174 : vector<8xf32> to vector<8x1xf32>
    %cst_63 = arith.constant -5.000000e-01 : f32
    %176 = vector.broadcast %cst_63 : f32 to vector<8x1xf32>
    %177 = arith.mulf %176, %175 : vector<8x1xf32>
    %178 = vector.broadcast %165 : f32 to vector<8x1xf32>
    %179 = arith.addf %178, %170 : vector<8x1xf32>
    %180 = arith.addf %179, %177 : vector<8x1xf32>
    %cst_64 = arith.constant 6.28318548 : f32
    %181 = math.log %cst_64 : f32
    %cst_65 = arith.constant -1.600000e+01 : f32
    %182 = arith.mulf %cst_65, %181 : f32
    %cst_66 = arith.constant 1.000000e+00 : f32
    %183 = vector.broadcast %cst_66 : f32 to vector<4x32xf32>
    %184 = arith.divf %183, %163 : vector<4x32xf32>
    %185 = math.log %163 : vector<4x32xf32>
    %cst_67 = arith.constant dense<0.000000e+00> : vector<4xf32>
    %186 = vector.multi_reduction <add>, %185, %cst_67 [1] : vector<4x32xf32> to vector<4xf32>
    %187 = vector.shape_cast %186 : vector<4xf32> to vector<1x4xf32>
    %cst_68 = arith.constant -5.000000e-01 : f32
    %188 = vector.broadcast %cst_68 : f32 to vector<1x4xf32>
    %189 = arith.mulf %188, %187 : vector<1x4xf32>
    %190 = arith.mulf %38, %38 : vector<8x32xf32>
    %cst_69 = arith.constant dense<0.000000e+00> : vector<8x4xf32>
    %191 = tpu.matmul %190, %184, %cst_69 {dimension_numbers = #tpu.dot_dimension_numbers<[1], [1], [0], [0], [0, 0, 1, 0], [], []>} : vector<8x32xf32>, vector<4x32xf32>, vector<8x4xf32> -> vector<8x4xf32>
    %192 = arith.mulf %96, %184 : vector<4x32xf32>
    %cst_70 = arith.constant dense<0.000000e+00> : vector<8x4xf32>
    %193 = tpu.matmul %38, %192, %cst_70 {dimension_numbers = #tpu.dot_dimension_numbers<[1], [1], [0], [0], [0, 0, 1, 0], [], []>} : vector<8x32xf32>, vector<4x32xf32>, vector<8x4xf32> -> vector<8x4xf32>
    %194 = arith.mulf %96, %96 : vector<4x32xf32>
    %195 = arith.mulf %194, %184 : vector<4x32xf32>
    %cst_71 = arith.constant dense<0.000000e+00> : vector<4xf32>
    %196 = vector.multi_reduction <add>, %195, %cst_71 [1] : vector<4x32xf32> to vector<4xf32>
    %197 = vector.shape_cast %196 : vector<4xf32> to vector<1x4xf32>
    %198 = vector.broadcast %182 : f32 to vector<1x4xf32>
    %199 = arith.addf %198, %189 : vector<1x4xf32>
    %cst_72 = arith.constant 2.000000e+00 : f32
    %200 = vector.broadcast %cst_72 : f32 to vector<8x4xf32>
    %201 = arith.mulf %200, %193 : vector<8x4xf32>
    %202 = arith.subf %191, %201 : vector<8x4xf32>
    %203 = vector.broadcast %197 : vector<1x4xf32> to vector<8x4xf32>
    %204 = arith.addf %202, %203 : vector<8x4xf32>
    %cst_73 = arith.constant 5.000000e-01 : f32
    %205 = vector.broadcast %cst_73 : f32 to vector<8x4xf32>
    %206 = arith.mulf %205, %204 : vector<8x4xf32>
    %207 = vector.broadcast %199 : vector<1x4xf32> to vector<8x4xf32>
    %208 = arith.subf %207, %206 : vector<8x4xf32>
    %cst_74 = arith.constant dense<0xFF800000> : vector<8xf32>
    %209 = vector.multi_reduction <maximumf>, %208, %cst_74 [1] : vector<8x4xf32> to vector<8xf32>
    %210 = vector.shape_cast %209 : vector<8xf32> to vector<8x1xf32>
    %211 = vector.broadcast %210 : vector<8x1xf32> to vector<8x4xf32>
    %212 = arith.subf %208, %211 : vector<8x4xf32>
    %213 = math.exp %212 : vector<8x4xf32>
    %cst_75 = arith.constant dense<0.000000e+00> : vector<8xf32>
    %214 = vector.multi_reduction <add>, %213, %cst_75 [1] : vector<8x4xf32> to vector<8xf32>
    %215 = vector.shape_cast %214 : vector<8xf32> to vector<8x1xf32>
    %216 = math.log %215 : vector<8x1xf32>
    %217 = arith.addf %210, %216 : vector<8x1xf32>
    %cst_76 = arith.constant 4.000000e+00 : f32
    %218 = math.log %cst_76 : f32
    %219 = vector.broadcast %218 : f32 to vector<8x1xf32>
    %220 = arith.subf %217, %219 : vector<8x1xf32>
    %221 = arith.subf %180, %220 : vector<8x1xf32>
    %222 = vector.shape_cast %221 : vector<8x1xf32> to vector<1x8x1xf32>
    %cst_77 = arith.constant dense<0.000000e+00> : vector<1xf32>
    %223 = vector.multi_reduction <add>, %222, %cst_77 [1, 2] : vector<1x8x1xf32> to vector<1xf32>
    %224 = vector.shape_cast %223 : vector<1xf32> to vector<1x1x1xf32>
    %225 = vector.extract %224[0, 0, 0] : f32 from vector<1x1x1xf32>
    %226 = arith.subf %33, %90 : vector<8x32xf32>
    %227 = arith.mulf %226, %226 : vector<8x32xf32>
    %228 = vector.shape_cast %227 : vector<8x32xf32> to vector<1x8x32xf32>
    %cst_78 = arith.constant dense<0.000000e+00> : vector<1xf32>
    %229 = vector.multi_reduction <add>, %228, %cst_78 [1, 2] : vector<1x8x32xf32> to vector<1xf32>
    %230 = vector.shape_cast %229 : vector<1xf32> to vector<1x1x1xf32>
    %231 = vector.extract %230[0, 0, 0] : f32 from vector<1x1x1xf32>
    %232 = math.sqrt %231 : f32
    %233 = arith.subf %38, %83 : vector<8x32xf32>
    %234 = arith.mulf %233, %233 : vector<8x32xf32>
    %235 = vector.shape_cast %234 : vector<8x32xf32> to vector<1x8x32xf32>
    %cst_79 = arith.constant dense<0.000000e+00> : vector<1xf32>
    %236 = vector.multi_reduction <add>, %235, %cst_79 [1, 2] : vector<1x8x32xf32> to vector<1xf32>
    %237 = vector.shape_cast %236 : vector<1xf32> to vector<1x1x1xf32>
    %238 = vector.extract %237[0, 0, 0] : f32 from vector<1x1x1xf32>
    %239 = math.sqrt %238 : f32
    %cst_80 = arith.constant 5.000000e-01 : f32
    %240 = vector.broadcast %cst_80 : f32 to vector<8x32xf32>
    %241 = arith.mulf %240, %28 : vector<8x32xf32>
    %242 = math.exp %241 : vector<8x32xf32>
    %cst_81 = arith.constant 5.000000e-01 : f32
    %243 = vector.broadcast %cst_81 : f32 to vector<8x32xf32>
    %244 = arith.mulf %243, %28 : vector<8x32xf32>
    %245 = math.exp %244 : vector<8x32xf32>
    %246 = arith.mulf %27, %27 : vector<8x32xf32>
    %cst_82 = arith.constant dense<0.000000e+00> : vector<8xf32>
    %247 = vector.multi_reduction <add>, %246, %cst_82 [1] : vector<8x32xf32> to vector<8xf32>
    %248 = vector.shape_cast %247 : vector<8xf32> to vector<8x1xf32>
    %249 = arith.mulf %27, %27 : vector<8x32xf32>
    %cst_83 = arith.constant dense<0.000000e+00> : vector<8xf32>
    %250 = vector.multi_reduction <add>, %249, %cst_83 [1] : vector<8x32xf32> to vector<8xf32>
    %251 = vector.shape_cast %250 : vector<8xf32> to vector<1x8xf32>
    %252 = vector.broadcast %248 : vector<8x1xf32> to vector<8x8xf32>
    %253 = vector.broadcast %251 : vector<1x8xf32> to vector<8x8xf32>
    %254 = arith.addf %252, %253 : vector<8x8xf32>
    %cst_84 = arith.constant dense<0.000000e+00> : vector<8x8xf32>
    %255 = tpu.matmul %27, %27, %cst_84 {dimension_numbers = #tpu.dot_dimension_numbers<[1], [1], [0], [0], [0, 0, 1, 0], [], []>} : vector<8x32xf32>, vector<8x32xf32>, vector<8x8xf32> -> vector<8x8xf32>
    %cst_85 = arith.constant 2.000000e+00 : f32
    %256 = vector.broadcast %cst_85 : f32 to vector<8x8xf32>
    %257 = arith.mulf %256, %255 : vector<8x8xf32>
    %258 = arith.subf %254, %257 : vector<8x8xf32>
    %cst_86 = arith.constant 0.000000e+00 : f32
    %259 = vector.broadcast %cst_86 : f32 to vector<8x8xf32>
    %260 = arith.maximumf %258, %259 : vector<8x8xf32>
    %261 = arith.mulf %242, %242 : vector<8x32xf32>
    %cst_87 = arith.constant dense<0.000000e+00> : vector<8xf32>
    %262 = vector.multi_reduction <add>, %261, %cst_87 [1] : vector<8x32xf32> to vector<8xf32>
    %263 = vector.shape_cast %262 : vector<8xf32> to vector<8x1xf32>
    %264 = arith.mulf %245, %245 : vector<8x32xf32>
    %cst_88 = arith.constant dense<0.000000e+00> : vector<8xf32>
    %265 = vector.multi_reduction <add>, %264, %cst_88 [1] : vector<8x32xf32> to vector<8xf32>
    %266 = vector.shape_cast %265 : vector<8xf32> to vector<1x8xf32>
    %267 = vector.broadcast %263 : vector<8x1xf32> to vector<8x8xf32>
    %268 = vector.broadcast %266 : vector<1x8xf32> to vector<8x8xf32>
    %269 = arith.addf %267, %268 : vector<8x8xf32>
    %cst_89 = arith.constant dense<0.000000e+00> : vector<8x8xf32>
    %270 = tpu.matmul %242, %245, %cst_89 {dimension_numbers = #tpu.dot_dimension_numbers<[1], [1], [0], [0], [0, 0, 1, 0], [], []>} : vector<8x32xf32>, vector<8x32xf32>, vector<8x8xf32> -> vector<8x8xf32>
    %cst_90 = arith.constant 2.000000e+00 : f32
    %271 = vector.broadcast %cst_90 : f32 to vector<8x8xf32>
    %272 = arith.mulf %271, %270 : vector<8x8xf32>
    %273 = arith.subf %269, %272 : vector<8x8xf32>
    %cst_91 = arith.constant 0.000000e+00 : f32
    %274 = vector.broadcast %cst_91 : f32 to vector<8x8xf32>
    %275 = arith.maximumf %273, %274 : vector<8x8xf32>
    %276 = arith.addf %260, %275 : vector<8x8xf32>
    %cst_92 = arith.constant 9.99999997E-7 : f32
    %277 = vector.broadcast %cst_92 : f32 to vector<8x8xf32>
    %278 = arith.addf %276, %277 : vector<8x8xf32>
    %cst_93 = arith.constant 5.000000e-01 : f32
    %279 = vector.broadcast %cst_93 : f32 to vector<8x32xf32>
    %280 = arith.mulf %279, %26 : vector<8x32xf32>
    %281 = math.exp %280 : vector<8x32xf32>
    %cst_94 = arith.constant 5.000000e-01 : f32
    %282 = vector.broadcast %cst_94 : f32 to vector<8x32xf32>
    %283 = arith.mulf %282, %26 : vector<8x32xf32>
    %284 = math.exp %283 : vector<8x32xf32>
    %285 = arith.mulf %25, %25 : vector<8x32xf32>
    %cst_95 = arith.constant dense<0.000000e+00> : vector<8xf32>
    %286 = vector.multi_reduction <add>, %285, %cst_95 [1] : vector<8x32xf32> to vector<8xf32>
    %287 = vector.shape_cast %286 : vector<8xf32> to vector<8x1xf32>
    %288 = arith.mulf %25, %25 : vector<8x32xf32>
    %cst_96 = arith.constant dense<0.000000e+00> : vector<8xf32>
    %289 = vector.multi_reduction <add>, %288, %cst_96 [1] : vector<8x32xf32> to vector<8xf32>
    %290 = vector.shape_cast %289 : vector<8xf32> to vector<1x8xf32>
    %291 = vector.broadcast %287 : vector<8x1xf32> to vector<8x8xf32>
    %292 = vector.broadcast %290 : vector<1x8xf32> to vector<8x8xf32>
    %293 = arith.addf %291, %292 : vector<8x8xf32>
    %cst_97 = arith.constant dense<0.000000e+00> : vector<8x8xf32>
    %294 = tpu.matmul %25, %25, %cst_97 {dimension_numbers = #tpu.dot_dimension_numbers<[1], [1], [0], [0], [0, 0, 1, 0], [], []>} : vector<8x32xf32>, vector<8x32xf32>, vector<8x8xf32> -> vector<8x8xf32>
    %cst_98 = arith.constant 2.000000e+00 : f32
    %295 = vector.broadcast %cst_98 : f32 to vector<8x8xf32>
    %296 = arith.mulf %295, %294 : vector<8x8xf32>
    %297 = arith.subf %293, %296 : vector<8x8xf32>
    %cst_99 = arith.constant 0.000000e+00 : f32
    %298 = vector.broadcast %cst_99 : f32 to vector<8x8xf32>
    %299 = arith.maximumf %297, %298 : vector<8x8xf32>
    %300 = arith.mulf %281, %281 : vector<8x32xf32>
    %cst_100 = arith.constant dense<0.000000e+00> : vector<8xf32>
    %301 = vector.multi_reduction <add>, %300, %cst_100 [1] : vector<8x32xf32> to vector<8xf32>
    %302 = vector.shape_cast %301 : vector<8xf32> to vector<8x1xf32>
    %303 = arith.mulf %284, %284 : vector<8x32xf32>
    %cst_101 = arith.constant dense<0.000000e+00> : vector<8xf32>
    %304 = vector.multi_reduction <add>, %303, %cst_101 [1] : vector<8x32xf32> to vector<8xf32>
    %305 = vector.shape_cast %304 : vector<8xf32> to vector<1x8xf32>
    %306 = vector.broadcast %302 : vector<8x1xf32> to vector<8x8xf32>
    %307 = vector.broadcast %305 : vector<1x8xf32> to vector<8x8xf32>
    %308 = arith.addf %306, %307 : vector<8x8xf32>
    %cst_102 = arith.constant dense<0.000000e+00> : vector<8x8xf32>
    %309 = tpu.matmul %281, %284, %cst_102 {dimension_numbers = #tpu.dot_dimension_numbers<[1], [1], [0], [0], [0, 0, 1, 0], [], []>} : vector<8x32xf32>, vector<8x32xf32>, vector<8x8xf32> -> vector<8x8xf32>
    %cst_103 = arith.constant 2.000000e+00 : f32
    %310 = vector.broadcast %cst_103 : f32 to vector<8x8xf32>
    %311 = arith.mulf %310, %309 : vector<8x8xf32>
    %312 = arith.subf %308, %311 : vector<8x8xf32>
    %cst_104 = arith.constant 0.000000e+00 : f32
    %313 = vector.broadcast %cst_104 : f32 to vector<8x8xf32>
    %314 = arith.maximumf %312, %313 : vector<8x8xf32>
    %315 = arith.addf %299, %314 : vector<8x8xf32>
    %cst_105 = arith.constant 9.99999997E-7 : f32
    %316 = vector.broadcast %cst_105 : f32 to vector<8x8xf32>
    %317 = arith.addf %315, %316 : vector<8x8xf32>
    %cst_106 = arith.constant 5.000000e-01 : f32
    %318 = vector.broadcast %cst_106 : f32 to vector<8x32xf32>
    %319 = arith.mulf %318, %28 : vector<8x32xf32>
    %320 = math.exp %319 : vector<8x32xf32>
    %cst_107 = arith.constant 5.000000e-01 : f32
    %321 = vector.broadcast %cst_107 : f32 to vector<8x32xf32>
    %322 = arith.mulf %321, %26 : vector<8x32xf32>
    %323 = math.exp %322 : vector<8x32xf32>
    %324 = arith.mulf %27, %27 : vector<8x32xf32>
    %cst_108 = arith.constant dense<0.000000e+00> : vector<8xf32>
    %325 = vector.multi_reduction <add>, %324, %cst_108 [1] : vector<8x32xf32> to vector<8xf32>
    %326 = vector.shape_cast %325 : vector<8xf32> to vector<8x1xf32>
    %327 = arith.mulf %25, %25 : vector<8x32xf32>
    %cst_109 = arith.constant dense<0.000000e+00> : vector<8xf32>
    %328 = vector.multi_reduction <add>, %327, %cst_109 [1] : vector<8x32xf32> to vector<8xf32>
    %329 = vector.shape_cast %328 : vector<8xf32> to vector<1x8xf32>
    %330 = vector.broadcast %326 : vector<8x1xf32> to vector<8x8xf32>
    %331 = vector.broadcast %329 : vector<1x8xf32> to vector<8x8xf32>
    %332 = arith.addf %330, %331 : vector<8x8xf32>
    %cst_110 = arith.constant dense<0.000000e+00> : vector<8x8xf32>
    %333 = tpu.matmul %27, %25, %cst_110 {dimension_numbers = #tpu.dot_dimension_numbers<[1], [1], [0], [0], [0, 0, 1, 0], [], []>} : vector<8x32xf32>, vector<8x32xf32>, vector<8x8xf32> -> vector<8x8xf32>
    %cst_111 = arith.constant 2.000000e+00 : f32
    %334 = vector.broadcast %cst_111 : f32 to vector<8x8xf32>
    %335 = arith.mulf %334, %333 : vector<8x8xf32>
    %336 = arith.subf %332, %335 : vector<8x8xf32>
    %cst_112 = arith.constant 0.000000e+00 : f32
    %337 = vector.broadcast %cst_112 : f32 to vector<8x8xf32>
    %338 = arith.maximumf %336, %337 : vector<8x8xf32>
    %339 = arith.mulf %320, %320 : vector<8x32xf32>
    %cst_113 = arith.constant dense<0.000000e+00> : vector<8xf32>
    %340 = vector.multi_reduction <add>, %339, %cst_113 [1] : vector<8x32xf32> to vector<8xf32>
    %341 = vector.shape_cast %340 : vector<8xf32> to vector<8x1xf32>
    %342 = arith.mulf %323, %323 : vector<8x32xf32>
    %cst_114 = arith.constant dense<0.000000e+00> : vector<8xf32>
    %343 = vector.multi_reduction <add>, %342, %cst_114 [1] : vector<8x32xf32> to vector<8xf32>
    %344 = vector.shape_cast %343 : vector<8xf32> to vector<1x8xf32>
    %345 = vector.broadcast %341 : vector<8x1xf32> to vector<8x8xf32>
    %346 = vector.broadcast %344 : vector<1x8xf32> to vector<8x8xf32>
    %347 = arith.addf %345, %346 : vector<8x8xf32>
    %cst_115 = arith.constant dense<0.000000e+00> : vector<8x8xf32>
    %348 = tpu.matmul %320, %323, %cst_115 {dimension_numbers = #tpu.dot_dimension_numbers<[1], [1], [0], [0], [0, 0, 1, 0], [], []>} : vector<8x32xf32>, vector<8x32xf32>, vector<8x8xf32> -> vector<8x8xf32>
    %cst_116 = arith.constant 2.000000e+00 : f32
    %349 = vector.broadcast %cst_116 : f32 to vector<8x8xf32>
    %350 = arith.mulf %349, %348 : vector<8x8xf32>
    %351 = arith.subf %347, %350 : vector<8x8xf32>
    %cst_117 = arith.constant 0.000000e+00 : f32
    %352 = vector.broadcast %cst_117 : f32 to vector<8x8xf32>
    %353 = arith.maximumf %351, %352 : vector<8x8xf32>
    %354 = arith.addf %338, %353 : vector<8x8xf32>
    %cst_118 = arith.constant 9.99999997E-7 : f32
    %355 = vector.broadcast %cst_118 : f32 to vector<8x8xf32>
    %356 = arith.addf %354, %355 : vector<8x8xf32>
    %cst_119 = arith.constant 1.250000e-01 : f32
    %357 = vector.broadcast %cst_119 : f32 to vector<8x1xf32>
    %cst_120 = arith.constant 1.250000e-01 : f32
    %358 = vector.broadcast %cst_120 : f32 to vector<1x8xf32>
    %cst_121 = arith.constant 1.562500e-02 : f32
    %359 = vector.broadcast %cst_121 : f32 to vector<8x8xf32>
    %cst_122 = arith.constant 1.250000e-01 : f32
    %360 = vector.broadcast %cst_122 : f32 to vector<8x1xf32>
    %c0_i32 = arith.constant 0 : i32
    %c10_i32 = arith.constant 10 : i32
    %361 = arith.addi %c0_i32, %c10_i32 : i32
    %c1_i32 = arith.constant 1 : i32
    %362:2 = scf.for %arg13 = %c0_i32 to %361 step %c1_i32 iter_args(%arg14 = %359, %arg15 = %360) -> (vector<8x8xf32>, vector<8x1xf32>)  : i32 {
      %433 = arith.mulf %278, %278 : vector<8x8xf32>
      %cst_147 = arith.constant dense<0.000000e+00> : vector<8xf32>
      %434 = vector.multi_reduction <add>, %433, %cst_147 [1] : vector<8x8xf32> to vector<8xf32>
      %435 = vector.shape_cast %434 : vector<8xf32> to vector<8x1xf32>
      %cst_148 = arith.constant 8.000000e+00 : f32
      %436 = vector.broadcast %cst_148 : f32 to vector<8x1xf32>
      %437 = arith.divf %435, %436 : vector<8x1xf32>
      %438 = arith.mulf %317, %317 : vector<8x8xf32>
      %cst_149 = arith.constant dense<0.000000e+00> : vector<8xf32>
      %439 = vector.multi_reduction <add>, %438, %cst_149 [1] : vector<8x8xf32> to vector<8xf32>
      %440 = vector.shape_cast %439 : vector<8xf32> to vector<1x8xf32>
      %cst_150 = arith.constant 8.000000e+00 : f32
      %441 = vector.broadcast %cst_150 : f32 to vector<1x8xf32>
      %442 = arith.divf %440, %441 : vector<1x8xf32>
      %cst_151 = arith.constant dense<0.000000e+00> : vector<8x8xf32>
      %443 = tpu.matmul %278, %arg14, %cst_151 {dimension_numbers = #tpu.dot_dimension_numbers<[1], [0], [0], [1], [0, 0, 1, 1], [], []>} : vector<8x8xf32>, vector<8x8xf32>, vector<8x8xf32> -> vector<8x8xf32>
      %cst_152 = arith.constant dense<0.000000e+00> : vector<8x8xf32>
      %444 = tpu.matmul %443, %317, %cst_152 {dimension_numbers = #tpu.dot_dimension_numbers<[1], [1], [0], [0], [0, 0, 1, 0], [], []>} : vector<8x8xf32>, vector<8x8xf32>, vector<8x8xf32> -> vector<8x8xf32>
      %445 = vector.broadcast %437 : vector<8x1xf32> to vector<8x8xf32>
      %446 = vector.broadcast %442 : vector<1x8xf32> to vector<8x8xf32>
      %447 = arith.addf %445, %446 : vector<8x8xf32>
      %cst_153 = arith.constant 2.000000e+00 : f32
      %448 = vector.broadcast %cst_153 : f32 to vector<8x8xf32>
      %449 = arith.mulf %448, %444 : vector<8x8xf32>
      %450 = arith.subf %447, %449 : vector<8x8xf32>
      %cst_154 = arith.constant 1.000000e-01 : f32
      %451 = vector.broadcast %cst_154 : f32 to vector<8x8xf32>
      %452 = arith.mulf %451, %450 : vector<8x8xf32>
      %cst_155 = arith.constant 0.899999976 : f32
      %453 = vector.broadcast %cst_155 : f32 to vector<8x8xf32>
      %454 = arith.mulf %453, %356 : vector<8x8xf32>
      %455 = arith.addf %452, %454 : vector<8x8xf32>
      %456 = math.absf %455 : vector<8x8xf32>
      %457 = vector.shape_cast %456 : vector<8x8xf32> to vector<1x8x8xf32>
      %cst_156 = arith.constant dense<0xFF800000> : vector<1xf32>
      %458 = vector.multi_reduction <maximumf>, %457, %cst_156 [1, 2] : vector<1x8x8xf32> to vector<1xf32>
      %459 = vector.shape_cast %458 : vector<1xf32> to vector<1x1x1xf32>
      %460 = vector.extract %459[0, 0, 0] : f32 from vector<1x1x1xf32>
      %461 = vector.broadcast %460 : f32 to vector<1x1xf32>
      %462 = tpu.reciprocal %461 {approx = true} : vector<1x1xf32> -> vector<1x1xf32>
      %cst_157 = arith.constant 0.000000e+00 : f32
      %463 = vector.broadcast %cst_157 : f32 to vector<8x8xf32>
      %464 = arith.subf %463, %455 : vector<8x8xf32>
      %465 = vector.broadcast %462 : vector<1x1xf32> to vector<8x8xf32>
      %466 = arith.mulf %464, %465 : vector<8x8xf32>
      %467 = math.exp %466 : vector<8x8xf32>
      %468 = arith.mulf %467, %arg14 : vector<8x8xf32>
      %469 = vector.broadcast %arg15 : vector<8x1xf32> to vector<8x8xf32>
      %470 = arith.mulf %468, %469 : vector<8x8xf32>
      %cst_158 = arith.constant dense<0.000000e+00> : vector<8xf32>
      %471 = vector.multi_reduction <add>, %470, %cst_158 [0] : vector<8x8xf32> to vector<8xf32>
      %472 = vector.shape_cast %471 : vector<8xf32> to vector<1x8xf32>
      %473 = tpu.reciprocal %472 {approx = true} : vector<1x8xf32> -> vector<1x8xf32>
      %474 = arith.mulf %358, %473 : vector<1x8xf32>
      %475 = vector.broadcast %474 : vector<1x8xf32> to vector<8x8xf32>
      %476 = arith.mulf %468, %475 : vector<8x8xf32>
      %cst_159 = arith.constant dense<0.000000e+00> : vector<8xf32>
      %477 = vector.multi_reduction <add>, %476, %cst_159 [1] : vector<8x8xf32> to vector<8xf32>
      %478 = vector.shape_cast %477 : vector<8xf32> to vector<8x1xf32>
      %479 = tpu.reciprocal %478 {approx = true} : vector<8x1xf32> -> vector<8x1xf32>
      %480 = arith.mulf %357, %479 : vector<8x1xf32>
      %481 = vector.broadcast %480 : vector<8x1xf32> to vector<8x8xf32>
      %482 = arith.mulf %468, %481 : vector<8x8xf32>
      %cst_160 = arith.constant dense<0.000000e+00> : vector<8xf32>
      %483 = vector.multi_reduction <add>, %482, %cst_160 [0] : vector<8x8xf32> to vector<8xf32>
      %484 = vector.shape_cast %483 : vector<8xf32> to vector<1x8xf32>
      %485 = tpu.reciprocal %484 {approx = true} : vector<1x8xf32> -> vector<1x8xf32>
      %486 = arith.mulf %358, %485 : vector<1x8xf32>
      %487 = vector.broadcast %486 : vector<1x8xf32> to vector<8x8xf32>
      %488 = arith.mulf %468, %487 : vector<8x8xf32>
      %cst_161 = arith.constant dense<0.000000e+00> : vector<8xf32>
      %489 = vector.multi_reduction <add>, %488, %cst_161 [1] : vector<8x8xf32> to vector<8xf32>
      %490 = vector.shape_cast %489 : vector<8xf32> to vector<8x1xf32>
      %491 = tpu.reciprocal %490 {approx = true} : vector<8x1xf32> -> vector<8x1xf32>
      %492 = arith.mulf %357, %491 : vector<8x1xf32>
      %493 = vector.broadcast %492 : vector<8x1xf32> to vector<8x8xf32>
      %494 = arith.mulf %468, %493 : vector<8x8xf32>
      %cst_162 = arith.constant dense<0.000000e+00> : vector<8xf32>
      %495 = vector.multi_reduction <add>, %494, %cst_162 [0] : vector<8x8xf32> to vector<8xf32>
      %496 = vector.shape_cast %495 : vector<8xf32> to vector<1x8xf32>
      %497 = tpu.reciprocal %496 {approx = true} : vector<1x8xf32> -> vector<1x8xf32>
      %498 = arith.mulf %358, %497 : vector<1x8xf32>
      %499 = vector.broadcast %498 : vector<1x8xf32> to vector<8x8xf32>
      %500 = arith.mulf %468, %499 : vector<8x8xf32>
      %cst_163 = arith.constant dense<0.000000e+00> : vector<8xf32>
      %501 = vector.multi_reduction <add>, %500, %cst_163 [1] : vector<8x8xf32> to vector<8xf32>
      %502 = vector.shape_cast %501 : vector<8xf32> to vector<8x1xf32>
      %503 = tpu.reciprocal %502 {approx = true} : vector<8x1xf32> -> vector<8x1xf32>
      %504 = arith.mulf %357, %503 : vector<8x1xf32>
      %505 = vector.broadcast %504 : vector<8x1xf32> to vector<8x8xf32>
      %506 = arith.mulf %468, %505 : vector<8x8xf32>
      %cst_164 = arith.constant dense<0.000000e+00> : vector<8xf32>
      %507 = vector.multi_reduction <add>, %506, %cst_164 [0] : vector<8x8xf32> to vector<8xf32>
      %508 = vector.shape_cast %507 : vector<8xf32> to vector<1x8xf32>
      %509 = tpu.reciprocal %508 {approx = true} : vector<1x8xf32> -> vector<1x8xf32>
      %510 = arith.mulf %358, %509 : vector<1x8xf32>
      %511 = vector.broadcast %510 : vector<1x8xf32> to vector<8x8xf32>
      %512 = arith.mulf %468, %511 : vector<8x8xf32>
      %cst_165 = arith.constant dense<0.000000e+00> : vector<8xf32>
      %513 = vector.multi_reduction <add>, %512, %cst_165 [1] : vector<8x8xf32> to vector<8xf32>
      %514 = vector.shape_cast %513 : vector<8xf32> to vector<8x1xf32>
      %515 = tpu.reciprocal %514 {approx = true} : vector<8x1xf32> -> vector<8x1xf32>
      %516 = arith.mulf %357, %515 : vector<8x1xf32>
      %517 = vector.broadcast %516 : vector<8x1xf32> to vector<8x8xf32>
      %518 = arith.mulf %468, %517 : vector<8x8xf32>
      %cst_166 = arith.constant dense<0.000000e+00> : vector<8xf32>
      %519 = vector.multi_reduction <add>, %518, %cst_166 [0] : vector<8x8xf32> to vector<8xf32>
      %520 = vector.shape_cast %519 : vector<8xf32> to vector<1x8xf32>
      %521 = tpu.reciprocal %520 {approx = true} : vector<1x8xf32> -> vector<1x8xf32>
      %522 = arith.mulf %358, %521 : vector<1x8xf32>
      %523 = vector.broadcast %522 : vector<1x8xf32> to vector<8x8xf32>
      %524 = arith.mulf %468, %523 : vector<8x8xf32>
      %cst_167 = arith.constant dense<0.000000e+00> : vector<8xf32>
      %525 = vector.multi_reduction <add>, %524, %cst_167 [1] : vector<8x8xf32> to vector<8xf32>
      %526 = vector.shape_cast %525 : vector<8xf32> to vector<8x1xf32>
      %527 = tpu.reciprocal %526 {approx = true} : vector<8x1xf32> -> vector<8x1xf32>
      %528 = arith.mulf %357, %527 : vector<8x1xf32>
      %529 = vector.broadcast %528 : vector<8x1xf32> to vector<8x8xf32>
      %530 = arith.mulf %468, %529 : vector<8x8xf32>
      %cst_168 = arith.constant dense<0.000000e+00> : vector<8xf32>
      %531 = vector.multi_reduction <add>, %530, %cst_168 [0] : vector<8x8xf32> to vector<8xf32>
      %532 = vector.shape_cast %531 : vector<8xf32> to vector<1x8xf32>
      %533 = tpu.reciprocal %532 {approx = true} : vector<1x8xf32> -> vector<1x8xf32>
      %534 = arith.mulf %358, %533 : vector<1x8xf32>
      %535 = vector.broadcast %528 : vector<8x1xf32> to vector<8x8xf32>
      %536 = vector.broadcast %534 : vector<1x8xf32> to vector<8x8xf32>
      %537 = arith.mulf %535, %536 : vector<8x8xf32>
      %538 = arith.mulf %537, %468 : vector<8x8xf32>
      scf.yield %538, %528 : vector<8x8xf32>, vector<8x1xf32>
    }
    %363 = arith.cmpf one, %362#0, %362#0 : vector<8x8xf32>
    %cst_123 = arith.constant 1.000000e+00 : f32
    %cst_124 = arith.constant 0.000000e+00 : f32
    %364 = vector.broadcast %cst_123 : f32 to vector<8x8xf32>
    %365 = vector.broadcast %cst_124 : f32 to vector<8x8xf32>
    %366 = arith.select %363, %364, %365 : vector<8x8xi1>, vector<8x8xf32>
    %367 = vector.shape_cast %366 : vector<8x8xf32> to vector<1x8x8xf32>
    %cst_125 = arith.constant dense<0.000000e+00> : vector<1xf32>
    %368 = vector.multi_reduction <add>, %367, %cst_125 [1, 2] : vector<1x8x8xf32> to vector<1xf32>
    %369 = vector.shape_cast %368 : vector<1xf32> to vector<1x1x1xf32>
    %370 = vector.extract %369[0, 0, 0] : f32 from vector<1x1x1xf32>
    %cst_126 = arith.constant 0.000000e+00 : f32
    %371 = arith.cmpf ogt, %370, %cst_126 : f32
    %cst_127 = arith.constant 1.562500e-02 : f32
    %372 = vector.broadcast %cst_127 : f32 to vector<8x8xf32>
    %373 = arith.select %371, %372, %362#0 : vector<8x8xf32>
    %374 = arith.mulf %278, %278 : vector<8x8xf32>
    %cst_128 = arith.constant dense<0.000000e+00> : vector<8xf32>
    %375 = vector.multi_reduction <add>, %374, %cst_128 [1] : vector<8x8xf32> to vector<8xf32>
    %376 = vector.shape_cast %375 : vector<8xf32> to vector<8x1xf32>
    %cst_129 = arith.constant 8.000000e+00 : f32
    %377 = vector.broadcast %cst_129 : f32 to vector<8x1xf32>
    %378 = arith.divf %376, %377 : vector<8x1xf32>
    %379 = arith.mulf %317, %317 : vector<8x8xf32>
    %cst_130 = arith.constant dense<0.000000e+00> : vector<8xf32>
    %380 = vector.multi_reduction <add>, %379, %cst_130 [1] : vector<8x8xf32> to vector<8xf32>
    %381 = vector.shape_cast %380 : vector<8xf32> to vector<1x8xf32>
    %cst_131 = arith.constant 8.000000e+00 : f32
    %382 = vector.broadcast %cst_131 : f32 to vector<1x8xf32>
    %383 = arith.divf %381, %382 : vector<1x8xf32>
    %cst_132 = arith.constant dense<0.000000e+00> : vector<8x8xf32>
    %384 = tpu.matmul %278, %373, %cst_132 {dimension_numbers = #tpu.dot_dimension_numbers<[1], [0], [0], [1], [0, 0, 1, 1], [], []>} : vector<8x8xf32>, vector<8x8xf32>, vector<8x8xf32> -> vector<8x8xf32>
    %cst_133 = arith.constant dense<0.000000e+00> : vector<8x8xf32>
    %385 = tpu.matmul %384, %317, %cst_133 {dimension_numbers = #tpu.dot_dimension_numbers<[1], [1], [0], [0], [0, 0, 1, 0], [], []>} : vector<8x8xf32>, vector<8x8xf32>, vector<8x8xf32> -> vector<8x8xf32>
    %386 = vector.broadcast %378 : vector<8x1xf32> to vector<8x8xf32>
    %387 = vector.broadcast %383 : vector<1x8xf32> to vector<8x8xf32>
    %388 = arith.addf %386, %387 : vector<8x8xf32>
    %cst_134 = arith.constant 2.000000e+00 : f32
    %389 = vector.broadcast %cst_134 : f32 to vector<8x8xf32>
    %390 = arith.mulf %389, %385 : vector<8x8xf32>
    %391 = arith.subf %388, %390 : vector<8x8xf32>
    %cst_135 = arith.constant 1.000000e-01 : f32
    %392 = vector.broadcast %cst_135 : f32 to vector<8x8xf32>
    %393 = arith.mulf %392, %391 : vector<8x8xf32>
    %cst_136 = arith.constant 0.899999976 : f32
    %394 = vector.broadcast %cst_136 : f32 to vector<8x8xf32>
    %395 = arith.mulf %394, %356 : vector<8x8xf32>
    %396 = arith.addf %393, %395 : vector<8x8xf32>
    %397 = arith.mulf %396, %373 : vector<8x8xf32>
    %398 = vector.shape_cast %397 : vector<8x8xf32> to vector<1x8x8xf32>
    %cst_137 = arith.constant dense<0.000000e+00> : vector<1xf32>
    %399 = vector.multi_reduction <add>, %398, %cst_137 [1, 2] : vector<1x8x8xf32> to vector<1xf32>
    %400 = vector.shape_cast %399 : vector<1xf32> to vector<1x1x1xf32>
    %401 = vector.extract %400[0, 0, 0] : f32 from vector<1x1x1xf32>
    %402 = tpu.iota {dimensions = array<i32: 1>} : vector<1x128xi32>
    %c0_i32_138 = arith.constant 0 : i32
    %403 = vector.broadcast %c0_i32_138 : i32 to vector<1x128xi32>
    %404 = arith.cmpi eq, %402, %403 : vector<1x128xi32>
    %cst_139 = arith.constant 0.000000e+00 : f32
    %405 = vector.broadcast %161 : f32 to vector<1x128xf32>
    %406 = vector.broadcast %cst_139 : f32 to vector<1x128xf32>
    %407 = arith.select %404, %405, %406 : vector<1x128xi1>, vector<1x128xf32>
    %c1_i32_140 = arith.constant 1 : i32
    %408 = vector.broadcast %c1_i32_140 : i32 to vector<1x128xi32>
    %409 = arith.cmpi eq, %402, %408 : vector<1x128xi32>
    %cst_141 = arith.constant 0.000000e+00 : f32
    %410 = vector.broadcast %225 : f32 to vector<1x128xf32>
    %411 = vector.broadcast %cst_141 : f32 to vector<1x128xf32>
    %412 = arith.select %409, %410, %411 : vector<1x128xi1>, vector<1x128xf32>
    %413 = arith.addf %407, %412 : vector<1x128xf32>
    %c2_i32 = arith.constant 2 : i32
    %414 = vector.broadcast %c2_i32 : i32 to vector<1x128xi32>
    %415 = arith.cmpi eq, %402, %414 : vector<1x128xi32>
    %cst_142 = arith.constant 0.000000e+00 : f32
    %416 = vector.broadcast %401 : f32 to vector<1x128xf32>
    %417 = vector.broadcast %cst_142 : f32 to vector<1x128xf32>
    %418 = arith.select %415, %416, %417 : vector<1x128xi1>, vector<1x128xf32>
    %419 = arith.addf %413, %418 : vector<1x128xf32>
    %c3_i32 = arith.constant 3 : i32
    %420 = vector.broadcast %c3_i32 : i32 to vector<1x128xi32>
    %421 = arith.cmpi eq, %402, %420 : vector<1x128xi32>
    %cst_143 = arith.constant 0.000000e+00 : f32
    %422 = vector.broadcast %232 : f32 to vector<1x128xf32>
    %423 = vector.broadcast %cst_143 : f32 to vector<1x128xf32>
    %424 = arith.select %421, %422, %423 : vector<1x128xi1>, vector<1x128xf32>
    %425 = arith.addf %419, %424 : vector<1x128xf32>
    %c4_i32 = arith.constant 4 : i32
    %426 = vector.broadcast %c4_i32 : i32 to vector<1x128xi32>
    %427 = arith.cmpi eq, %402, %426 : vector<1x128xi32>
    %cst_144 = arith.constant 0.000000e+00 : f32
    %428 = vector.broadcast %239 : f32 to vector<1x128xf32>
    %429 = vector.broadcast %cst_144 : f32 to vector<1x128xf32>
    %430 = arith.select %427, %428, %429 : vector<1x128xi1>, vector<1x128xf32>
    %431 = arith.addf %425, %430 : vector<1x128xf32>
    %c0_145 = arith.constant 0 : index
    %c0_146 = arith.constant 0 : index
    %432 = vector.load %arg10[%c0_145, %c0_146] : memref<1x128xf32, #tpu.memory_space<vmem>>, vector<1x128xf32>
    tpu.vector_store %arg10[%c0_145, %c0_146], %431 {strides = array<i32>} : memref<1x128xf32, #tpu.memory_space<vmem>>, vector<1x128xf32>,
    tpu.wait_dma2 semaphore(%arg12 : memref<!tpu.dma_semaphore, #tpu.memory_space<semaphore_mem>>) src(%arg11 : memref<16x256xf32, #tpu.memory_space<vmem>>) dst(%arg8 : memref<16x256xf32, #tpu.memory_space<any>>)
    return
  }
}

</mosaic_0001>

<llo_original>
// kernel: tpu_custom_call.1
$region0: #{tpu_custom_call.1}
  #allocation0 [shape = 'u32[]', space=smem, size = 0x4, offset = 0x4, fixed_abs, tag = 'smem constant byte address 0x4 - core index']
  #allocation1 [shape = 'u32[144,128]{1,0:T(1,128)}', space=vmem, size = 0x12000, scoped, tag = 'internal scratch']
  #allocation2 [shape = 'f32[16,256]{1,0:T(8,128)}', space=vmem, size = 0x4000, scoped, tag = 'scratch operand']
  #allocation3 [shape = 's32[1]{0}', space=sflag, size = 0x4, scoped, tag = 'scratch operand']
  #allocation18 [shape = 's32[]', space=sflag, size = 0x4, offset = 0, fixed_abs, tag = 'sflag constant byte address 0x0 - dummy sync flag']
  #allocation19 [shape = 's32[]', space=sflag, size = 0x4, offset = 0, fixed_abs, tag = 'sflag constant byte address 0x0 - dummy sync flag']
  #allocation20 [shape = 'u32[]', space=smem, size = 0x4, offset = 0x44, fixed_abs, tag = 'smem constant byte address 0x44 - assertion arg 0']
  #allocation21 [shape = 'u32[]', space=smem, size = 0x4, offset = 0x48, fixed_abs, tag = 'smem constant byte address 0x48 - assertion arg 1']
  %s0 = inlined_call_operand.hbm [shape: f32[16,128], index: 0, kind: input, shape index: {}]
  %s1 = inlined_call_operand.hbm [shape: bf16[128,512], index: 1, kind: input, shape index: {}]
  %s2 = inlined_call_operand.hbm [shape: bf16[256,128], index: 2, kind: input, shape index: {}]
  %s3 = inlined_call_operand.hbm [shape: bf16[32,512], index: 3, kind: input, shape index: {}]
  %s4 = inlined_call_operand.hbm [shape: bf16[256,256], index: 4, kind: input, shape index: {}]
  %s5 = inlined_call_operand.hbm [shape: f32[1,1408], index: 5, kind: input, shape index: {}]
  %s6 = inlined_call_operand.vmem [shape: f32[4,128], index: 6, kind: input, shape index: {}]
  %s7 = inlined_call_operand.vmem [shape: f32[8,128], index: 7, kind: input, shape index: {}]
  %s8 = inlined_call_operand.hbm [shape: f32[16,256], index: 8, kind: output, shape index: {0}]
  %s9 = inlined_call_operand.hbm [shape: f32[8,128], index: 9, kind: output, shape index: {1}]
  %s10 = inlined_call_operand.hbm [shape: f32[1,128], index: 10, kind: output, shape index: {2}]
  %11 = xla_tuple %s8, %s9, %s10
  %s12 = sld [smem:[#allocation0]]
  $region85: #{tpu_custom_call.1} parent=0
    _
  %s14 = ssub.s32 1, %s12
  %s15 = scalar_select 0, %s14, %s12
  $region1: #{tpu_custom_call.1} parent=0
    #allocation4 [shape = 'u8[8192]{0}', space=vmem, size = 0x2000, scoped, tag = 'input window, operand 0, single buffered']
    #allocation5 [shape = 's32[1]{0}', space=sflag, size = 0x4, scoped, tag = 'scoped memory for tpu_custom_call.1']
    #allocation6 [shape = 's32[1]{0}', space=sflag, size = 0x4, scoped, tag = 'scoped memory for tpu_custom_call.1']
    #allocation7 [shape = 'u8[131072]{0}', space=vmem, size = 0x20000, scoped, tag = 'input window, operand 1, single buffered']
    #allocation8 [shape = 's32[1]{0}', space=sflag, size = 0x4, scoped, tag = 'scoped memory for tpu_custom_call.1']
    #allocation9 [shape = 'u8[65536]{0}', space=vmem, size = 0x10000, scoped, tag = 'input window, operand 2, single buffered']
    #allocation10 [shape = 'u8[32768]{0}', space=vmem, size = 0x8000, scoped, tag = 'input window, operand 3, single buffered']
    #allocation11 [shape = 's32[1]{0}', space=sflag, size = 0x4, scoped, tag = 'scoped memory for tpu_custom_call.1']
    #allocation12 [shape = 'u8[131072]{0}', space=vmem, size = 0x20000, scoped, tag = 'input window, operand 4, single buffered']
    #allocation13 [shape = 'u8[5632]{0}', space=vmem, size = 0x1800, scoped, tag = 'input window, operand 5, single buffered']
    #allocation14 [shape = 's32[1]{0}', space=sflag, size = 0x4, scoped, tag = 'scoped memory for tpu_custom_call.1']
    #allocation15 [shape = 'u8[4096]{0}', space=vmem, size = 0x1000, scoped, tag = 'output window, operand 1, single buffered']
    #allocation16 [shape = 'u8[512]{0}', space=vmem, size = 0x400, scoped, tag = 'output window, operand 2, single buffered']
    #allocation17 [shape = 's32[1]{0}', space=sflag, size = 0x4, scoped, tag = 'scoped memory for tpu_custom_call.1']
    %16 = vsyncpa [#allocation5], 0
    %17 = vsyncpa [#allocation8], 0
    %18 = vsyncpa [#allocation11], 0
    %19 = vsyncpa [#allocation14], 0
    %20 = vsyncpa [#allocation6], 0
    %21 = vsyncpa [#allocation17], 0
    // Predicated region
    $region2: #{tpu_custom_call.1} parent=1 // pred_check
      _
    $region3: #{tpu_custom_call.1} parent=1 // pred_check_branch
      %23 = sbr.rel (0) target = $region5
    $region4: #{tpu_custom_call.1} parent=1 // pred_region
      %s25 = ssub.s32 256, 256
      %26 = vsyncadd [#allocation5], %s25
      %s27 = sshll.u32 [#allocation4], 4
      %s28 = int_to_ptr.vmem [resolvable:$true] %s27
      %33 = dma.hbm_to_vmem [thread:$0]  %s0, 256, %s28, [#allocation5], 128, 128, 8
    $region5: #{tpu_custom_call.1} parent=1 // pred_fallthru
      _
    // Predicated region
    $region6: #{tpu_custom_call.1} parent=1 // pred_check
      _
    $region7: #{tpu_custom_call.1} parent=1 // pred_check_branch
      %35 = sbr.rel (0) target = $region9
    $region8: #{tpu_custom_call.1} parent=1 // pred_region
      %s37 = ssub.s32 4096, 4096
      %38 = vsyncadd [#allocation8], %s37
      %s39 = sshll.u32 [#allocation7], 4
      %s40 = int_to_ptr.vmem [resolvable:$true] %s39
      %45 = dma.hbm_to_vmem [thread:$0]  %s1, 4096, %s40, [#allocation8], 256, 256, 16
    $region9: #{tpu_custom_call.1} parent=1 // pred_fallthru
      _
    // Predicated region
    $region10: #{tpu_custom_call.1} parent=1 // pred_check
      _
    $region11: #{tpu_custom_call.1} parent=1 // pred_check_branch
      %47 = sbr.rel (0) target = $region13
    $region12: #{tpu_custom_call.1} parent=1 // pred_region
      %s49 = ssub.s32 2048, 2048
      %50 = vsyncadd [#allocation8], %s49
      %s51 = sshll.u32 [#allocation9], 4
      %s52 = int_to_ptr.vmem [resolvable:$true] %s51
      %57 = dma.hbm_to_vmem [thread:$0]  %s2, 2048, %s52, [#allocation8], 64, 64, 4
    $region13: #{tpu_custom_call.1} parent=1 // pred_fallthru
      _
    // Predicated region
    $region14: #{tpu_custom_call.1} parent=1 // pred_check
      _
    $region15: #{tpu_custom_call.1} parent=1 // pred_check_branch
      %59 = sbr.rel (0) target = $region17
    $region16: #{tpu_custom_call.1} parent=1 // pred_region
      %s61 = ssub.s32 1024, 1024
      %62 = vsyncadd [#allocation11], %s61
      %s63 = sshll.u32 [#allocation10], 4
      %s64 = int_to_ptr.vmem [resolvable:$true] %s63
      %69 = dma.hbm_to_vmem [thread:$0]  %s3, 1024, %s64, [#allocation11], 256, 256, 16
    $region17: #{tpu_custom_call.1} parent=1 // pred_fallthru
      _
    // Predicated region
    $region18: #{tpu_custom_call.1} parent=1 // pred_check
      _
    $region19: #{tpu_custom_call.1} parent=1 // pred_check_branch
      %71 = sbr.rel (0) target = $region21
    $region20: #{tpu_custom_call.1} parent=1 // pred_region
      %s73 = ssub.s32 4096, 4096
      %74 = vsyncadd [#allocation11], %s73
      %s75 = sshll.u32 [#allocation12], 4
      %s76 = int_to_ptr.vmem [resolvable:$true] %s75
      %81 = dma.hbm_to_vmem [thread:$0]  %s4, 4096, %s76, [#allocation11], 128, 128, 8
    $region21: #{tpu_custom_call.1} parent=1 // pred_fallthru
      _
    // Predicated region
    $region22: #{tpu_custom_call.1} parent=1 // pred_check
      _
    $region23: #{tpu_custom_call.1} parent=1 // pred_check_branch
      %83 = sbr.rel (0) target = $region25
    $region24: #{tpu_custom_call.1} parent=1 // pred_region
      %s85 = ssub.s32 176, 176
      %86 = vsyncadd [#allocation14], %s85
      %s88 = sshll.u32 [#allocation13], 4
      %s89 = int_to_ptr.vmem [resolvable:$true] %s88
      %91 = dma.hbm_to_vmem [thread:$0]  %s5, 176, %s89, [#allocation14]
    $region25: #{tpu_custom_call.1} parent=1 // pred_fallthru
      _
    // Predicated region
    $region26: #{tpu_custom_call.1} parent=1 // pred_check
      _
    $region27: #{tpu_custom_call.1} parent=1 // pred_check_branch
      %93 = sbr.rel (0) target = $region29
    $region28: #{tpu_custom_call.1} parent=1 // pred_region
      _
    $region29: #{tpu_custom_call.1} parent=1 // pred_fallthru
      _
    // Predicated region
    $region30: #{tpu_custom_call.1} parent=1 // pred_check
      _
    $region31: #{tpu_custom_call.1} parent=1 // pred_check_branch
      %95 = sbr.rel (0) target = $region33
    $region32: #{tpu_custom_call.1} parent=1 // pred_region
      _
    $region33: #{tpu_custom_call.1} parent=1 // pred_fallthru
      _
    // Predicated region
    $region34: #{tpu_custom_call.1} parent=1 // pred_check
      _
    $region35: #{tpu_custom_call.1} parent=1 // pred_check_branch
      %97 = sbr.rel (0) target = $region37
    $region36: #{tpu_custom_call.1} parent=1 // pred_region
      %98 = dma.done [#allocation5], 256
    $region37: #{tpu_custom_call.1} parent=1 // pred_fallthru
      _
    // Predicated region
    $region38: #{tpu_custom_call.1} parent=1 // pred_check
      _
    $region39: #{tpu_custom_call.1} parent=1 // pred_check_branch
      %100 = sbr.rel (0) target = $region41
    $region40: #{tpu_custom_call.1} parent=1 // pred_region
      %101 = dma.done [#allocation8], 4096
    $region41: #{tpu_custom_call.1} parent=1 // pred_fallthru
      _
    // Predicated region
    $region42: #{tpu_custom_call.1} parent=1 // pred_check
      _
    $region43: #{tpu_custom_call.1} parent=1 // pred_check_branch
      %103 = sbr.rel (0) target = $region45
    $region44: #{tpu_custom_call.1} parent=1 // pred_region
      %104 = dma.done [#allocation8], 2048
    $region45: #{tpu_custom_call.1} parent=1 // pred_fallthru
      _
    // Predicated region
    $region46: #{tpu_custom_call.1} parent=1 // pred_check
      _
    $region47: #{tpu_custom_call.1} parent=1 // pred_check_branch
      %106 = sbr.rel (0) target = $region49
    $region48: #{tpu_custom_call.1} parent=1 // pred_region
      %107 = dma.done [#allocation11], 1024
    $region49: #{tpu_custom_call.1} parent=1 // pred_fallthru
      _
    // Predicated region
    $region50: #{tpu_custom_call.1} parent=1 // pred_check
      _
    $region51: #{tpu_custom_call.1} parent=1 // pred_check_branch
      %109 = sbr.rel (0) target = $region53
    $region52: #{tpu_custom_call.1} parent=1 // pred_region
      %110 = dma.done [#allocation11], 4096
    $region53: #{tpu_custom_call.1} parent=1 // pred_fallthru
      _
    // Predicated region
    $region54: #{tpu_custom_call.1} parent=1 // pred_check
      _
    $region55: #{tpu_custom_call.1} parent=1 // pred_check_branch
      %112 = sbr.rel (0) target = $region57
    $region56: #{tpu_custom_call.1} parent=1 // pred_region
      %113 = dma.done [#allocation14], 176
    $region57: #{tpu_custom_call.1} parent=1 // pred_fallthru
      _
    %v115 = vld [vmem:[#allocation13] sm:$0xf]
    %v116 = vld [vmem:[#allocation13 + $0x4] sm:$0x1]
    %v117 = vld [vmem:[#allocation13 + $0x5] sm:$0xf]
    %v118 = vld [vmem:[#allocation13 + $0x9] sm:$0x3]
    %v119 = vld [vmem:[%s7] sm:$0xff]
    %v120 = vld [vmem:[#allocation4] sm:$0xff]
    %v121 = vld [vmem:[#allocation4 + $0x8] sm:$0xff]
    %v122 = vpack.c.bf16 %v121, %v120
    %v123 = vld [vmem:[#allocation7] sm:$0xff]
    %v124 = vld [vmem:[#allocation7 + $0x8] sm:$0xff]
    %v125 = vld [vmem:[#allocation7 + $0x10] sm:$0xff]
    %v126 = vld [vmem:[#allocation7 + $0x18] sm:$0xff]
    %v127 = vld [vmem:[#allocation7 + $0x20] sm:$0xff]
    %v128 = vld [vmem:[#allocation7 + $0x28] sm:$0xff]
    %v129 = vld [vmem:[#allocation7 + $0x30] sm:$0xff]
    %v130 = vld [vmem:[#allocation7 + $0x38] sm:$0xff]
    %v131 = vld [vmem:[#allocation7 + $0x40] sm:$0xff]
    %v132 = vld [vmem:[#allocation7 + $0x48] sm:$0xff]
    %v133 = vld [vmem:[#allocation7 + $0x50] sm:$0xff]
    %v134 = vld [vmem:[#allocation7 + $0x58] sm:$0xff]
    %v135 = vld [vmem:[#allocation7 + $0x60] sm:$0xff]
    %v136 = vld [vmem:[#allocation7 + $0x68] sm:$0xff]
    %v137 = vld [vmem:[#allocation7 + $0x70] sm:$0xff]
    %v138 = vld [vmem:[#allocation7 + $0x78] sm:$0xff]
    %v139 = vld [vmem:[#allocation7 + $0x80] sm:$0xff]
    %v140 = vld [vmem:[#allocation7 + $0x88] sm:$0xff]
    %v141 = vld [vmem:[#allocation7 + $0x90] sm:$0xff]
    %v142 = vld [vmem:[#allocation7 + $0x98] sm:$0xff]
    %v143 = vld [vmem:[#allocation7 + $0xa0] sm:$0xff]
    %v144 = vld [vmem:[#allocation7 + $0xa8] sm:$0xff]
    %v145 = vld [vmem:[#allocation7 + $0xb0] sm:$0xff]
    %v146 = vld [vmem:[#allocation7 + $0xb8] sm:$0xff]
    %v147 = vld [vmem:[#allocation7 + $0xc0] sm:$0xff]
    %v148 = vld [vmem:[#allocation7 + $0xc8] sm:$0xff]
    %v149 = vld [vmem:[#allocation7 + $0xd0] sm:$0xff]
    %v150 = vld [vmem:[#allocation7 + $0xd8] sm:$0xff]
    %v151 = vld [vmem:[#allocation7 + $0xe0] sm:$0xff]
    %v152 = vld [vmem:[#allocation7 + $0xe8] sm:$0xff]
    %v153 = vld [vmem:[#allocation7 + $0xf0] sm:$0xff]
    %v154 = vld [vmem:[#allocation7 + $0xf8] sm:$0xff]
    %v156 = vlaneseq
    %v157 = vshrl.u32 %v156, 7
    %v158 = vsub.s32 0, %v157
    %v159 = vrot.slane %v115, %v158
    %v160 = vlaneseq
    %v161 = vshrl.u32 %v160, 7
    %v162 = vsub.s32 1, %v161
    %v163 = vrot.slane %v115, %v162
    %v164 = vlaneseq
    %v165 = vshrl.u32 %v164, 7
    %v166 = vsub.s32 2, %v165
    %v167 = vrot.slane %v115, %v166
    %v168 = vlaneseq
    %v169 = vshrl.u32 %v168, 7
    %v170 = vsub.s32 3, %v169
    %v171 = vrot.slane %v115, %v170
    %v208 = vunpack.c.l.b16 %v123
    %v209 = vunpack.c.h.b16 %v123
    %v210 = vunpack.c.l.b16 %v124
    %v211 = vunpack.c.h.b16 %v124
    %v212 = vunpack.c.l.b16 %v125
    %v213 = vunpack.c.h.b16 %v125
    %v214 = vunpack.c.l.b16 %v126
    %v215 = vunpack.c.h.b16 %v126
    %v216 = vunpack.c.l.b16 %v127
    %v217 = vunpack.c.h.b16 %v127
    %v218 = vunpack.c.l.b16 %v128
    %v219 = vunpack.c.h.b16 %v128
    %v220 = vunpack.c.l.b16 %v129
    %v221 = vunpack.c.h.b16 %v129
    %v222 = vunpack.c.l.b16 %v130
    %v223 = vunpack.c.h.b16 %v130
    %v224 = vunpack.c.l.b16 %v131
    %v225 = vunpack.c.h.b16 %v131
    %v226 = vunpack.c.l.b16 %v132
    %v227 = vunpack.c.h.b16 %v132
    %v228 = vunpack.c.l.b16 %v133
    %v229 = vunpack.c.h.b16 %v133
    %v230 = vunpack.c.l.b16 %v134
    %v231 = vunpack.c.h.b16 %v134
    %v232 = vunpack.c.l.b16 %v135
    %v233 = vunpack.c.h.b16 %v135
    %v234 = vunpack.c.l.b16 %v136
    %v235 = vunpack.c.h.b16 %v136
    %v236 = vunpack.c.l.b16 %v137
    %v237 = vunpack.c.h.b16 %v137
    %v238 = vunpack.c.l.b16 %v138
    %v239 = vunpack.c.h.b16 %v138
    %v240 = vunpack.c.l.b16 %v139
    %v241 = vunpack.c.h.b16 %v139
    %v242 = vunpack.c.l.b16 %v140
    %v243 = vunpack.c.h.b16 %v140
    %v244 = vunpack.c.l.b16 %v141
    %v245 = vunpack.c.h.b16 %v141
    %v246 = vunpack.c.l.b16 %v142
    %v247 = vunpack.c.h.b16 %v142
    %v248 = vunpack.c.l.b16 %v143
    %v249 = vunpack.c.h.b16 %v143
    %v250 = vunpack.c.l.b16 %v144
    %v251 = vunpack.c.h.b16 %v144
    %v252 = vunpack.c.l.b16 %v145
    %v253 = vunpack.c.h.b16 %v145
    %v254 = vunpack.c.l.b16 %v146
    %v255 = vunpack.c.h.b16 %v146
    %v256 = vunpack.c.l.b16 %v147
    %v257 = vunpack.c.h.b16 %v147
    %v258 = vunpack.c.l.b16 %v148
    %v259 = vunpack.c.h.b16 %v148
    %v260 = vunpack.c.l.b16 %v149
    %v261 = vunpack.c.h.b16 %v149
    %v262 = vunpack.c.l.b16 %v150
    %v263 = vunpack.c.h.b16 %v150
    %v264 = vunpack.c.l.b16 %v151
    %v265 = vunpack.c.h.b16 %v151
    %v266 = vunpack.c.l.b16 %v152
    %v267 = vunpack.c.h.b16 %v152
    %v268 = vunpack.c.l.b16 %v153
    %v269 = vunpack.c.h.b16 %v153
    %v270 = vunpack.c.l.b16 %v154
    %v271 = vunpack.c.h.b16 %v154
    %v272 = vpack.c.b16 %v212, %v208
    %v273 = vpack.c.b16 %v213, %v209
    %v274 = vpack.c.b16 %v214, %v210
    %v275 = vpack.c.b16 %v215, %v211
    %v276 = vpack.c.b16 %v220, %v216
    %v277 = vpack.c.b16 %v221, %v217
    %v278 = vpack.c.b16 %v222, %v218
    %v279 = vpack.c.b16 %v223, %v219
    %v280 = vpack.c.b16 %v228, %v224
    %v281 = vpack.c.b16 %v229, %v225
    %v282 = vpack.c.b16 %v230, %v226
    %v283 = vpack.c.b16 %v231, %v227
    %v284 = vpack.c.b16 %v236, %v232
    %v285 = vpack.c.b16 %v237, %v233
    %v286 = vpack.c.b16 %v238, %v234
    %v287 = vpack.c.b16 %v239, %v235
    %v288 = vpack.c.b16 %v244, %v240
    %v289 = vpack.c.b16 %v245, %v241
    %v290 = vpack.c.b16 %v246, %v242
    %v291 = vpack.c.b16 %v247, %v243
    %v292 = vpack.c.b16 %v252, %v248
    %v293 = vpack.c.b16 %v253, %v249
    %v294 = vpack.c.b16 %v254, %v250
    %v295 = vpack.c.b16 %v255, %v251
    %v296 = vpack.c.b16 %v260, %v256
    %v297 = vpack.c.b16 %v261, %v257
    %v298 = vpack.c.b16 %v262, %v258
    %v299 = vpack.c.b16 %v263, %v259
    %v300 = vpack.c.b16 %v268, %v264
    %v301 = vpack.c.b16 %v269, %v265
    %v302 = vpack.c.b16 %v270, %v266
    %v303 = vpack.c.b16 %v271, %v267
    %336 = vmatprep.subr.bf16.mxu0 %v301
    %337 = vmatpush1.bf16.msra.mxu0 %v300
    %338 = vmatprep.subr.bf16.mxu0 %v297
    %339 = vmatpush1.bf16.msra.mxu0 %v296
    %340 = vmatprep.subr.bf16.mxu0 %v293
    %341 = vmatpush1.bf16.msra.mxu0 %v292
    %342 = vmatprep.subr.bf16.mxu0 %v289
    %343 = vmatpush1.bf16.msra.mxu0 %v288
    %344 = vmatprep.subr.bf16.mxu0 %v285
    %345 = vmatpush1.bf16.msra.mxu0 %v284
    %346 = vmatprep.subr.bf16.mxu0 %v281
    %347 = vmatpush1.bf16.msra.mxu0 %v280
    %348 = vmatprep.subr.bf16.mxu0 %v277
    %349 = vmatpush1.bf16.msra.mxu0 %v276
    %350 = vmatprep.subr.bf16.mxu0 %v273
    %351 = vmatpush1.bf16.msra.mxu0 %v272
    %352 = vmatprep.subr.bf16.mxu0 0
    %353 = vmatpush2.bf16.msra.mxu0 0
    %354 = vmatprep.subr.bf16.mxu0 0
    %355 = vmatpush2.bf16.msra.mxu0 0
    %356 = vmatprep.subr.bf16.mxu0 0
    %357 = vmatpush2.bf16.msra.mxu0 0
    %358 = vmatprep.subr.bf16.mxu0 0
    %359 = vmatpush2.bf16.msra.mxu0 0
    %360 = vmatprep.subr.bf16.mxu0 0
    %361 = vmatpush2.bf16.msra.mxu0 0
    %362 = vmatprep.subr.bf16.mxu0 0
    %363 = vmatpush2.bf16.msra.mxu0 0
    %364 = vmatprep.subr.bf16.mxu0 0
    %365 = vmatpush2.bf16.msra.mxu0 0
    %366 = vmatprep.subr.bf16.mxu0 0
    %367 = vmatpush2.bf16.msra.mxu0 0
    %368 = vmatprep.mubr.bf16.mxu0 0
    %369 = vmatmul.mubr.bf16.gmra.mxu0 %v122
    %v370 = vpop.f32.mrf.mxu0
    %v371 = vadd.f32 %v159, %v370
    %v372 = vpop.f32.mrf.mxu0
    %v373 = vadd.f32 %v163, %v372
    %v374 = vpop.f32.mrf.mxu0
    %v375 = vpop.f32.mrf.mxu0
    %376 = vdwg.mxu0
    %377 = vmatprep.subr.bf16.mxu0 %v303
    %378 = vmatpush1.bf16.msra.mxu0 %v302
    %379 = vmatprep.subr.bf16.mxu0 %v299
    %380 = vmatpush1.bf16.msra.mxu0 %v298
    %381 = vmatprep.subr.bf16.mxu0 %v295
    %382 = vmatpush1.bf16.msra.mxu0 %v294
    %383 = vmatprep.subr.bf16.mxu0 %v291
    %384 = vmatpush1.bf16.msra.mxu0 %v290
    %385 = vmatprep.subr.bf16.mxu0 %v287
    %386 = vmatpush1.bf16.msra.mxu0 %v286
    %387 = vmatprep.subr.bf16.mxu0 %v283
    %388 = vmatpush1.bf16.msra.mxu0 %v282
    %389 = vmatprep.subr.bf16.mxu0 %v279
    %390 = vmatpush1.bf16.msra.mxu0 %v278
    %391 = vmatprep.subr.bf16.mxu0 %v275
    %392 = vmatpush1.bf16.msra.mxu0 %v274
    %393 = vmatprep.subr.bf16.mxu0 0
    %394 = vmatpush2.bf16.msra.mxu0 0
    %395 = vmatprep.subr.bf16.mxu0 0
    %396 = vmatpush2.bf16.msra.mxu0 0
    %397 = vmatprep.subr.bf16.mxu0 0
    %398 = vmatpush2.bf16.msra.mxu0 0
    %399 = vmatprep.subr.bf16.mxu0 0
    %400 = vmatpush2.bf16.msra.mxu0 0
    %401 = vmatprep.subr.bf16.mxu0 0
    %402 = vmatpush2.bf16.msra.mxu0 0
    %403 = vmatprep.subr.bf16.mxu0 0
    %404 = vmatpush2.bf16.msra.mxu0 0
    %405 = vmatprep.subr.bf16.mxu0 0
    %406 = vmatpush2.bf16.msra.mxu0 0
    %407 = vmatprep.subr.bf16.mxu0 0
    %408 = vmatpush2.bf16.msra.mxu0 0
    %409 = vmatprep.mubr.bf16.mxu0 0
    %410 = vmatmul.mubr.bf16.gmra.mxu0 %v122
    %v411 = vpop.f32.mrf.mxu0
    %v412 = vpop.f32.mrf.mxu0
    %v413 = vpop.f32.mrf.mxu0
    %v414 = vadd.f32 %v167, %v413
    %v415 = vpop.f32.mrf.mxu0
    %v416 = vadd.f32 %v171, %v415
    %417 = vdwg.mxu0
    %v418 = vmax.f32 %v371, 0.0
    %v419 = vmax.f32 %v373, 0.0
    %v420 = vmax.f32 %v414, 0.0
    %v421 = vmax.f32 %v416, 0.0
    %v422 = vpack.c.bf16 %v420, %v418
    %v423 = vpack.c.bf16 %v421, %v419
    %v424 = vld [vmem:[#allocation9] sm:$0xf]
    %v425 = vld [vmem:[#allocation9 + $0x4] sm:$0xf]
    %v426 = vld [vmem:[#allocation9 + $0x8] sm:$0xf]
    %v427 = vld [vmem:[#allocation9 + $0xc] sm:$0xf]
    %v428 = vld [vmem:[#allocation9 + $0x10] sm:$0xf]
    %v429 = vld [vmem:[#allocation9 + $0x14] sm:$0xf]
    %v430 = vld [vmem:[#allocation9 + $0x18] sm:$0xf]
    %v431 = vld [vmem:[#allocation9 + $0x1c] sm:$0xf]
    %v432 = vld [vmem:[#allocation9 + $0x20] sm:$0xf]
    %v433 = vld [vmem:[#allocation9 + $0x24] sm:$0xf]
    %v434 = vld [vmem:[#allocation9 + $0x28] sm:$0xf]
    %v435 = vld [vmem:[#allocation9 + $0x2c] sm:$0xf]
    %v436 = vld [vmem:[#allocation9 + $0x30] sm:$0xf]
    %v437 = vld [vmem:[#allocation9 + $0x34] sm:$0xf]
    %v438 = vld [vmem:[#allocation9 + $0x38] sm:$0xf]
    %v439 = vld [vmem:[#allocation9 + $0x3c] sm:$0xf]
    %v440 = vld [vmem:[#allocation9 + $0x40] sm:$0xf]
    %v441 = vld [vmem:[#allocation9 + $0x44] sm:$0xf]
    %v442 = vld [vmem:[#allocation9 + $0x48] sm:$0xf]
    %v443 = vld [vmem:[#allocation9 + $0x4c] sm:$0xf]
    %v444 = vld [vmem:[#allocation9 + $0x50] sm:$0xf]
    %v445 = vld [vmem:[#allocation9 + $0x54] sm:$0xf]
    %v446 = vld [vmem:[#allocation9 + $0x58] sm:$0xf]
    %v447 = vld [vmem:[#allocation9 + $0x5c] sm:$0xf]
    %v448 = vld [vmem:[#allocation9 + $0x60] sm:$0xf]
    %v449 = vld [vmem:[#allocation9 + $0x64] sm:$0xf]
    %v450 = vld [vmem:[#allocation9 + $0x68] sm:$0xf]
    %v451 = vld [vmem:[#allocation9 + $0x6c] sm:$0xf]
    %v452 = vld [vmem:[#allocation9 + $0x70] sm:$0xf]
    %v453 = vld [vmem:[#allocation9 + $0x74] sm:$0xf]
    %v454 = vld [vmem:[#allocation9 + $0x78] sm:$0xf]
    %v455 = vld [vmem:[#allocation9 + $0x7c] sm:$0xf]
    %v457 = vlaneseq
    %v458 = vshrl.u32 %v457, 7
    %v459 = vsub.s32 0, %v458
    %v460 = vrot.slane %v116, %v459
    %v494 = vunpack.c.l.b16 %v424
    %v495 = vunpack.c.l.b16 %v425
    %v496 = vunpack.c.l.b16 %v426
    %v497 = vunpack.c.l.b16 %v427
    %v498 = vunpack.c.l.b16 %v428
    %v499 = vunpack.c.l.b16 %v429
    %v500 = vunpack.c.l.b16 %v430
    %v501 = vunpack.c.l.b16 %v431
    %v502 = vunpack.c.l.b16 %v432
    %v503 = vunpack.c.l.b16 %v433
    %v504 = vunpack.c.l.b16 %v434
    %v505 = vunpack.c.l.b16 %v435
    %v506 = vunpack.c.l.b16 %v436
    %v507 = vunpack.c.l.b16 %v437
    %v508 = vunpack.c.l.b16 %v438
    %v509 = vunpack.c.l.b16 %v439
    %v510 = vunpack.c.l.b16 %v440
    %v511 = vunpack.c.l.b16 %v441
    %v512 = vunpack.c.l.b16 %v442
    %v513 = vunpack.c.l.b16 %v443
    %v514 = vunpack.c.l.b16 %v444
    %v515 = vunpack.c.l.b16 %v445
    %v516 = vunpack.c.l.b16 %v446
    %v517 = vunpack.c.l.b16 %v447
    %v518 = vunpack.c.l.b16 %v448
    %v519 = vunpack.c.l.b16 %v449
    %v520 = vunpack.c.l.b16 %v450
    %v521 = vunpack.c.l.b16 %v451
    %v522 = vunpack.c.l.b16 %v452
    %v523 = vunpack.c.l.b16 %v453
    %v524 = vunpack.c.l.b16 %v454
    %v525 = vunpack.c.l.b16 %v455
    %v526 = vpack.c.b16 %v495, %v494
    %v527 = vpack.c.b16 %v497, %v496
    %v528 = vpack.c.b16 %v499, %v498
    %v529 = vpack.c.b16 %v501, %v500
    %v530 = vpack.c.b16 %v503, %v502
    %v531 = vpack.c.b16 %v505, %v504
    %v532 = vpack.c.b16 %v507, %v506
    %v533 = vpack.c.b16 %v509, %v508
    %v534 = vpack.c.b16 %v511, %v510
    %v535 = vpack.c.b16 %v513, %v512
    %v536 = vpack.c.b16 %v515, %v514
    %v537 = vpack.c.b16 %v517, %v516
    %v538 = vpack.c.b16 %v519, %v518
    %v539 = vpack.c.b16 %v521, %v520
    %v540 = vpack.c.b16 %v523, %v522
    %v541 = vpack.c.b16 %v525, %v524
    %558 = vmatprep.subr.bf16.mxu0 0
    %559 = vmatpush1.bf16.msra.mxu0 %v533
    %560 = vmatprep.subr.bf16.mxu0 0
    %561 = vmatpush1.bf16.msra.mxu0 %v532
    %562 = vmatprep.subr.bf16.mxu0 0
    %563 = vmatpush1.bf16.msra.mxu0 %v531
    %564 = vmatprep.subr.bf16.mxu0 0
    %565 = vmatpush1.bf16.msra.mxu0 %v530
    %566 = vmatprep.subr.bf16.mxu0 0
    %567 = vmatpush1.bf16.msra.mxu0 %v529
    %568 = vmatprep.subr.bf16.mxu0 0
    %569 = vmatpush1.bf16.msra.mxu0 %v528
    %570 = vmatprep.subr.bf16.mxu0 0
    %571 = vmatpush1.bf16.msra.mxu0 %v527
    %572 = vmatprep.subr.bf16.mxu0 0
    %573 = vmatpush1.bf16.msra.mxu0 %v526
    %574 = vmatprep.subr.bf16.mxu0 0
    %575 = vmatpush2.bf16.msra.mxu0 %v541
    %576 = vmatprep.subr.bf16.mxu0 0
    %577 = vmatpush2.bf16.msra.mxu0 %v540
    %578 = vmatprep.subr.bf16.mxu0 0
    %579 = vmatpush2.bf16.msra.mxu0 %v539
    %580 = vmatprep.subr.bf16.mxu0 0
    %581 = vmatpush2.bf16.msra.mxu0 %v538
    %582 = vmatprep.subr.bf16.mxu0 0
    %583 = vmatpush2.bf16.msra.mxu0 %v537
    %584 = vmatprep.subr.bf16.mxu0 0
    %585 = vmatpush2.bf16.msra.mxu0 %v536
    %586 = vmatprep.subr.bf16.mxu0 0
    %587 = vmatpush2.bf16.msra.mxu0 %v535
    %588 = vmatprep.subr.bf16.mxu0 0
    %589 = vmatpush2.bf16.msra.mxu0 %v534
    %590 = vmatprep.mubr.bf16.mxu0 %v423
    %591 = vmatmul.mubr.bf16.gmra.mxu0 %v422
    %v592 = vpop.f32.mrf.mxu0
    %v593 = vadd.f32 %v460, %v592
    %v594 = vpop.f32.mrf.mxu0
    %v595 = vpop.f32.mrf.mxu0
    %v596 = vadd.f32 %v460, %v595
    %v597 = vpop.f32.mrf.mxu0
    %598 = vdwg.mxu0
    %v599 = vmul.f32 %v593, 0.5
    %v600 = vmul.f32 %v599, 1.442695
    %v601 = vpow.pop %v600
    %603 = vrot.lane.b32.xlu0 %v601, 96
    %v604 = vpop.permute.xlu0 %603
    %v606 = vmul.f32 %v119, %v604
    %v607 = vadd.f32 %v593, %v606
    %v608 = vmul.f32 %v596, 0.5
    %v609 = vmul.f32 %v608, 1.442695
    %v610 = vpow.pop %v609
    %612 = vrot.lane.b32.xlu0 %v610, 64
    %v613 = vpop.permute.xlu0 %612
    %v615 = vmul.f32 %v119, %v613
    %617 = vrot.lane.b32.xlu0 %v615, 32
    %v618 = vpop.permute.xlu0 %617
    %v620 = vadd.f32 %v596, %v618
    %622 = vrot.lane.b32.xlu0 %v620, 64
    %v623 = vpop.permute.xlu0 %622
    %v625 = vpack.c.bf16 %v623, %v607
    %v626 = vld [vmem:[#allocation10] sm:$0xff]
    %v627 = vld [vmem:[#allocation10 + $0x8] sm:$0xff]
    %v628 = vld [vmem:[#allocation10 + $0x10] sm:$0xff]
    %v629 = vld [vmem:[#allocation10 + $0x18] sm:$0xff]
    %v630 = vld [vmem:[#allocation10 + $0x20] sm:$0xff]
    %v631 = vld [vmem:[#allocation10 + $0x28] sm:$0xff]
    %v632 = vld [vmem:[#allocation10 + $0x30] sm:$0xff]
    %v633 = vld [vmem:[#allocation10 + $0x38] sm:$0xff]
    %v635 = vlaneseq
    %v636 = vshrl.u32 %v635, 7
    %v637 = vsub.s32 0, %v636
    %v638 = vrot.slane %v117, %v637
    %v639 = vlaneseq
    %v640 = vshrl.u32 %v639, 7
    %v641 = vsub.s32 1, %v640
    %v642 = vrot.slane %v117, %v641
    %v643 = vlaneseq
    %v644 = vshrl.u32 %v643, 7
    %v645 = vsub.s32 2, %v644
    %v646 = vrot.slane %v117, %v645
    %v647 = vlaneseq
    %v648 = vshrl.u32 %v647, 7
    %v649 = vsub.s32 3, %v648
    %v650 = vrot.slane %v117, %v649
    %v663 = vunpack.c.l.b16 %v626
    %v664 = vunpack.c.h.b16 %v626
    %v665 = vunpack.c.l.b16 %v627
    %v666 = vunpack.c.h.b16 %v627
    %v667 = vunpack.c.l.b16 %v628
    %v668 = vunpack.c.h.b16 %v628
    %v669 = vunpack.c.l.b16 %v629
    %v670 = vunpack.c.h.b16 %v629
    %v671 = vunpack.c.l.b16 %v630
    %v672 = vunpack.c.h.b16 %v630
    %v673 = vunpack.c.l.b16 %v631
    %v674 = vunpack.c.h.b16 %v631
    %v675 = vunpack.c.l.b16 %v632
    %v676 = vunpack.c.h.b16 %v632
    %v677 = vunpack.c.l.b16 %v633
    %v678 = vunpack.c.h.b16 %v633
    %v679 = vpack.c.b16 %v667, %v663
    %v680 = vpack.c.b16 %v668, %v664
    %v681 = vpack.c.b16 %v669, %v665
    %v682 = vpack.c.b16 %v670, %v666
    %v683 = vpack.c.b16 %v675, %v671
    %v684 = vpack.c.b16 %v676, %v672
    %v685 = vpack.c.b16 %v677, %v673
    %v686 = vpack.c.b16 %v678, %v674
    %vm695 = vcmask 261120
    %v697 = vsel %vm695, %v625, 0
    %699 = vmatprep.subr.bf16.mxu0 0
    %700 = vmatpush1.bf16.msra.mxu0 0
    %701 = vmatprep.subr.bf16.mxu0 0
    %702 = vmatpush1.bf16.msra.mxu0 0
    %703 = vmatprep.subr.bf16.mxu0 0
    %704 = vmatpush1.bf16.msra.mxu0 0
    %705 = vmatprep.subr.bf16.mxu0 0
    %706 = vmatpush1.bf16.msra.mxu0 0
    %707 = vmatprep.subr.bf16.mxu0 0
    %708 = vmatpush1.bf16.msra.mxu0 0
    %709 = vmatprep.subr.bf16.mxu0 0
    %710 = vmatpush1.bf16.msra.mxu0 0
    %711 = vmatprep.subr.bf16.mxu0 %v684
    %712 = vmatpush1.bf16.msra.mxu0 %v683
    %713 = vmatprep.subr.bf16.mxu0 %v680
    %714 = vmatpush1.bf16.msra.mxu0 %v679
    %715 = vmatprep.subr.bf16.mxu0 0
    %716 = vmatpush2.bf16.msra.mxu0 0
    %717 = vmatprep.subr.bf16.mxu0 0
    %718 = vmatpush2.bf16.msra.mxu0 0
    %719 = vmatprep.subr.bf16.mxu0 0
    %720 = vmatpush2.bf16.msra.mxu0 0
    %721 = vmatprep.subr.bf16.mxu0 0
    %722 = vmatpush2.bf16.msra.mxu0 0
    %723 = vmatprep.subr.bf16.mxu0 0
    %724 = vmatpush2.bf16.msra.mxu0 0
    %725 = vmatprep.subr.bf16.mxu0 0
    %726 = vmatpush2.bf16.msra.mxu0 0
    %727 = vmatprep.subr.bf16.mxu0 0
    %728 = vmatpush2.bf16.msra.mxu0 0
    %729 = vmatprep.subr.bf16.mxu0 0
    %730 = vmatpush2.bf16.msra.mxu0 0
    %731 = vmatprep.mubr.bf16.mxu0 0
    %732 = vmatmul.mubr.bf16.gmra.mxu0 %v697
    %v733 = vpop.f32.mrf.mxu0
    %v734 = vadd.f32 %v638, %v733
    %v735 = vpop.f32.mrf.mxu0
    %v736 = vadd.f32 %v642, %v735
    %v737 = vpop.f32.mrf.mxu0
    %v738 = vadd.f32 %v638, %v737
    %v739 = vpop.f32.mrf.mxu0
    %v740 = vadd.f32 %v642, %v739
    %741 = vdwg.mxu0
    %742 = vmatprep.subr.bf16.mxu0 0
    %743 = vmatpush1.bf16.msra.mxu0 0
    %744 = vmatprep.subr.bf16.mxu0 0
    %745 = vmatpush1.bf16.msra.mxu0 0
    %746 = vmatprep.subr.bf16.mxu0 0
    %747 = vmatpush1.bf16.msra.mxu0 0
    %748 = vmatprep.subr.bf16.mxu0 0
    %749 = vmatpush1.bf16.msra.mxu0 0
    %750 = vmatprep.subr.bf16.mxu0 0
    %751 = vmatpush1.bf16.msra.mxu0 0
    %752 = vmatprep.subr.bf16.mxu0 0
    %753 = vmatpush1.bf16.msra.mxu0 0
    %754 = vmatprep.subr.bf16.mxu0 %v686
    %755 = vmatpush1.bf16.msra.mxu0 %v685
    %756 = vmatprep.subr.bf16.mxu0 %v682
    %757 = vmatpush1.bf16.msra.mxu0 %v681
    %758 = vmatprep.subr.bf16.mxu0 0
    %759 = vmatpush2.bf16.msra.mxu0 0
    %760 = vmatprep.subr.bf16.mxu0 0
    %761 = vmatpush2.bf16.msra.mxu0 0
    %762 = vmatprep.subr.bf16.mxu0 0
    %763 = vmatpush2.bf16.msra.mxu0 0
    %764 = vmatprep.subr.bf16.mxu0 0
    %765 = vmatpush2.bf16.msra.mxu0 0
    %766 = vmatprep.subr.bf16.mxu0 0
    %767 = vmatpush2.bf16.msra.mxu0 0
    %768 = vmatprep.subr.bf16.mxu0 0
    %769 = vmatpush2.bf16.msra.mxu0 0
    %770 = vmatprep.subr.bf16.mxu0 0
    %771 = vmatpush2.bf16.msra.mxu0 0
    %772 = vmatprep.subr.bf16.mxu0 0
    %773 = vmatpush2.bf16.msra.mxu0 0
    %774 = vmatprep.mubr.bf16.mxu0 0
    %775 = vmatmul.mubr.bf16.gmra.mxu0 %v697
    %v776 = vpop.f32.mrf.mxu0
    %v777 = vadd.f32 %v646, %v776
    %v778 = vpop.f32.mrf.mxu0
    %v779 = vadd.f32 %v650, %v778
    %v780 = vpop.f32.mrf.mxu0
    %v781 = vadd.f32 %v646, %v780
    %v782 = vpop.f32.mrf.mxu0
    %v783 = vadd.f32 %v650, %v782
    %784 = vdwg.mxu0
    %v785 = vmax.f32 %v734, 0.0
    %v786 = vmax.f32 %v736, 0.0
    %v787 = vmax.f32 %v777, 0.0
    %v788 = vmax.f32 %v779, 0.0
    %v789 = vmax.f32 %v738, 0.0
    %v790 = vmax.f32 %v740, 0.0
    %v791 = vmax.f32 %v781, 0.0
    %v792 = vmax.f32 %v783, 0.0
    %v793 = vpack.c.bf16 %v789, %v785
    %v794 = vpack.c.bf16 %v790, %v786
    %v795 = vpack.c.bf16 %v791, %v787
    %v796 = vpack.c.bf16 %v792, %v788
    %v797 = vld [vmem:[#allocation12] sm:$0xff]
    %v798 = vld [vmem:[#allocation12 + $0x8] sm:$0xff]
    %v799 = vld [vmem:[#allocation12 + $0x10] sm:$0xff]
    %v800 = vld [vmem:[#allocation12 + $0x18] sm:$0xff]
    %v801 = vld [vmem:[#allocation12 + $0x20] sm:$0xff]
    %v802 = vld [vmem:[#allocation12 + $0x28] sm:$0xff]
    %v803 = vld [vmem:[#allocation12 + $0x30] sm:$0xff]
    %v804 = vld [vmem:[#allocation12 + $0x38] sm:$0xff]
    %v805 = vld [vmem:[#allocation12 + $0x40] sm:$0xff]
    %v806 = vld [vmem:[#allocation12 + $0x48] sm:$0xff]
    %v807 = vld [vmem:[#allocation12 + $0x50] sm:$0xff]
    %v808 = vld [vmem:[#allocation12 + $0x58] sm:$0xff]
    %v809 = vld [vmem:[#allocation12 + $0x60] sm:$0xff]
    %v810 = vld [vmem:[#allocation12 + $0x68] sm:$0xff]
    %v811 = vld [vmem:[#allocation12 + $0x70] sm:$0xff]
    %v812 = vld [vmem:[#allocation12 + $0x78] sm:$0xff]
    %v813 = vld [vmem:[#allocation12 + $0x80] sm:$0xff]
    %v814 = vld [vmem:[#allocation12 + $0x88] sm:$0xff]
    %v815 = vld [vmem:[#allocation12 + $0x90] sm:$0xff]
    %v816 = vld [vmem:[#allocation12 + $0x98] sm:$0xff]
    %v817 = vld [vmem:[#allocation12 + $0xa0] sm:$0xff]
    %v818 = vld [vmem:[#allocation12 + $0xa8] sm:$0xff]
    %v819 = vld [vmem:[#allocation12 + $0xb0] sm:$0xff]
    %v820 = vld [vmem:[#allocation12 + $0xb8] sm:$0xff]
    %v821 = vld [vmem:[#allocation12 + $0xc0] sm:$0xff]
    %v822 = vld [vmem:[#allocation12 + $0xc8] sm:$0xff]
    %v823 = vld [vmem:[#allocation12 + $0xd0] sm:$0xff]
    %v824 = vld [vmem:[#allocation12 + $0xd8] sm:$0xff]
    %v825 = vld [vmem:[#allocation12 + $0xe0] sm:$0xff]
    %v826 = vld [vmem:[#allocation12 + $0xe8] sm:$0xff]
    %v827 = vld [vmem:[#allocation12 + $0xf0] sm:$0xff]
    %v828 = vld [vmem:[#allocation12 + $0xf8] sm:$0xff]
    %v830 = vlaneseq
    %v831 = vshrl.u32 %v830, 7
    %v832 = vsub.s32 0, %v831
    %v833 = vrot.slane %v118, %v832
    %v834 = vlaneseq
    %v835 = vshrl.u32 %v834, 7
    %v836 = vsub.s32 1, %v835
    %v837 = vrot.slane %v118, %v836
    %v872 = vunpack.c.l.b16 %v797
    %v873 = vunpack.c.h.b16 %v797
    %v874 = vunpack.c.l.b16 %v798
    %v875 = vunpack.c.h.b16 %v798
    %v876 = vunpack.c.l.b16 %v799
    %v877 = vunpack.c.h.b16 %v799
    %v878 = vunpack.c.l.b16 %v800
    %v879 = vunpack.c.h.b16 %v800
    %v880 = vunpack.c.l.b16 %v801
    %v881 = vunpack.c.h.b16 %v801
    %v882 = vunpack.c.l.b16 %v802
    %v883 = vunpack.c.h.b16 %v802
    %v884 = vunpack.c.l.b16 %v803
    %v885 = vunpack.c.h.b16 %v803
    %v886 = vunpack.c.l.b16 %v804
    %v887 = vunpack.c.h.b16 %v804
    %v888 = vunpack.c.l.b16 %v805
    %v889 = vunpack.c.h.b16 %v805
    %v890 = vunpack.c.l.b16 %v806
    %v891 = vunpack.c.h.b16 %v806
    %v892 = vunpack.c.l.b16 %v807
    %v893 = vunpack.c.h.b16 %v807
    %v894 = vunpack.c.l.b16 %v808
    %v895 = vunpack.c.h.b16 %v808
    %v896 = vunpack.c.l.b16 %v809
    %v897 = vunpack.c.h.b16 %v809
    %v898 = vunpack.c.l.b16 %v810
    %v899 = vunpack.c.h.b16 %v810
    %v900 = vunpack.c.l.b16 %v811
    %v901 = vunpack.c.h.b16 %v811
    %v902 = vunpack.c.l.b16 %v812
    %v903 = vunpack.c.h.b16 %v812
    %v904 = vunpack.c.l.b16 %v813
    %v905 = vunpack.c.h.b16 %v813
    %v906 = vunpack.c.l.b16 %v814
    %v907 = vunpack.c.h.b16 %v814
    %v908 = vunpack.c.l.b16 %v815
    %v909 = vunpack.c.h.b16 %v815
    %v910 = vunpack.c.l.b16 %v816
    %v911 = vunpack.c.h.b16 %v816
    %v912 = vunpack.c.l.b16 %v817
    %v913 = vunpack.c.h.b16 %v817
    %v914 = vunpack.c.l.b16 %v818
    %v915 = vunpack.c.h.b16 %v818
    %v916 = vunpack.c.l.b16 %v819
    %v917 = vunpack.c.h.b16 %v819
    %v918 = vunpack.c.l.b16 %v820
    %v919 = vunpack.c.h.b16 %v820
    %v920 = vunpack.c.l.b16 %v821
    %v921 = vunpack.c.h.b16 %v821
    %v922 = vunpack.c.l.b16 %v822
    %v923 = vunpack.c.h.b16 %v822
    %v924 = vunpack.c.l.b16 %v823
    %v925 = vunpack.c.h.b16 %v823
    %v926 = vunpack.c.l.b16 %v824
    %v927 = vunpack.c.h.b16 %v824
    %v928 = vunpack.c.l.b16 %v825
    %v929 = vunpack.c.h.b16 %v825
    %v930 = vunpack.c.l.b16 %v826
    %v931 = vunpack.c.h.b16 %v826
    %v932 = vunpack.c.l.b16 %v827
    %v933 = vunpack.c.h.b16 %v827
    %v934 = vunpack.c.l.b16 %v828
    %v935 = vunpack.c.h.b16 %v828
    %v936 = vpack.c.b16 %v874, %v872
    %v937 = vpack.c.b16 %v875, %v873
    %v938 = vpack.c.b16 %v878, %v876
    %v939 = vpack.c.b16 %v879, %v877
    %v940 = vpack.c.b16 %v882, %v880
    %v941 = vpack.c.b16 %v883, %v881
    %v942 = vpack.c.b16 %v886, %v884
    %v943 = vpack.c.b16 %v887, %v885
    %v944 = vpack.c.b16 %v890, %v888
    %v945 = vpack.c.b16 %v891, %v889
    %v946 = vpack.c.b16 %v894, %v892
    %v947 = vpack.c.b16 %v895, %v893
    %v948 = vpack.c.b16 %v898, %v896
    %v949 = vpack.c.b16 %v899, %v897
    %v950 = vpack.c.b16 %v902, %v900
    %v951 = vpack.c.b16 %v903, %v901
    %v952 = vpack.c.b16 %v906, %v904
    %v953 = vpack.c.b16 %v907, %v905
    %v954 = vpack.c.b16 %v910, %v908
    %v955 = vpack.c.b16 %v911, %v909
    %v956 = vpack.c.b16 %v914, %v912
    %v957 = vpack.c.b16 %v915, %v913
    %v958 = vpack.c.b16 %v918, %v916
    %v959 = vpack.c.b16 %v919, %v917
    %v960 = vpack.c.b16 %v922, %v920
    %v961 = vpack.c.b16 %v923, %v921
    %v962 = vpack.c.b16 %v926, %v924
    %v963 = vpack.c.b16 %v927, %v925
    %v964 = vpack.c.b16 %v930, %v928
    %v965 = vpack.c.b16 %v931, %v929
    %v966 = vpack.c.b16 %v934, %v932
    %v967 = vpack.c.b16 %v935, %v933
    %1000 = vmatprep.subr.bf16.mxu0 %v951
    %1001 = vmatpush1.bf16.msra.mxu0 %v950
    %1002 = vmatprep.subr.bf16.mxu0 %v949
    %1003 = vmatpush1.bf16.msra.mxu0 %v948
    %1004 = vmatprep.subr.bf16.mxu0 %v947
    %1005 = vmatpush1.bf16.msra.mxu0 %v946
    %1006 = vmatprep.subr.bf16.mxu0 %v945
    %1007 = vmatpush1.bf16.msra.mxu0 %v944
    %1008 = vmatprep.subr.bf16.mxu0 %v943
    %1009 = vmatpush1.bf16.msra.mxu0 %v942
    %1010 = vmatprep.subr.bf16.mxu0 %v941
    %1011 = vmatpush1.bf16.msra.mxu0 %v940
    %1012 = vmatprep.subr.bf16.mxu0 %v939
    %1013 = vmatpush1.bf16.msra.mxu0 %v938
    %1014 = vmatprep.subr.bf16.mxu0 %v937
    %1015 = vmatpush1.bf16.msra.mxu0 %v936
    %1016 = vmatprep.subr.bf16.mxu0 %v967
    %1017 = vmatpush2.bf16.msra.mxu0 %v966
    %1018 = vmatprep.subr.bf16.mxu0 %v965
    %1019 = vmatpush2.bf16.msra.mxu0 %v964
    %1020 = vmatprep.subr.bf16.mxu0 %v963
    %1021 = vmatpush2.bf16.msra.mxu0 %v962
    %1022 = vmatprep.subr.bf16.mxu0 %v961
    %1023 = vmatpush2.bf16.msra.mxu0 %v960
    %1024 = vmatprep.subr.bf16.mxu0 %v959
    %1025 = vmatpush2.bf16.msra.mxu0 %v958
    %1026 = vmatprep.subr.bf16.mxu0 %v957
    %1027 = vmatpush2.bf16.msra.mxu0 %v956
    %1028 = vmatprep.subr.bf16.mxu0 %v955
    %1029 = vmatpush2.bf16.msra.mxu0 %v954
    %1030 = vmatprep.subr.bf16.mxu0 %v953
    %1031 = vmatpush2.bf16.msra.mxu0 %v952
    %1032 = vmatprep.mubr.bf16.mxu0 %v794
    %1033 = vmatmul.mubr.bf16.gmra.mxu0 %v793
    %v1034 = vpop.f32.mrf.mxu0
    %v1035 = vadd.f32 %v833, %v1034
    %v1036 = vpop.f32.mrf.mxu0
    %v1037 = vpop.f32.mrf.mxu0
    %v1038 = vadd.f32 %v833, %v1037
    %v1039 = vpop.f32.mrf.mxu0
    %1040 = vmatprep.mubr.bf16.mxu0 %v796
    %1041 = vmatmul.mubr.bf16.gmra.mxu0 %v795
    %v1042 = vpop.f32.mrf.mxu0
    %v1043 = vpop.f32.mrf.mxu0
    %v1044 = vadd.f32 %v837, %v1043
    %v1045 = vpop.f32.mrf.mxu0
    %v1046 = vpop.f32.mrf.mxu0
    %v1047 = vadd.f32 %v837, %v1046
    %1048 = vdwg.mxu0
    %1049 = vst [vmem:[#allocation2] sm:$0xff] %v1035
    %1050 = vst [vmem:[#allocation2 + $0x8] sm:$0xff] %v1044
    %1051 = vst [vmem:[#allocation2 + $0x10] sm:$0xff] %v1038
    %1052 = vst [vmem:[#allocation2 + $0x18] sm:$0xff] %v1047
    // Predicated region
    $region58: #{tpu_custom_call.1} parent=1 // pred_check
      _
    $region59: #{tpu_custom_call.1} parent=1 // pred_check_branch
      %1054 = sbr.rel target = $region61
    $region60: #{tpu_custom_call.1} parent=1 // pred_region
      %1055 = sst [smem:[#allocation20]] [#allocation19]
      %1056 = sst [smem:[#allocation21]] [#allocation18]
    $region61: #{tpu_custom_call.1} parent=1 // pred_fallthru
      _
    %1058 = shalt.err (0)
    %s1060 = sshll.u32 [#allocation2], 4
    %s1061 = int_to_ptr.vmem [resolvable:$true] %s1060
    %1063 = dma.vmem_to_hbm [thread:$0]  %s1061, 512, %s8, [#allocation3]
    %v1064 = vpack.c.bf16 %v1044, %v1038
    %v1065 = vld [vmem:[#allocation7] sm:$0xff]
    %v1066 = vld [vmem:[#allocation7 + $0x8] sm:$0xff]
    %v1067 = vld [vmem:[#allocation7 + $0x10] sm:$0xff]
    %v1068 = vld [vmem:[#allocation7 + $0x18] sm:$0xff]
    %v1069 = vld [vmem:[#allocation7 + $0x20] sm:$0xff]
    %v1070 = vld [vmem:[#allocation7 + $0x28] sm:$0xff]
    %v1071 = vld [vmem:[#allocation7 + $0x30] sm:$0xff]
    %v1072 = vld [vmem:[#allocation7 + $0x38] sm:$0xff]
    %v1073 = vld [vmem:[#allocation7 + $0x40] sm:$0xff]
    %v1074 = vld [vmem:[#allocation7 + $0x48] sm:$0xff]
    %v1075 = vld [vmem:[#allocation7 + $0x50] sm:$0xff]
    %v1076 = vld [vmem:[#allocation7 + $0x58] sm:$0xff]
    %v1077 = vld [vmem:[#allocation7 + $0x60] sm:$0xff]
    %v1078 = vld [vmem:[#allocation7 + $0x68] sm:$0xff]
    %v1079 = vld [vmem:[#allocation7 + $0x70] sm:$0xff]
    %v1080 = vld [vmem:[#allocation7 + $0x78] sm:$0xff]
    %v1081 = vld [vmem:[#allocation7 + $0x80] sm:$0xff]
    %v1082 = vld [vmem:[#allocation7 + $0x88] sm:$0xff]
    %v1083 = vld [vmem:[#allocation7 + $0x90] sm:$0xff]
    %v1084 = vld [vmem:[#allocation7 + $0x98] sm:$0xff]
    %v1085 = vld [vmem:[#allocation7 + $0xa0] sm:$0xff]
    %v1086 = vld [vmem:[#allocation7 + $0xa8] sm:$0xff]
    %v1087 = vld [vmem:[#allocation7 + $0xb0] sm:$0xff]
    %v1088 = vld [vmem:[#allocation7 + $0xb8] sm:$0xff]
    %v1089 = vld [vmem:[#allocation7 + $0xc0] sm:$0xff]
    %v1090 = vld [vmem:[#allocation7 + $0xc8] sm:$0xff]
    %v1091 = vld [vmem:[#allocation7 + $0xd0] sm:$0xff]
    %v1092 = vld [vmem:[#allocation7 + $0xd8] sm:$0xff]
    %v1093 = vld [vmem:[#allocation7 + $0xe0] sm:$0xff]
    %v1094 = vld [vmem:[#allocation7 + $0xe8] sm:$0xff]
    %v1095 = vld [vmem:[#allocation7 + $0xf0] sm:$0xff]
    %v1096 = vld [vmem:[#allocation7 + $0xf8] sm:$0xff]
    %v1129 = vunpack.c.l.b16 %v1065
    %v1130 = vunpack.c.h.b16 %v1065
    %v1131 = vunpack.c.l.b16 %v1066
    %v1132 = vunpack.c.h.b16 %v1066
    %v1133 = vunpack.c.l.b16 %v1067
    %v1134 = vunpack.c.h.b16 %v1067
    %v1135 = vunpack.c.l.b16 %v1068
    %v1136 = vunpack.c.h.b16 %v1068
    %v1137 = vunpack.c.l.b16 %v1069
    %v1138 = vunpack.c.h.b16 %v1069
    %v1139 = vunpack.c.l.b16 %v1070
    %v1140 = vunpack.c.h.b16 %v1070
    %v1141 = vunpack.c.l.b16 %v1071
    %v1142 = vunpack.c.h.b16 %v1071
    %v1143 = vunpack.c.l.b16 %v1072
    %v1144 = vunpack.c.h.b16 %v1072
    %v1145 = vunpack.c.l.b16 %v1073
    %v1146 = vunpack.c.h.b16 %v1073
    %v1147 = vunpack.c.l.b16 %v1074
    %v1148 = vunpack.c.h.b16 %v1074
    %v1149 = vunpack.c.l.b16 %v1075
    %v1150 = vunpack.c.h.b16 %v1075
    %v1151 = vunpack.c.l.b16 %v1076
    %v1152 = vunpack.c.h.b16 %v1076
    %v1153 = vunpack.c.l.b16 %v1077
    %v1154 = vunpack.c.h.b16 %v1077
    %v1155 = vunpack.c.l.b16 %v1078
    %v1156 = vunpack.c.h.b16 %v1078
    %v1157 = vunpack.c.l.b16 %v1079
    %v1158 = vunpack.c.h.b16 %v1079
    %v1159 = vunpack.c.l.b16 %v1080
    %v1160 = vunpack.c.h.b16 %v1080
    %v1161 = vunpack.c.l.b16 %v1081
    %v1162 = vunpack.c.h.b16 %v1081
    %v1163 = vunpack.c.l.b16 %v1082
    %v1164 = vunpack.c.h.b16 %v1082
    %v1165 = vunpack.c.l.b16 %v1083
    %v1166 = vunpack.c.h.b16 %v1083
    %v1167 = vunpack.c.l.b16 %v1084
    %v1168 = vunpack.c.h.b16 %v1084
    %v1169 = vunpack.c.l.b16 %v1085
    %v1170 = vunpack.c.h.b16 %v1085
    %v1171 = vunpack.c.l.b16 %v1086
    %v1172 = vunpack.c.h.b16 %v1086
    %v1173 = vunpack.c.l.b16 %v1087
    %v1174 = vunpack.c.h.b16 %v1087
    %v1175 = vunpack.c.l.b16 %v1088
    %v1176 = vunpack.c.h.b16 %v1088
    %v1177 = vunpack.c.l.b16 %v1089
    %v1178 = vunpack.c.h.b16 %v1089
    %v1179 = vunpack.c.l.b16 %v1090
    %v1180 = vunpack.c.h.b16 %v1090
    %v1181 = vunpack.c.l.b16 %v1091
    %v1182 = vunpack.c.h.b16 %v1091
    %v1183 = vunpack.c.l.b16 %v1092
    %v1184 = vunpack.c.h.b16 %v1092
    %v1185 = vunpack.c.l.b16 %v1093
    %v1186 = vunpack.c.h.b16 %v1093
    %v1187 = vunpack.c.l.b16 %v1094
    %v1188 = vunpack.c.h.b16 %v1094
    %v1189 = vunpack.c.l.b16 %v1095
    %v1190 = vunpack.c.h.b16 %v1095
    %v1191 = vunpack.c.l.b16 %v1096
    %v1192 = vunpack.c.h.b16 %v1096
    %v1193 = vpack.c.b16 %v1133, %v1129
    %v1194 = vpack.c.b16 %v1134, %v1130
    %v1195 = vpack.c.b16 %v1135, %v1131
    %v1196 = vpack.c.b16 %v1136, %v1132
    %v1197 = vpack.c.b16 %v1141, %v1137
    %v1198 = vpack.c.b16 %v1142, %v1138
    %v1199 = vpack.c.b16 %v1143, %v1139
    %v1200 = vpack.c.b16 %v1144, %v1140
    %v1201 = vpack.c.b16 %v1149, %v1145
    %v1202 = vpack.c.b16 %v1150, %v1146
    %v1203 = vpack.c.b16 %v1151, %v1147
    %v1204 = vpack.c.b16 %v1152, %v1148
    %v1205 = vpack.c.b16 %v1157, %v1153
    %v1206 = vpack.c.b16 %v1158, %v1154
    %v1207 = vpack.c.b16 %v1159, %v1155
    %v1208 = vpack.c.b16 %v1160, %v1156
    %v1209 = vpack.c.b16 %v1165, %v1161
    %v1210 = vpack.c.b16 %v1166, %v1162
    %v1211 = vpack.c.b16 %v1167, %v1163
    %v1212 = vpack.c.b16 %v1168, %v1164
    %v1213 = vpack.c.b16 %v1173, %v1169
    %v1214 = vpack.c.b16 %v1174, %v1170
    %v1215 = vpack.c.b16 %v1175, %v1171
    %v1216 = vpack.c.b16 %v1176, %v1172
    %v1217 = vpack.c.b16 %v1181, %v1177
    %v1218 = vpack.c.b16 %v1182, %v1178
    %v1219 = vpack.c.b16 %v1183, %v1179
    %v1220 = vpack.c.b16 %v1184, %v1180
    %v1221 = vpack.c.b16 %v1189, %v1185
    %v1222 = vpack.c.b16 %v1190, %v1186
    %v1223 = vpack.c.b16 %v1191, %v1187
    %v1224 = vpack.c.b16 %v1192, %v1188
    %1257 = vmatprep.subr.bf16.mxu0 %v1222
    %1258 = vmatpush1.bf16.msra.mxu0 %v1221
    %1259 = vmatprep.subr.bf16.mxu0 %v1218
    %1260 = vmatpush1.bf16.msra.mxu0 %v1217
    %1261 = vmatprep.subr.bf16.mxu0 %v1214
    %1262 = vmatpush1.bf16.msra.mxu0 %v1213
    %1263 = vmatprep.subr.bf16.mxu0 %v1210
    %1264 = vmatpush1.bf16.msra.mxu0 %v1209
    %1265 = vmatprep.subr.bf16.mxu0 %v1206
    %1266 = vmatpush1.bf16.msra.mxu0 %v1205
    %1267 = vmatprep.subr.bf16.mxu0 %v1202
    %1268 = vmatpush1.bf16.msra.mxu0 %v1201
    %1269 = vmatprep.subr.bf16.mxu0 %v1198
    %1270 = vmatpush1.bf16.msra.mxu0 %v1197
    %1271 = vmatprep.subr.bf16.mxu0 %v1194
    %1272 = vmatpush1.bf16.msra.mxu0 %v1193
    %1273 = vmatprep.subr.bf16.mxu0 0
    %1274 = vmatpush2.bf16.msra.mxu0 0
    %1275 = vmatprep.subr.bf16.mxu0 0
    %1276 = vmatpush2.bf16.msra.mxu0 0
    %1277 = vmatprep.subr.bf16.mxu0 0
    %1278 = vmatpush2.bf16.msra.mxu0 0
    %1279 = vmatprep.subr.bf16.mxu0 0
    %1280 = vmatpush2.bf16.msra.mxu0 0
    %1281 = vmatprep.subr.bf16.mxu0 0
    %1282 = vmatpush2.bf16.msra.mxu0 0
    %1283 = vmatprep.subr.bf16.mxu0 0
    %1284 = vmatpush2.bf16.msra.mxu0 0
    %1285 = vmatprep.subr.bf16.mxu0 0
    %1286 = vmatpush2.bf16.msra.mxu0 0
    %1287 = vmatprep.subr.bf16.mxu0 0
    %1288 = vmatpush2.bf16.msra.mxu0 0
    %1289 = vmatprep.mubr.bf16.mxu0 0
    %1290 = vmatmul.mubr.bf16.gmra.mxu0 %v1064
    %v1291 = vpop.f32.mrf.mxu0
    %v1292 = vadd.f32 %v159, %v1291
    %v1293 = vpop.f32.mrf.mxu0
    %v1294 = vadd.f32 %v163, %v1293
    %v1295 = vpop.f32.mrf.mxu0
    %v1296 = vpop.f32.mrf.mxu0
    %1297 = vdwg.mxu0
    %1298 = vmatprep.subr.bf16.mxu0 %v1224
    %1299 = vmatpush1.bf16.msra.mxu0 %v1223
    %1300 = vmatprep.subr.bf16.mxu0 %v1220
    %1301 = vmatpush1.bf16.msra.mxu0 %v1219
    %1302 = vmatprep.subr.bf16.mxu0 %v1216
    %1303 = vmatpush1.bf16.msra.mxu0 %v1215
    %1304 = vmatprep.subr.bf16.mxu0 %v1212
    %1305 = vmatpush1.bf16.msra.mxu0 %v1211
    %1306 = vmatprep.subr.bf16.mxu0 %v1208
    %1307 = vmatpush1.bf16.msra.mxu0 %v1207
    %1308 = vmatprep.subr.bf16.mxu0 %v1204
    %1309 = vmatpush1.bf16.msra.mxu0 %v1203
    %1310 = vmatprep.subr.bf16.mxu0 %v1200
    %1311 = vmatpush1.bf16.msra.mxu0 %v1199
    %1312 = vmatprep.subr.bf16.mxu0 %v1196
    %1313 = vmatpush1.bf16.msra.mxu0 %v1195
    %1314 = vmatprep.subr.bf16.mxu0 0
    %1315 = vmatpush2.bf16.msra.mxu0 0
    %1316 = vmatprep.subr.bf16.mxu0 0
    %1317 = vmatpush2.bf16.msra.mxu0 0
    %1318 = vmatprep.subr.bf16.mxu0 0
    %1319 = vmatpush2.bf16.msra.mxu0 0
    %1320 = vmatprep.subr.bf16.mxu0 0
    %1321 = vmatpush2.bf16.msra.mxu0 0
    %1322 = vmatprep.subr.bf16.mxu0 0
    %1323 = vmatpush2.bf16.msra.mxu0 0
    %1324 = vmatprep.subr.bf16.mxu0 0
    %1325 = vmatpush2.bf16.msra.mxu0 0
    %1326 = vmatprep.subr.bf16.mxu0 0
    %1327 = vmatpush2.bf16.msra.mxu0 0
    %1328 = vmatprep.subr.bf16.mxu0 0
    %1329 = vmatpush2.bf16.msra.mxu0 0
    %1330 = vmatprep.mubr.bf16.mxu0 0
    %1331 = vmatmul.mubr.bf16.gmra.mxu0 %v1064
    %v1332 = vpop.f32.mrf.mxu0
    %v1333 = vpop.f32.mrf.mxu0
    %v1334 = vpop.f32.mrf.mxu0
    %v1335 = vadd.f32 %v167, %v1334
    %v1336 = vpop.f32.mrf.mxu0
    %v1337 = vadd.f32 %v171, %v1336
    %1338 = vdwg.mxu0
    %v1339 = vmax.f32 %v1292, 0.0
    %v1340 = vmax.f32 %v1294, 0.0
    %v1341 = vmax.f32 %v1335, 0.0
    %v1342 = vmax.f32 %v1337, 0.0
    %v1343 = vpack.c.bf16 %v1341, %v1339
    %v1344 = vpack.c.bf16 %v1342, %v1340
    %v1345 = vld [vmem:[#allocation9] sm:$0xf]
    %v1346 = vld [vmem:[#allocation9 + $0x4] sm:$0xf]
    %v1347 = vld [vmem:[#allocation9 + $0x8] sm:$0xf]
    %v1348 = vld [vmem:[#allocation9 + $0xc] sm:$0xf]
    %v1349 = vld [vmem:[#allocation9 + $0x10] sm:$0xf]
    %v1350 = vld [vmem:[#allocation9 + $0x14] sm:$0xf]
    %v1351 = vld [vmem:[#allocation9 + $0x18] sm:$0xf]
    %v1352 = vld [vmem:[#allocation9 + $0x1c] sm:$0xf]
    %v1353 = vld [vmem:[#allocation9 + $0x20] sm:$0xf]
    %v1354 = vld [vmem:[#allocation9 + $0x24] sm:$0xf]
    %v1355 = vld [vmem:[#allocation9 + $0x28] sm:$0xf]
    %v1356 = vld [vmem:[#allocation9 + $0x2c] sm:$0xf]
    %v1357 = vld [vmem:[#allocation9 + $0x30] sm:$0xf]
    %v1358 = vld [vmem:[#allocation9 + $0x34] sm:$0xf]
    %v1359 = vld [vmem:[#allocation9 + $0x38] sm:$0xf]
    %v1360 = vld [vmem:[#allocation9 + $0x3c] sm:$0xf]
    %v1361 = vld [vmem:[#allocation9 + $0x40] sm:$0xf]
    %v1362 = vld [vmem:[#allocation9 + $0x44] sm:$0xf]
    %v1363 = vld [vmem:[#allocation9 + $0x48] sm:$0xf]
    %v1364 = vld [vmem:[#allocation9 + $0x4c] sm:$0xf]
    %v1365 = vld [vmem:[#allocation9 + $0x50] sm:$0xf]
    %v1366 = vld [vmem:[#allocation9 + $0x54] sm:$0xf]
    %v1367 = vld [vmem:[#allocation9 + $0x58] sm:$0xf]
    %v1368 = vld [vmem:[#allocation9 + $0x5c] sm:$0xf]
    %v1369 = vld [vmem:[#allocation9 + $0x60] sm:$0xf]
    %v1370 = vld [vmem:[#allocation9 + $0x64] sm:$0xf]
    %v1371 = vld [vmem:[#allocation9 + $0x68] sm:$0xf]
    %v1372 = vld [vmem:[#allocation9 + $0x6c] sm:$0xf]
    %v1373 = vld [vmem:[#allocation9 + $0x70] sm:$0xf]
    %v1374 = vld [vmem:[#allocation9 + $0x74] sm:$0xf]
    %v1375 = vld [vmem:[#allocation9 + $0x78] sm:$0xf]
    %v1376 = vld [vmem:[#allocation9 + $0x7c] sm:$0xf]
    %v1409 = vunpack.c.l.b16 %v1345
    %v1410 = vunpack.c.l.b16 %v1346
    %v1411 = vunpack.c.l.b16 %v1347
    %v1412 = vunpack.c.l.b16 %v1348
    %v1413 = vunpack.c.l.b16 %v1349
    %v1414 = vunpack.c.l.b16 %v1350
    %v1415 = vunpack.c.l.b16 %v1351
    %v1416 = vunpack.c.l.b16 %v1352
    %v1417 = vunpack.c.l.b16 %v1353
    %v1418 = vunpack.c.l.b16 %v1354
    %v1419 = vunpack.c.l.b16 %v1355
    %v1420 = vunpack.c.l.b16 %v1356
    %v1421 = vunpack.c.l.b16 %v1357
    %v1422 = vunpack.c.l.b16 %v1358
    %v1423 = vunpack.c.l.b16 %v1359
    %v1424 = vunpack.c.l.b16 %v1360
    %v1425 = vunpack.c.l.b16 %v1361
    %v1426 = vunpack.c.l.b16 %v1362
    %v1427 = vunpack.c.l.b16 %v1363
    %v1428 = vunpack.c.l.b16 %v1364
    %v1429 = vunpack.c.l.b16 %v1365
    %v1430 = vunpack.c.l.b16 %v1366
    %v1431 = vunpack.c.l.b16 %v1367
    %v1432 = vunpack.c.l.b16 %v1368
    %v1433 = vunpack.c.l.b16 %v1369
    %v1434 = vunpack.c.l.b16 %v1370
    %v1435 = vunpack.c.l.b16 %v1371
    %v1436 = vunpack.c.l.b16 %v1372
    %v1437 = vunpack.c.l.b16 %v1373
    %v1438 = vunpack.c.l.b16 %v1374
    %v1439 = vunpack.c.l.b16 %v1375
    %v1440 = vunpack.c.l.b16 %v1376
    %v1441 = vpack.c.b16 %v1410, %v1409
    %v1442 = vpack.c.b16 %v1412, %v1411
    %v1443 = vpack.c.b16 %v1414, %v1413
    %v1444 = vpack.c.b16 %v1416, %v1415
    %v1445 = vpack.c.b16 %v1418, %v1417
    %v1446 = vpack.c.b16 %v1420, %v1419
    %v1447 = vpack.c.b16 %v1422, %v1421
    %v1448 = vpack.c.b16 %v1424, %v1423
    %v1449 = vpack.c.b16 %v1426, %v1425
    %v1450 = vpack.c.b16 %v1428, %v1427
    %v1451 = vpack.c.b16 %v1430, %v1429
    %v1452 = vpack.c.b16 %v1432, %v1431
    %v1453 = vpack.c.b16 %v1434, %v1433
    %v1454 = vpack.c.b16 %v1436, %v1435
    %v1455 = vpack.c.b16 %v1438, %v1437
    %v1456 = vpack.c.b16 %v1440, %v1439
    %1473 = vmatprep.subr.bf16.mxu0 0
    %1474 = vmatpush1.bf16.msra.mxu0 %v1448
    %1475 = vmatprep.subr.bf16.mxu0 0
    %1476 = vmatpush1.bf16.msra.mxu0 %v1447
    %1477 = vmatprep.subr.bf16.mxu0 0
    %1478 = vmatpush1.bf16.msra.mxu0 %v1446
    %1479 = vmatprep.subr.bf16.mxu0 0
    %1480 = vmatpush1.bf16.msra.mxu0 %v1445
    %1481 = vmatprep.subr.bf16.mxu0 0
    %1482 = vmatpush1.bf16.msra.mxu0 %v1444
    %1483 = vmatprep.subr.bf16.mxu0 0
    %1484 = vmatpush1.bf16.msra.mxu0 %v1443
    %1485 = vmatprep.subr.bf16.mxu0 0
    %1486 = vmatpush1.bf16.msra.mxu0 %v1442
    %1487 = vmatprep.subr.bf16.mxu0 0
    %1488 = vmatpush1.bf16.msra.mxu0 %v1441
    %1489 = vmatprep.subr.bf16.mxu0 0
    %1490 = vmatpush2.bf16.msra.mxu0 %v1456
    %1491 = vmatprep.subr.bf16.mxu0 0
    %1492 = vmatpush2.bf16.msra.mxu0 %v1455
    %1493 = vmatprep.subr.bf16.mxu0 0
    %1494 = vmatpush2.bf16.msra.mxu0 %v1454
    %1495 = vmatprep.subr.bf16.mxu0 0
    %1496 = vmatpush2.bf16.msra.mxu0 %v1453
    %1497 = vmatprep.subr.bf16.mxu0 0
    %1498 = vmatpush2.bf16.msra.mxu0 %v1452
    %1499 = vmatprep.subr.bf16.mxu0 0
    %1500 = vmatpush2.bf16.msra.mxu0 %v1451
    %1501 = vmatprep.subr.bf16.mxu0 0
    %1502 = vmatpush2.bf16.msra.mxu0 %v1450
    %1503 = vmatprep.subr.bf16.mxu0 0
    %1504 = vmatpush2.bf16.msra.mxu0 %v1449
    %1505 = vmatprep.mubr.bf16.mxu0 %v1344
    %1506 = vmatmul.mubr.bf16.gmra.mxu0 %v1343
    %v1507 = vpop.f32.mrf.mxu0
    %v1508 = vadd.f32 %v460, %v1507
    %v1509 = vpop.f32.mrf.mxu0
    %v1510 = vpop.f32.mrf.mxu0
    %v1511 = vadd.f32 %v460, %v1510
    %v1512 = vpop.f32.mrf.mxu0
    %1513 = vdwg.mxu0
    %v1514 = vmul.f32 %v1508, 0.5
    %v1515 = vmul.f32 %v1514, 1.442695
    %v1516 = vpow.pop %v1515
    %1518 = vrot.lane.b32.xlu0 %v1516, 64
    %v1519 = vpop.permute.xlu0 %1518
    %v1521 = vmul.f32 %v119, %v1519
    %1523 = vrot.lane.b32.xlu0 %v1521, 32
    %v1524 = vpop.permute.xlu0 %1523
    %v1526 = vadd.f32 %v1508, %v1524
    %v1527 = vmul.f32 %v1511, 0.5
    %v1528 = vmul.f32 %v1527, 1.442695
    %v1529 = vpow.pop %v1528
    %1531 = vrot.lane.b32.xlu0 %v1529, 96
    %v1532 = vpop.permute.xlu0 %1531
    %v1534 = vmul.f32 %v119, %v1532
    %v1535 = vadd.f32 %v1511, %v1534
    %1536 = vrot.lane.b32.xlu0 %v620, 96
    %v1537 = vpop.permute.xlu0 %1536
    %1540 = vrot.lane.b32.xlu0 %v1526, 96
    %v1541 = vpop.permute.xlu0 %1540
    %v1543 = vsel %vm695, %v607, %v1537
    %vm1544 = vcmask 523264
    %v1545 = vsel %vm1544, %v1543, %v1535
    %vm1546 = vcmask 785408
    %v1547 = vsel %vm1546, %v1545, %v1541
    %1548 = vst [vmem:[#allocation15] sm:$0xff] %v1547
    %v1549 = vld [vmem:[%s6] sm:$0xf]
    %v1550 = vmul.f32 %v593, 1.442695
    %v1551 = vpow.pop %v1550
    %v1552 = vmul.f32 %v1549, 1.442695
    %v1553 = vpow.pop %v1552
    %v1554 = vlog2.pop %v1551
    %v1555 = vmul.f32 %v1554, 0.6931472
    %1557 = vrot.lane.b32.xlu0 %v1555, 96
    %v1558 = vpop.permute.xlu0 %1557
    %v1560 = vsel %vm695, %v1558, 0.0
    %1561 = vadd.xlane.f32.xlu0 %v1560
    %v1562 = vpop.xlane.xlu0 %1561
    %v1563 = vmul.f32 %v1562, -0.5
    %v1564 = vsub.f32 %v607, %v593
    %v1565 = vmul.f32 %v1564, %v1564
    %1567 = vrot.lane.b32.xlu0 %v1551, 96
    %v1568 = vpop.permute.xlu0 %1567
    %v1570 = vrcp.pop %v1568
    %v1571 = vmul.f32 %v1565, %v1570
    %v1572 = vsel %vm695, %v1571, 0.0
    %1573 = vadd.xlane.f32.xlu0 %v1572
    %v1574 = vpop.xlane.xlu0 %1573
    %v1575 = vmul.f32 %v1574, -0.5
    %v1576 = vadd.f32 %v1563, -29.406033
    %v1577 = vadd.f32 %v1576, %v1575
    %v1578 = vrcp.pop %v1553
    %v1579 = vmul.f32 1.0, %v1578
    %v1580 = vlog2.pop %v1553
    %v1581 = vmul.f32 %v1580, 0.6931472
    %1583 = vrot.lane.b32.xlu0 %v1581, 96
    %v1584 = vpop.permute.xlu0 %1583
    %vm1586 = vcmask 257024
    %v1587 = vsel %vm1586, %v1584, 0.0
    %1588 = vadd.xlane.f32.xlu0 %v1587
    %v1589 = vpop.xlane.xlu0 %1588
    %v1590 = vmul.f32 %v1589, -0.5
    %v1591 = vmul.f32 %v607, %v607
    %1593 = vrot.lane.b32.xlu0 %v1579, 96
    %v1594 = vpop.permute.xlu0 %1593
    %v1596 = vsel %vm695, %v1591, 0
    %v1598 = vsel %vm695, %v1594, 0
    %1600 = vmatprep.subr.mxu0 0.0
    %1601 = vmatpush1.xpose.msra.mxu0 0.0
    %1602 = vmatprep.subr.mxu0 0.0
    %1603 = vmatpush1.xpose.msra.mxu0 0.0
    %1604 = vmatprep.subr.mxu0 0.0
    %1605 = vmatpush1.xpose.msra.mxu0 0.0
    %1606 = vmatprep.subr.mxu0 0.0
    %1607 = vmatpush1.xpose.msra.mxu0 0.0
    %1608 = vmatprep.subr.mxu0 0.0
    %1609 = vmatpush1.xpose.msra.mxu0 0.0
    %1610 = vmatprep.subr.mxu0 0.0
    %1611 = vmatpush1.xpose.msra.mxu0 0.0
    %1612 = vmatprep.subr.mxu0 0.0
    %1613 = vmatpush1.xpose.msra.mxu0 0.0
    %1614 = vmatprep.subr.mxu0 0.0
    %1615 = vmatpush1.xpose.msra.mxu0 0.0
    %1616 = vmatprep.subr.mxu0 0.0
    %1617 = vmatpush1.xpose.msra.mxu0 0.0
    %1618 = vmatprep.subr.mxu0 0.0
    %1619 = vmatpush1.xpose.msra.mxu0 0.0
    %1620 = vmatprep.subr.mxu0 0.0
    %1621 = vmatpush1.xpose.msra.mxu0 0.0
    %1622 = vmatprep.subr.mxu0 0.0
    %1623 = vmatpush1.xpose.msra.mxu0 0.0
    %1624 = vmatprep.subr.mxu0 0.0
    %1625 = vmatpush1.xpose.msra.mxu0 0.0
    %1626 = vmatprep.subr.mxu0 0.0
    %1627 = vmatpush1.xpose.msra.mxu0 0.0
    %1628 = vmatprep.subr.mxu0 0.0
    %1629 = vmatpush1.xpose.msra.mxu0 0.0
    %1630 = vmatprep.subr.mxu0 0.0
    %1631 = vmatpush1.xpose.msra.mxu0 %v1598
    %1632 = vmatprep.subr.mxu0 0.0
    %1633 = vmatpush2.xpose.msra.mxu0 0.0
    %1634 = vmatprep.subr.mxu0 0.0
    %1635 = vmatpush2.xpose.msra.mxu0 0.0
    %1636 = vmatprep.subr.mxu0 0.0
    %1637 = vmatpush2.xpose.msra.mxu0 0.0
    %1638 = vmatprep.subr.mxu0 0.0
    %1639 = vmatpush2.xpose.msra.mxu0 0.0
    %1640 = vmatprep.subr.mxu0 0.0
    %1641 = vmatpush2.xpose.msra.mxu0 0.0
    %1642 = vmatprep.subr.mxu0 0.0
    %1643 = vmatpush2.xpose.msra.mxu0 0.0
    %1644 = vmatprep.subr.mxu0 0.0
    %1645 = vmatpush2.xpose.msra.mxu0 0.0
    %1646 = vmatprep.subr.mxu0 0.0
    %1647 = vmatpush2.xpose.msra.mxu0 0.0
    %1648 = vmatprep.subr.mxu0 0.0
    %1649 = vmatpush2.xpose.msra.mxu0 0.0
    %1650 = vmatprep.subr.mxu0 0.0
    %1651 = vmatpush2.xpose.msra.mxu0 0.0
    %1652 = vmatprep.subr.mxu0 0.0
    %1653 = vmatpush2.xpose.msra.mxu0 0.0
    %1654 = vmatprep.subr.mxu0 0.0
    %1655 = vmatpush2.xpose.msra.mxu0 0.0
    %1656 = vmatprep.subr.mxu0 0.0
    %1657 = vmatpush2.xpose.msra.mxu0 0.0
    %1658 = vmatprep.subr.mxu0 0.0
    %1659 = vmatpush2.xpose.msra.mxu0 0.0
    %1660 = vmatprep.subr.mxu0 0.0
    %1661 = vmatpush2.xpose.msra.mxu0 0.0
    %1662 = vmatprep.subr.mxu0 0.0
    %1663 = vmatpush2.xpose.msra.mxu0 0.0
    %1664 = vmatprep.mubr.f32.mxu0 0.0
    %1665 = vmatmul.mubr.f32.gmra.mxu0 %v1596
    %v1666 = vpop.f32.mrf.mxu0
    %v1667 = vadd.f32 0.0, %v1666
    %v1668 = vpop.f32.mrf.mxu0
    %1669 = vdwg.mxu0
    %v1671 = vmul.f32 %v1549, %v1594
    %v1673 = vsel %vm695, %v607, 0
    %v1676 = vsel %vm695, %v1671, 0
    %1678 = vmatprep.subr.mxu0 0.0
    %1679 = vmatpush1.xpose.msra.mxu0 0.0
    %1680 = vmatprep.subr.mxu0 0.0
    %1681 = vmatpush1.xpose.msra.mxu0 0.0
    %1682 = vmatprep.subr.mxu0 0.0
    %1683 = vmatpush1.xpose.msra.mxu0 0.0
    %1684 = vmatprep.subr.mxu0 0.0
    %1685 = vmatpush1.xpose.msra.mxu0 0.0
    %1686 = vmatprep.subr.mxu0 0.0
    %1687 = vmatpush1.xpose.msra.mxu0 0.0
    %1688 = vmatprep.subr.mxu0 0.0
    %1689 = vmatpush1.xpose.msra.mxu0 0.0
    %1690 = vmatprep.subr.mxu0 0.0
    %1691 = vmatpush1.xpose.msra.mxu0 0.0
    %1692 = vmatprep.subr.mxu0 0.0
    %1693 = vmatpush1.xpose.msra.mxu0 0.0
    %1694 = vmatprep.subr.mxu0 0.0
    %1695 = vmatpush1.xpose.msra.mxu0 0.0
    %1696 = vmatprep.subr.mxu0 0.0
    %1697 = vmatpush1.xpose.msra.mxu0 0.0
    %1698 = vmatprep.subr.mxu0 0.0
    %1699 = vmatpush1.xpose.msra.mxu0 0.0
    %1700 = vmatprep.subr.mxu0 0.0
    %1701 = vmatpush1.xpose.msra.mxu0 0.0
    %1702 = vmatprep.subr.mxu0 0.0
    %1703 = vmatpush1.xpose.msra.mxu0 0.0
    %1704 = vmatprep.subr.mxu0 0.0
    %1705 = vmatpush1.xpose.msra.mxu0 0.0
    %1706 = vmatprep.subr.mxu0 0.0
    %1707 = vmatpush1.xpose.msra.mxu0 0.0
    %1708 = vmatprep.subr.mxu0 0.0
    %1709 = vmatpush1.xpose.msra.mxu0 %v1676
    %1710 = vmatprep.subr.mxu0 0.0
    %1711 = vmatpush2.xpose.msra.mxu0 0.0
    %1712 = vmatprep.subr.mxu0 0.0
    %1713 = vmatpush2.xpose.msra.mxu0 0.0
    %1714 = vmatprep.subr.mxu0 0.0
    %1715 = vmatpush2.xpose.msra.mxu0 0.0
    %1716 = vmatprep.subr.mxu0 0.0
    %1717 = vmatpush2.xpose.msra.mxu0 0.0
    %1718 = vmatprep.subr.mxu0 0.0
    %1719 = vmatpush2.xpose.msra.mxu0 0.0
    %1720 = vmatprep.subr.mxu0 0.0
    %1721 = vmatpush2.xpose.msra.mxu0 0.0
    %1722 = vmatprep.subr.mxu0 0.0
    %1723 = vmatpush2.xpose.msra.mxu0 0.0
    %1724 = vmatprep.subr.mxu0 0.0
    %1725 = vmatpush2.xpose.msra.mxu0 0.0
    %1726 = vmatprep.subr.mxu0 0.0
    %1727 = vmatpush2.xpose.msra.mxu0 0.0
    %1728 = vmatprep.subr.mxu0 0.0
    %1729 = vmatpush2.xpose.msra.mxu0 0.0
    %1730 = vmatprep.subr.mxu0 0.0
    %1731 = vmatpush2.xpose.msra.mxu0 0.0
    %1732 = vmatprep.subr.mxu0 0.0
    %1733 = vmatpush2.xpose.msra.mxu0 0.0
    %1734 = vmatprep.subr.mxu0 0.0
    %1735 = vmatpush2.xpose.msra.mxu0 0.0
    %1736 = vmatprep.subr.mxu0 0.0
    %1737 = vmatpush2.xpose.msra.mxu0 0.0
    %1738 = vmatprep.subr.mxu0 0.0
    %1739 = vmatpush2.xpose.msra.mxu0 0.0
    %1740 = vmatprep.subr.mxu0 0.0
    %1741 = vmatpush2.xpose.msra.mxu0 0.0
    %1742 = vmatprep.mubr.f32.mxu0 0.0
    %1743 = vmatmul.mubr.f32.gmra.mxu0 %v1673
    %v1744 = vpop.f32.mrf.mxu0
    %v1745 = vadd.f32 0.0, %v1744
    %v1746 = vpop.f32.mrf.mxu0
    %1747 = vdwg.mxu0
    %v1748 = vmul.f32 %v1549, %v1549
    %v1749 = vmul.f32 %v1748, %v1594
    %v1750 = vsel %vm1586, %v1749, 0.0
    %1751 = vadd.xlane.f32.xlu0 %v1750
    %v1752 = vpop.xlane.xlu0 %1751
    %v1753 = vadd.f32 %v1590, -29.406033
    %v1754 = vmul.f32 %v1745, 2.0
    %v1755 = vsub.f32 %v1667, %v1754
    %v1757 = vlaneseq
    %v1758 = vand.u32 %v1757, 127
    %v1759 = vlaneseq
    %v1760 = vshrl.u32 %v1759, 7
    %v1761 = vsub.s32 %v1758, %v1760
    %v1762 = vrot.slane %v1752, %v1761
    %vm1763 = vcmask 1041409
    %vm1764 = vcmask 1042434
    %v1765 = vsel %vm1764, %v1762, %v1762
    %vm1766 = vcmask 1043459
    %v1767 = vsel %vm1766, %v1762, %v1765
    %vm1768 = vcmask 1044484
    %v1769 = vsel %vm1768, %v1762, %v1767
    %vm1770 = vcmask 1045509
    %v1771 = vsel %vm1770, %v1762, %v1769
    %vm1772 = vcmask 1046534
    %v1773 = vsel %vm1772, %v1762, %v1771
    %vm1774 = vcmask 1047559
    %v1775 = vsel %vm1774, %v1762, %v1773
    %v1777 = vadd.f32 %v1755, %v1775
    %v1778 = vmul.f32 %v1777, 0.5
    %v1780 = vlaneseq
    %v1781 = vshrl.u32 %v1780, 7
    %v1782 = vsub.s32 0, %v1781
    %v1783 = vrot.slane %v1778, %v1782
    %1785 = vbcast.lane.b32.xlu0 %v1783, 256
    %v1786 = vpop.permute.xlu0 %1785
    %v1787 = vlaneseq
    %v1788 = vshrl.u32 %v1787, 7
    %v1789 = vsub.s32 1, %v1788
    %v1790 = vrot.slane %v1778, %v1789
    %1792 = vbcast.lane.b32.xlu0 %v1790, 256
    %v1793 = vpop.permute.xlu0 %1792
    %v1794 = vlaneseq
    %v1795 = vshrl.u32 %v1794, 7
    %v1796 = vsub.s32 2, %v1795
    %v1797 = vrot.slane %v1778, %v1796
    %1799 = vbcast.lane.b32.xlu0 %v1797, 256
    %v1800 = vpop.permute.xlu0 %1799
    %v1801 = vlaneseq
    %v1802 = vshrl.u32 %v1801, 7
    %v1803 = vsub.s32 3, %v1802
    %v1804 = vrot.slane %v1778, %v1803
    %1806 = vbcast.lane.b32.xlu0 %v1804, 256
    %v1807 = vpop.permute.xlu0 %1806
    %v1808 = vlaneseq
    %v1809 = vshrl.u32 %v1808, 7
    %v1810 = vsub.s32 4, %v1809
    %v1811 = vrot.slane %v1778, %v1810
    %1813 = vbcast.lane.b32.xlu0 %v1811, 256
    %v1814 = vpop.permute.xlu0 %1813
    %v1815 = vlaneseq
    %v1816 = vshrl.u32 %v1815, 7
    %v1817 = vsub.s32 5, %v1816
    %v1818 = vrot.slane %v1778, %v1817
    %1820 = vbcast.lane.b32.xlu0 %v1818, 256
    %v1821 = vpop.permute.xlu0 %1820
    %v1822 = vlaneseq
    %v1823 = vshrl.u32 %v1822, 7
    %v1824 = vsub.s32 6, %v1823
    %v1825 = vrot.slane %v1778, %v1824
    %1827 = vbcast.lane.b32.xlu0 %v1825, 256
    %v1828 = vpop.permute.xlu0 %1827
    %v1829 = vlaneseq
    %v1830 = vshrl.u32 %v1829, 7
    %v1831 = vsub.s32 7, %v1830
    %v1832 = vrot.slane %v1778, %v1831
    %1834 = vbcast.lane.b32.xlu0 %v1832, 256
    %v1835 = vpop.permute.xlu0 %1834
    %v1844 = vsub.f32 %v1753, %v1786
    %v1845 = vsub.f32 %v1753, %v1793
    %v1846 = vsub.f32 %v1753, %v1800
    %v1847 = vsub.f32 %v1753, %v1807
    %v1848 = vsub.f32 %v1753, %v1814
    %v1849 = vsub.f32 %v1753, %v1821
    %v1850 = vsub.f32 %v1753, %v1828
    %v1851 = vsub.f32 %v1753, %v1835
    %1860 = vset.pattern.permute.xlu0 0
    %1861 = vperm.xlu0 %1860, %v1844
    %v1862 = vpop.permute.xlu0 %1861
    %1863 = vset.pattern.permute.xlu0 0
    %1864 = vperm.xlu0 %1863, %v1845
    %v1865 = vpop.permute.xlu0 %1864
    %1866 = vset.pattern.permute.xlu0 0
    %1867 = vperm.xlu0 %1866, %v1846
    %v1868 = vpop.permute.xlu0 %1867
    %1869 = vset.pattern.permute.xlu0 0
    %1870 = vperm.xlu0 %1869, %v1847
    %v1871 = vpop.permute.xlu0 %1870
    %1872 = vset.pattern.permute.xlu0 0
    %1873 = vperm.xlu0 %1872, %v1848
    %v1874 = vpop.permute.xlu0 %1873
    %1875 = vset.pattern.permute.xlu0 0
    %1876 = vperm.xlu0 %1875, %v1849
    %v1877 = vpop.permute.xlu0 %1876
    %1878 = vset.pattern.permute.xlu0 0
    %1879 = vperm.xlu0 %1878, %v1850
    %v1880 = vpop.permute.xlu0 %1879
    %1881 = vset.pattern.permute.xlu0 0
    %1882 = vperm.xlu0 %1881, %v1851
    %v1883 = vpop.permute.xlu0 %1882
    %v1884 = vlaneseq
    %v1885 = vshrl.u32 %v1884, 7
    %v1886 = vsub.s32 %v1758, %v1885
    %v1887 = vrot.slane %v1862, %v1886
    %v1888 = vlaneseq
    %v1889 = vshrl.u32 %v1888, 7
    %v1890 = vsub.s32 %v1758, %v1889
    %v1891 = vrot.slane %v1865, %v1890
    %v1892 = vlaneseq
    %v1893 = vshrl.u32 %v1892, 7
    %v1894 = vsub.s32 %v1758, %v1893
    %v1895 = vrot.slane %v1868, %v1894
    %v1896 = vlaneseq
    %v1897 = vshrl.u32 %v1896, 7
    %v1898 = vsub.s32 %v1758, %v1897
    %v1899 = vrot.slane %v1871, %v1898
    %v1900 = vlaneseq
    %v1901 = vshrl.u32 %v1900, 7
    %v1902 = vsub.s32 %v1758, %v1901
    %v1903 = vrot.slane %v1874, %v1902
    %v1904 = vlaneseq
    %v1905 = vshrl.u32 %v1904, 7
    %v1906 = vsub.s32 %v1758, %v1905
    %v1907 = vrot.slane %v1877, %v1906
    %v1908 = vlaneseq
    %v1909 = vshrl.u32 %v1908, 7
    %v1910 = vsub.s32 %v1758, %v1909
    %v1911 = vrot.slane %v1880, %v1910
    %v1912 = vlaneseq
    %v1913 = vshrl.u32 %v1912, 7
    %v1914 = vsub.s32 %v1758, %v1913
    %v1915 = vrot.slane %v1883, %v1914
    %v1916 = vsel %vm1763, %v1891, %v1887
    %v1917 = vsel %vm1764, %v1895, %v1916
    %v1918 = vsel %vm1766, %v1899, %v1917
    %v1919 = vsel %vm1768, %v1903, %v1918
    %v1920 = vsel %vm1770, %v1907, %v1919
    %v1921 = vsel %vm1772, %v1911, %v1920
    %v1922 = vsel %vm1774, %v1915, %v1921
    %vm1924 = vcmask 31744
    %v1925 = vsel %vm1924, %v1922, -inf
    %1926 = vmax.xlane.f32.xlu0 %v1925
    %v1927 = vpop.xlane.xlu0 %1926
    %v1929 = vlaneseq
    %v1930 = vshrl.u32 %v1929, 7
    %v1931 = vsub.s32 0, %v1930
    %v1932 = vrot.slane %v1927, %v1931
    %v1933 = vlaneseq
    %v1934 = vshrl.u32 %v1933, 7
    %v1935 = vsub.s32 1, %v1934
    %v1936 = vrot.slane %v1927, %v1935
    %v1937 = vlaneseq
    %v1938 = vshrl.u32 %v1937, 7
    %v1939 = vsub.s32 2, %v1938
    %v1940 = vrot.slane %v1927, %v1939
    %v1941 = vlaneseq
    %v1942 = vshrl.u32 %v1941, 7
    %v1943 = vsub.s32 3, %v1942
    %v1944 = vrot.slane %v1927, %v1943
    %v1945 = vlaneseq
    %v1946 = vshrl.u32 %v1945, 7
    %v1947 = vsub.s32 4, %v1946
    %v1948 = vrot.slane %v1927, %v1947
    %v1949 = vlaneseq
    %v1950 = vshrl.u32 %v1949, 7
    %v1951 = vsub.s32 5, %v1950
    %v1952 = vrot.slane %v1927, %v1951
    %v1953 = vlaneseq
    %v1954 = vshrl.u32 %v1953, 7
    %v1955 = vsub.s32 6, %v1954
    %v1956 = vrot.slane %v1927, %v1955
    %v1957 = vlaneseq
    %v1958 = vshrl.u32 %v1957, 7
    %v1959 = vsub.s32 7, %v1958
    %v1960 = vrot.slane %v1927, %v1959
    %v1969 = vsub.f32 %v1844, %v1932
    %v1970 = vsub.f32 %v1845, %v1936
    %v1971 = vsub.f32 %v1846, %v1940
    %v1972 = vsub.f32 %v1847, %v1944
    %v1973 = vsub.f32 %v1848, %v1948
    %v1974 = vsub.f32 %v1849, %v1952
    %v1975 = vsub.f32 %v1850, %v1956
    %v1976 = vsub.f32 %v1851, %v1960
    %v1977 = vmul.f32 %v1969, 1.442695
    %v1978 = vpow.pop %v1977
    %v1979 = vmul.f32 %v1970, 1.442695
    %v1980 = vpow.pop %v1979
    %v1981 = vmul.f32 %v1971, 1.442695
    %v1982 = vpow.pop %v1981
    %v1983 = vmul.f32 %v1972, 1.442695
    %v1984 = vpow.pop %v1983
    %v1985 = vmul.f32 %v1973, 1.442695
    %v1986 = vpow.pop %v1985
    %v1987 = vmul.f32 %v1974, 1.442695
    %v1988 = vpow.pop %v1987
    %v1989 = vmul.f32 %v1975, 1.442695
    %v1990 = vpow.pop %v1989
    %v1991 = vmul.f32 %v1976, 1.442695
    %v1992 = vpow.pop %v1991
    %2001 = vset.pattern.permute.xlu0 0
    %2002 = vperm.xlu0 %2001, %v1978
    %v2003 = vpop.permute.xlu0 %2002
    %2004 = vset.pattern.permute.xlu0 0
    %2005 = vperm.xlu0 %2004, %v1980
    %v2006 = vpop.permute.xlu0 %2005
    %2007 = vset.pattern.permute.xlu0 0
    %2008 = vperm.xlu0 %2007, %v1982
    %v2009 = vpop.permute.xlu0 %2008
    %2010 = vset.pattern.permute.xlu0 0
    %2011 = vperm.xlu0 %2010, %v1984
    %v2012 = vpop.permute.xlu0 %2011
    %2013 = vset.pattern.permute.xlu0 0
    %2014 = vperm.xlu0 %2013, %v1986
    %v2015 = vpop.permute.xlu0 %2014
    %2016 = vset.pattern.permute.xlu0 0
    %2017 = vperm.xlu0 %2016, %v1988
    %v2018 = vpop.permute.xlu0 %2017
    %2019 = vset.pattern.permute.xlu0 0
    %2020 = vperm.xlu0 %2019, %v1990
    %v2021 = vpop.permute.xlu0 %2020
    %2022 = vset.pattern.permute.xlu0 0
    %2023 = vperm.xlu0 %2022, %v1992
    %v2024 = vpop.permute.xlu0 %2023
    %v2025 = vlaneseq
    %v2026 = vshrl.u32 %v2025, 7
    %v2027 = vsub.s32 %v1758, %v2026
    %v2028 = vrot.slane %v2003, %v2027
    %v2029 = vlaneseq
    %v2030 = vshrl.u32 %v2029, 7
    %v2031 = vsub.s32 %v1758, %v2030
    %v2032 = vrot.slane %v2006, %v2031
    %v2033 = vlaneseq
    %v2034 = vshrl.u32 %v2033, 7
    %v2035 = vsub.s32 %v1758, %v2034
    %v2036 = vrot.slane %v2009, %v2035
    %v2037 = vlaneseq
    %v2038 = vshrl.u32 %v2037, 7
    %v2039 = vsub.s32 %v1758, %v2038
    %v2040 = vrot.slane %v2012, %v2039
    %v2041 = vlaneseq
    %v2042 = vshrl.u32 %v2041, 7
    %v2043 = vsub.s32 %v1758, %v2042
    %v2044 = vrot.slane %v2015, %v2043
    %v2045 = vlaneseq
    %v2046 = vshrl.u32 %v2045, 7
    %v2047 = vsub.s32 %v1758, %v2046
    %v2048 = vrot.slane %v2018, %v2047
    %v2049 = vlaneseq
    %v2050 = vshrl.u32 %v2049, 7
    %v2051 = vsub.s32 %v1758, %v2050
    %v2052 = vrot.slane %v2021, %v2051
    %v2053 = vlaneseq
    %v2054 = vshrl.u32 %v2053, 7
    %v2055 = vsub.s32 %v1758, %v2054
    %v2056 = vrot.slane %v2024, %v2055
    %v2057 = vsel %vm1763, %v2032, %v2028
    %v2058 = vsel %vm1764, %v2036, %v2057
    %v2059 = vsel %vm1766, %v2040, %v2058
    %v2060 = vsel %vm1768, %v2044, %v2059
    %v2061 = vsel %vm1770, %v2048, %v2060
    %v2062 = vsel %vm1772, %v2052, %v2061
    %v2063 = vsel %vm1774, %v2056, %v2062
    %v2065 = vsel %vm1924, %v2063, 0.0
    %2066 = vadd.xlane.f32.xlu0 %v2065
    %v2067 = vpop.xlane.xlu0 %2066
    %v2068 = vlog2.pop %v2067
    %v2069 = vmul.f32 %v2068, 0.6931472
    %v2070 = vadd.f32 %v1927, %v2069
    %v2071 = vsub.f32 %v2070, 1.3862944
    %v2072 = vsub.f32 %v1577, %v2071
    %vm2073 = vcmask 7168
    %v2074 = vsel %vm2073, %v2072, 0.0
    %2075 = vadd.xlane.f32.xlu0 %v2074
    %v2076 = vpop.xlane.xlu0 %2075
    %v2077 = vrot.slane %v2076, 4
    %v2078 = vadd.f32 %v2076, %v2077
    %v2079 = vrot.slane %v2078, 2
    %v2080 = vadd.f32 %v2078, %v2079
    %v2081 = vrot.slane %v2080, 1
    %v2082 = vadd.f32 %v2080, %v2081
    %s2083 = vtos %v2082
    %v2084 = vmul.f32 %v596, 1.442695
    %v2085 = vpow.pop %v2084
    %v2086 = vlog2.pop %v2085
    %v2087 = vmul.f32 %v2086, 0.6931472
    %2089 = vrot.lane.b32.xlu0 %v2087, 32
    %v2090 = vpop.permute.xlu0 %2089
    %v2092 = vsel %vm695, %v2090, 0.0
    %2093 = vadd.xlane.f32.xlu0 %v2092
    %v2094 = vpop.xlane.xlu0 %2093
    %v2095 = vmul.f32 %v2094, -0.5
    %v2096 = vsub.f32 %v620, %v596
    %v2097 = vmul.f32 %v2096, %v2096
    %2099 = vrot.lane.b32.xlu0 %v2085, 96
    %v2100 = vpop.permute.xlu0 %2099
    %v2102 = vrcp.pop %v2100
    %v2103 = vmul.f32 %v2097, %v2102
    %2105 = vrot.lane.b32.xlu0 %v2103, 64
    %v2106 = vpop.permute.xlu0 %2105
    %v2108 = vsel %vm695, %v2106, 0.0
    %2109 = vadd.xlane.f32.xlu0 %v2108
    %v2110 = vpop.xlane.xlu0 %2109
    %v2111 = vmul.f32 %v2110, -0.5
    %v2112 = vadd.f32 %v2095, -29.406033
    %v2113 = vadd.f32 %v2112, %v2111
    %2114 = vrot.lane.b32.xlu0 %v1581, 32
    %v2115 = vpop.permute.xlu0 %2114
    %v2117 = vsel %vm1586, %v2115, 0.0
    %2118 = vadd.xlane.f32.xlu0 %v2117
    %v2119 = vpop.xlane.xlu0 %2118
    %v2120 = vmul.f32 %v2119, -0.5
    %v2121 = vmul.f32 %v620, %v620
    %2123 = vrot.lane.b32.xlu0 %v2121, 64
    %v2124 = vpop.permute.xlu0 %2123
    %2125 = vrot.lane.b32.xlu0 %v1579, 32
    %v2126 = vpop.permute.xlu0 %2125
    %v2127 = vsel %vm695, %v2124, 0
    %v2129 = vsel %vm695, %v2126, 0
    %2131 = vmatprep.subr.mxu0 0.0
    %2132 = vmatpush1.xpose.msra.mxu0 0.0
    %2133 = vmatprep.subr.mxu0 0.0
    %2134 = vmatpush1.xpose.msra.mxu0 0.0
    %2135 = vmatprep.subr.mxu0 0.0
    %2136 = vmatpush1.xpose.msra.mxu0 0.0
    %2137 = vmatprep.subr.mxu0 0.0
    %2138 = vmatpush1.xpose.msra.mxu0 0.0
    %2139 = vmatprep.subr.mxu0 0.0
    %2140 = vmatpush1.xpose.msra.mxu0 0.0
    %2141 = vmatprep.subr.mxu0 0.0
    %2142 = vmatpush1.xpose.msra.mxu0 0.0
    %2143 = vmatprep.subr.mxu0 0.0
    %2144 = vmatpush1.xpose.msra.mxu0 0.0
    %2145 = vmatprep.subr.mxu0 0.0
    %2146 = vmatpush1.xpose.msra.mxu0 0.0
    %2147 = vmatprep.subr.mxu0 0.0
    %2148 = vmatpush1.xpose.msra.mxu0 0.0
    %2149 = vmatprep.subr.mxu0 0.0
    %2150 = vmatpush1.xpose.msra.mxu0 0.0
    %2151 = vmatprep.subr.mxu0 0.0
    %2152 = vmatpush1.xpose.msra.mxu0 0.0
    %2153 = vmatprep.subr.mxu0 0.0
    %2154 = vmatpush1.xpose.msra.mxu0 0.0
    %2155 = vmatprep.subr.mxu0 0.0
    %2156 = vmatpush1.xpose.msra.mxu0 0.0
    %2157 = vmatprep.subr.mxu0 0.0
    %2158 = vmatpush1.xpose.msra.mxu0 0.0
    %2159 = vmatprep.subr.mxu0 0.0
    %2160 = vmatpush1.xpose.msra.mxu0 0.0
    %2161 = vmatprep.subr.mxu0 0.0
    %2162 = vmatpush1.xpose.msra.mxu0 %v2129
    %2163 = vmatprep.subr.mxu0 0.0
    %2164 = vmatpush2.xpose.msra.mxu0 0.0
    %2165 = vmatprep.subr.mxu0 0.0
    %2166 = vmatpush2.xpose.msra.mxu0 0.0
    %2167 = vmatprep.subr.mxu0 0.0
    %2168 = vmatpush2.xpose.msra.mxu0 0.0
    %2169 = vmatprep.subr.mxu0 0.0
    %2170 = vmatpush2.xpose.msra.mxu0 0.0
    %2171 = vmatprep.subr.mxu0 0.0
    %2172 = vmatpush2.xpose.msra.mxu0 0.0
    %2173 = vmatprep.subr.mxu0 0.0
    %2174 = vmatpush2.xpose.msra.mxu0 0.0
    %2175 = vmatprep.subr.mxu0 0.0
    %2176 = vmatpush2.xpose.msra.mxu0 0.0
    %2177 = vmatprep.subr.mxu0 0.0
    %2178 = vmatpush2.xpose.msra.mxu0 0.0
    %2179 = vmatprep.subr.mxu0 0.0
    %2180 = vmatpush2.xpose.msra.mxu0 0.0
    %2181 = vmatprep.subr.mxu0 0.0
    %2182 = vmatpush2.xpose.msra.mxu0 0.0
    %2183 = vmatprep.subr.mxu0 0.0
    %2184 = vmatpush2.xpose.msra.mxu0 0.0
    %2185 = vmatprep.subr.mxu0 0.0
    %2186 = vmatpush2.xpose.msra.mxu0 0.0
    %2187 = vmatprep.subr.mxu0 0.0
    %2188 = vmatpush2.xpose.msra.mxu0 0.0
    %2189 = vmatprep.subr.mxu0 0.0
    %2190 = vmatpush2.xpose.msra.mxu0 0.0
    %2191 = vmatprep.subr.mxu0 0.0
    %2192 = vmatpush2.xpose.msra.mxu0 0.0
    %2193 = vmatprep.subr.mxu0 0.0
    %2194 = vmatpush2.xpose.msra.mxu0 0.0
    %2195 = vmatprep.mubr.f32.mxu0 0.0
    %2196 = vmatmul.mubr.f32.gmra.mxu0 %v2127
    %v2197 = vpop.f32.mrf.mxu0
    %v2198 = vadd.f32 0.0, %v2197
    %v2199 = vpop.f32.mrf.mxu0
    %2200 = vdwg.mxu0
    %2201 = vrot.lane.b32.xlu0 %v1671, 64
    %v2202 = vpop.permute.xlu0 %2201
    %v2203 = vsel %vm695, %v623, 0
    %v2205 = vsel %vm695, %v2202, 0
    %2207 = vmatprep.subr.mxu0 0.0
    %2208 = vmatpush1.xpose.msra.mxu0 0.0
    %2209 = vmatprep.subr.mxu0 0.0
    %2210 = vmatpush1.xpose.msra.mxu0 0.0
    %2211 = vmatprep.subr.mxu0 0.0
    %2212 = vmatpush1.xpose.msra.mxu0 0.0
    %2213 = vmatprep.subr.mxu0 0.0
    %2214 = vmatpush1.xpose.msra.mxu0 0.0
    %2215 = vmatprep.subr.mxu0 0.0
    %2216 = vmatpush1.xpose.msra.mxu0 0.0
    %2217 = vmatprep.subr.mxu0 0.0
    %2218 = vmatpush1.xpose.msra.mxu0 0.0
    %2219 = vmatprep.subr.mxu0 0.0
    %2220 = vmatpush1.xpose.msra.mxu0 0.0
    %2221 = vmatprep.subr.mxu0 0.0
    %2222 = vmatpush1.xpose.msra.mxu0 0.0
    %2223 = vmatprep.subr.mxu0 0.0
    %2224 = vmatpush1.xpose.msra.mxu0 0.0
    %2225 = vmatprep.subr.mxu0 0.0
    %2226 = vmatpush1.xpose.msra.mxu0 0.0
    %2227 = vmatprep.subr.mxu0 0.0
    %2228 = vmatpush1.xpose.msra.mxu0 0.0
    %2229 = vmatprep.subr.mxu0 0.0
    %2230 = vmatpush1.xpose.msra.mxu0 0.0
    %2231 = vmatprep.subr.mxu0 0.0
    %2232 = vmatpush1.xpose.msra.mxu0 0.0
    %2233 = vmatprep.subr.mxu0 0.0
    %2234 = vmatpush1.xpose.msra.mxu0 0.0
    %2235 = vmatprep.subr.mxu0 0.0
    %2236 = vmatpush1.xpose.msra.mxu0 0.0
    %2237 = vmatprep.subr.mxu0 0.0
    %2238 = vmatpush1.xpose.msra.mxu0 %v2205
    %2239 = vmatprep.subr.mxu0 0.0
    %2240 = vmatpush2.xpose.msra.mxu0 0.0
    %2241 = vmatprep.subr.mxu0 0.0
    %2242 = vmatpush2.xpose.msra.mxu0 0.0
    %2243 = vmatprep.subr.mxu0 0.0
    %2244 = vmatpush2.xpose.msra.mxu0 0.0
    %2245 = vmatprep.subr.mxu0 0.0
    %2246 = vmatpush2.xpose.msra.mxu0 0.0
    %2247 = vmatprep.subr.mxu0 0.0
    %2248 = vmatpush2.xpose.msra.mxu0 0.0
    %2249 = vmatprep.subr.mxu0 0.0
    %2250 = vmatpush2.xpose.msra.mxu0 0.0
    %2251 = vmatprep.subr.mxu0 0.0
    %2252 = vmatpush2.xpose.msra.mxu0 0.0
    %2253 = vmatprep.subr.mxu0 0.0
    %2254 = vmatpush2.xpose.msra.mxu0 0.0
    %2255 = vmatprep.subr.mxu0 0.0
    %2256 = vmatpush2.xpose.msra.mxu0 0.0
    %2257 = vmatprep.subr.mxu0 0.0
    %2258 = vmatpush2.xpose.msra.mxu0 0.0
    %2259 = vmatprep.subr.mxu0 0.0
    %2260 = vmatpush2.xpose.msra.mxu0 0.0
    %2261 = vmatprep.subr.mxu0 0.0
    %2262 = vmatpush2.xpose.msra.mxu0 0.0
    %2263 = vmatprep.subr.mxu0 0.0
    %2264 = vmatpush2.xpose.msra.mxu0 0.0
    %2265 = vmatprep.subr.mxu0 0.0
    %2266 = vmatpush2.xpose.msra.mxu0 0.0
    %2267 = vmatprep.subr.mxu0 0.0
    %2268 = vmatpush2.xpose.msra.mxu0 0.0
    %2269 = vmatprep.subr.mxu0 0.0
    %2270 = vmatpush2.xpose.msra.mxu0 0.0
    %2271 = vmatprep.mubr.f32.mxu0 0.0
    %2272 = vmatmul.mubr.f32.gmra.mxu0 %v2203
    %v2273 = vpop.f32.mrf.mxu0
    %v2274 = vadd.f32 0.0, %v2273
    %v2275 = vpop.f32.mrf.mxu0
    %2276 = vdwg.mxu0
    %2278 = vrot.lane.b32.xlu0 %v1749, 64
    %v2279 = vpop.permute.xlu0 %2278
    %v2281 = vsel %vm1586, %v2279, 0.0
    %2282 = vadd.xlane.f32.xlu0 %v2281
    %v2283 = vpop.xlane.xlu0 %2282
    %v2284 = vadd.f32 %v2120, -29.406033
    %v2285 = vmul.f32 %v2274, 2.0
    %v2286 = vsub.f32 %v2198, %v2285
    %v2288 = vlaneseq
    %v2289 = vshrl.u32 %v2288, 7
    %v2290 = vsub.s32 %v1758, %v2289
    %v2291 = vrot.slane %v2283, %v2290
    %v2292 = vsel %vm1764, %v2291, %v2291
    %v2293 = vsel %vm1766, %v2291, %v2292
    %v2294 = vsel %vm1768, %v2291, %v2293
    %v2295 = vsel %vm1770, %v2291, %v2294
    %v2296 = vsel %vm1772, %v2291, %v2295
    %v2297 = vsel %vm1774, %v2291, %v2296
    %v2299 = vadd.f32 %v2286, %v2297
    %v2300 = vmul.f32 %v2299, 0.5
    %v2302 = vlaneseq
    %v2303 = vshrl.u32 %v2302, 7
    %v2304 = vsub.s32 0, %v2303
    %v2305 = vrot.slane %v2300, %v2304
    %2307 = vbcast.lane.b32.xlu0 %v2305, 256
    %v2308 = vpop.permute.xlu0 %2307
    %v2309 = vlaneseq
    %v2310 = vshrl.u32 %v2309, 7
    %v2311 = vsub.s32 1, %v2310
    %v2312 = vrot.slane %v2300, %v2311
    %2314 = vbcast.lane.b32.xlu0 %v2312, 256
    %v2315 = vpop.permute.xlu0 %2314
    %v2316 = vlaneseq
    %v2317 = vshrl.u32 %v2316, 7
    %v2318 = vsub.s32 2, %v2317
    %v2319 = vrot.slane %v2300, %v2318
    %2321 = vbcast.lane.b32.xlu0 %v2319, 256
    %v2322 = vpop.permute.xlu0 %2321
    %v2323 = vlaneseq
    %v2324 = vshrl.u32 %v2323, 7
    %v2325 = vsub.s32 3, %v2324
    %v2326 = vrot.slane %v2300, %v2325
    %2328 = vbcast.lane.b32.xlu0 %v2326, 256
    %v2329 = vpop.permute.xlu0 %2328
    %v2330 = vlaneseq
    %v2331 = vshrl.u32 %v2330, 7
    %v2332 = vsub.s32 4, %v2331
    %v2333 = vrot.slane %v2300, %v2332
    %2335 = vbcast.lane.b32.xlu0 %v2333, 256
    %v2336 = vpop.permute.xlu0 %2335
    %v2337 = vlaneseq
    %v2338 = vshrl.u32 %v2337, 7
    %v2339 = vsub.s32 5, %v2338
    %v2340 = vrot.slane %v2300, %v2339
    %2342 = vbcast.lane.b32.xlu0 %v2340, 256
    %v2343 = vpop.permute.xlu0 %2342
    %v2344 = vlaneseq
    %v2345 = vshrl.u32 %v2344, 7
    %v2346 = vsub.s32 6, %v2345
    %v2347 = vrot.slane %v2300, %v2346
    %2349 = vbcast.lane.b32.xlu0 %v2347, 256
    %v2350 = vpop.permute.xlu0 %2349
    %v2351 = vlaneseq
    %v2352 = vshrl.u32 %v2351, 7
    %v2353 = vsub.s32 7, %v2352
    %v2354 = vrot.slane %v2300, %v2353
    %2356 = vbcast.lane.b32.xlu0 %v2354, 256
    %v2357 = vpop.permute.xlu0 %2356
    %v2366 = vsub.f32 %v2284, %v2308
    %v2367 = vsub.f32 %v2284, %v2315
    %v2368 = vsub.f32 %v2284, %v2322
    %v2369 = vsub.f32 %v2284, %v2329
    %v2370 = vsub.f32 %v2284, %v2336
    %v2371 = vsub.f32 %v2284, %v2343
    %v2372 = vsub.f32 %v2284, %v2350
    %v2373 = vsub.f32 %v2284, %v2357
    %2382 = vset.pattern.permute.xlu0 0
    %2383 = vperm.xlu0 %2382, %v2366
    %v2384 = vpop.permute.xlu0 %2383
    %2385 = vset.pattern.permute.xlu0 0
    %2386 = vperm.xlu0 %2385, %v2367
    %v2387 = vpop.permute.xlu0 %2386
    %2388 = vset.pattern.permute.xlu0 0
    %2389 = vperm.xlu0 %2388, %v2368
    %v2390 = vpop.permute.xlu0 %2389
    %2391 = vset.pattern.permute.xlu0 0
    %2392 = vperm.xlu0 %2391, %v2369
    %v2393 = vpop.permute.xlu0 %2392
    %2394 = vset.pattern.permute.xlu0 0
    %2395 = vperm.xlu0 %2394, %v2370
    %v2396 = vpop.permute.xlu0 %2395
    %2397 = vset.pattern.permute.xlu0 0
    %2398 = vperm.xlu0 %2397, %v2371
    %v2399 = vpop.permute.xlu0 %2398
    %2400 = vset.pattern.permute.xlu0 0
    %2401 = vperm.xlu0 %2400, %v2372
    %v2402 = vpop.permute.xlu0 %2401
    %2403 = vset.pattern.permute.xlu0 0
    %2404 = vperm.xlu0 %2403, %v2373
    %v2405 = vpop.permute.xlu0 %2404
    %v2406 = vlaneseq
    %v2407 = vshrl.u32 %v2406, 7
    %v2408 = vsub.s32 %v1758, %v2407
    %v2409 = vrot.slane %v2384, %v2408
    %v2410 = vlaneseq
    %v2411 = vshrl.u32 %v2410, 7
    %v2412 = vsub.s32 %v1758, %v2411
    %v2413 = vrot.slane %v2387, %v2412
    %v2414 = vlaneseq
    %v2415 = vshrl.u32 %v2414, 7
    %v2416 = vsub.s32 %v1758, %v2415
    %v2417 = vrot.slane %v2390, %v2416
    %v2418 = vlaneseq
    %v2419 = vshrl.u32 %v2418, 7
    %v2420 = vsub.s32 %v1758, %v2419
    %v2421 = vrot.slane %v2393, %v2420
    %v2422 = vlaneseq
    %v2423 = vshrl.u32 %v2422, 7
    %v2424 = vsub.s32 %v1758, %v2423
    %v2425 = vrot.slane %v2396, %v2424
    %v2426 = vlaneseq
    %v2427 = vshrl.u32 %v2426, 7
    %v2428 = vsub.s32 %v1758, %v2427
    %v2429 = vrot.slane %v2399, %v2428
    %v2430 = vlaneseq
    %v2431 = vshrl.u32 %v2430, 7
    %v2432 = vsub.s32 %v1758, %v2431
    %v2433 = vrot.slane %v2402, %v2432
    %v2434 = vlaneseq
    %v2435 = vshrl.u32 %v2434, 7
    %v2436 = vsub.s32 %v1758, %v2435
    %v2437 = vrot.slane %v2405, %v2436
    %v2438 = vsel %vm1763, %v2413, %v2409
    %v2439 = vsel %vm1764, %v2417, %v2438
    %v2440 = vsel %vm1766, %v2421, %v2439
    %v2441 = vsel %vm1768, %v2425, %v2440
    %v2442 = vsel %vm1770, %v2429, %v2441
    %v2443 = vsel %vm1772, %v2433, %v2442
    %v2444 = vsel %vm1774, %v2437, %v2443
    %v2446 = vsel %vm1924, %v2444, -inf
    %2447 = vmax.xlane.f32.xlu0 %v2446
    %v2448 = vpop.xlane.xlu0 %2447
    %v2450 = vlaneseq
    %v2451 = vshrl.u32 %v2450, 7
    %v2452 = vsub.s32 0, %v2451
    %v2453 = vrot.slane %v2448, %v2452
    %v2454 = vlaneseq
    %v2455 = vshrl.u32 %v2454, 7
    %v2456 = vsub.s32 1, %v2455
    %v2457 = vrot.slane %v2448, %v2456
    %v2458 = vlaneseq
    %v2459 = vshrl.u32 %v2458, 7
    %v2460 = vsub.s32 2, %v2459
    %v2461 = vrot.slane %v2448, %v2460
    %v2462 = vlaneseq
    %v2463 = vshrl.u32 %v2462, 7
    %v2464 = vsub.s32 3, %v2463
    %v2465 = vrot.slane %v2448, %v2464
    %v2466 = vlaneseq
    %v2467 = vshrl.u32 %v2466, 7
    %v2468 = vsub.s32 4, %v2467
    %v2469 = vrot.slane %v2448, %v2468
    %v2470 = vlaneseq
    %v2471 = vshrl.u32 %v2470, 7
    %v2472 = vsub.s32 5, %v2471
    %v2473 = vrot.slane %v2448, %v2472
    %v2474 = vlaneseq
    %v2475 = vshrl.u32 %v2474, 7
    %v2476 = vsub.s32 6, %v2475
    %v2477 = vrot.slane %v2448, %v2476
    %v2478 = vlaneseq
    %v2479 = vshrl.u32 %v2478, 7
    %v2480 = vsub.s32 7, %v2479
    %v2481 = vrot.slane %v2448, %v2480
    %v2490 = vsub.f32 %v2366, %v2453
    %v2491 = vsub.f32 %v2367, %v2457
    %v2492 = vsub.f32 %v2368, %v2461
    %v2493 = vsub.f32 %v2369, %v2465
    %v2494 = vsub.f32 %v2370, %v2469
    %v2495 = vsub.f32 %v2371, %v2473
    %v2496 = vsub.f32 %v2372, %v2477
    %v2497 = vsub.f32 %v2373, %v2481
    %v2498 = vmul.f32 %v2490, 1.442695
    %v2499 = vpow.pop %v2498
    %v2500 = vmul.f32 %v2491, 1.442695
    %v2501 = vpow.pop %v2500
    %v2502 = vmul.f32 %v2492, 1.442695
    %v2503 = vpow.pop %v2502
    %v2504 = vmul.f32 %v2493, 1.442695
    %v2505 = vpow.pop %v2504
    %v2506 = vmul.f32 %v2494, 1.442695
    %v2507 = vpow.pop %v2506
    %v2508 = vmul.f32 %v2495, 1.442695
    %v2509 = vpow.pop %v2508
    %v2510 = vmul.f32 %v2496, 1.442695
    %v2511 = vpow.pop %v2510
    %v2512 = vmul.f32 %v2497, 1.442695
    %v2513 = vpow.pop %v2512
    %2522 = vset.pattern.permute.xlu0 0
    %2523 = vperm.xlu0 %2522, %v2499
    %v2524 = vpop.permute.xlu0 %2523
    %2525 = vset.pattern.permute.xlu0 0
    %2526 = vperm.xlu0 %2525, %v2501
    %v2527 = vpop.permute.xlu0 %2526
    %2528 = vset.pattern.permute.xlu0 0
    %2529 = vperm.xlu0 %2528, %v2503
    %v2530 = vpop.permute.xlu0 %2529
    %2531 = vset.pattern.permute.xlu0 0
    %2532 = vperm.xlu0 %2531, %v2505
    %v2533 = vpop.permute.xlu0 %2532
    %2534 = vset.pattern.permute.xlu0 0
    %2535 = vperm.xlu0 %2534, %v2507
    %v2536 = vpop.permute.xlu0 %2535
    %2537 = vset.pattern.permute.xlu0 0
    %2538 = vperm.xlu0 %2537, %v2509
    %v2539 = vpop.permute.xlu0 %2538
    %2540 = vset.pattern.permute.xlu0 0
    %2541 = vperm.xlu0 %2540, %v2511
    %v2542 = vpop.permute.xlu0 %2541
    %2543 = vset.pattern.permute.xlu0 0
    %2544 = vperm.xlu0 %2543, %v2513
    %v2545 = vpop.permute.xlu0 %2544
    %v2546 = vlaneseq
    %v2547 = vshrl.u32 %v2546, 7
    %v2548 = vsub.s32 %v1758, %v2547
    %v2549 = vrot.slane %v2524, %v2548
    %v2550 = vlaneseq
    %v2551 = vshrl.u32 %v2550, 7
    %v2552 = vsub.s32 %v1758, %v2551
    %v2553 = vrot.slane %v2527, %v2552
    %v2554 = vlaneseq
    %v2555 = vshrl.u32 %v2554, 7
    %v2556 = vsub.s32 %v1758, %v2555
    %v2557 = vrot.slane %v2530, %v2556
    %v2558 = vlaneseq
    %v2559 = vshrl.u32 %v2558, 7
    %v2560 = vsub.s32 %v1758, %v2559
    %v2561 = vrot.slane %v2533, %v2560
    %v2562 = vlaneseq
    %v2563 = vshrl.u32 %v2562, 7
    %v2564 = vsub.s32 %v1758, %v2563
    %v2565 = vrot.slane %v2536, %v2564
    %v2566 = vlaneseq
    %v2567 = vshrl.u32 %v2566, 7
    %v2568 = vsub.s32 %v1758, %v2567
    %v2569 = vrot.slane %v2539, %v2568
    %v2570 = vlaneseq
    %v2571 = vshrl.u32 %v2570, 7
    %v2572 = vsub.s32 %v1758, %v2571
    %v2573 = vrot.slane %v2542, %v2572
    %v2574 = vlaneseq
    %v2575 = vshrl.u32 %v2574, 7
    %v2576 = vsub.s32 %v1758, %v2575
    %v2577 = vrot.slane %v2545, %v2576
    %v2578 = vsel %vm1763, %v2553, %v2549
    %v2579 = vsel %vm1764, %v2557, %v2578
    %v2580 = vsel %vm1766, %v2561, %v2579
    %v2581 = vsel %vm1768, %v2565, %v2580
    %v2582 = vsel %vm1770, %v2569, %v2581
    %v2583 = vsel %vm1772, %v2573, %v2582
    %v2584 = vsel %vm1774, %v2577, %v2583
    %v2586 = vsel %vm1924, %v2584, 0.0
    %2587 = vadd.xlane.f32.xlu0 %v2586
    %v2588 = vpop.xlane.xlu0 %2587
    %v2589 = vlog2.pop %v2588
    %v2590 = vmul.f32 %v2589, 0.6931472
    %v2591 = vadd.f32 %v2448, %v2590
    %v2592 = vsub.f32 %v2591, 1.3862944
    %v2593 = vsub.f32 %v2113, %v2592
    %v2594 = vsel %vm2073, %v2593, 0.0
    %2595 = vadd.xlane.f32.xlu0 %v2594
    %v2596 = vpop.xlane.xlu0 %2595
    %v2597 = vrot.slane %v2596, 4
    %v2598 = vadd.f32 %v2596, %v2597
    %v2599 = vrot.slane %v2598, 2
    %v2600 = vadd.f32 %v2598, %v2599
    %v2601 = vrot.slane %v2600, 1
    %v2602 = vadd.f32 %v2600, %v2601
    %s2603 = vtos %v2602
    %2605 = vrot.lane.b32.xlu0 %v1535, 64
    %v2606 = vpop.permute.xlu0 %2605
    %v2608 = vsub.f32 %v607, %v2606
    %v2609 = vmul.f32 %v2608, %v2608
    %v2610 = vsel %vm695, %v2609, 0.0
    %2611 = vadd.xlane.f32.xlu0 %v2610
    %v2612 = vpop.xlane.xlu0 %2611
    %v2613 = vrot.slane %v2612, 4
    %v2614 = vadd.f32 %v2612, %v2613
    %v2615 = vrot.slane %v2614, 2
    %v2616 = vadd.f32 %v2614, %v2615
    %v2617 = vrot.slane %v2616, 1
    %v2618 = vadd.f32 %v2616, %v2617
    %s2619 = vtos %v2618
    %v2620 = vstv %s2619
    %v2621 = vrsqrt.pop %v2620
    %v2622 = vmul.f32 %v2620, %v2621
    %vm2623 = vcmp.eq.f32.partialorder %v2620, inf
    %v2624 = vsel %vm2623, %v2620, %v2622
    %vm2625 = vcmp.eq.f32.partialorder %v2620, 0.0
    %v2626 = vand.u32 %v2620, 2147483648
    %v2627 = vsel %vm2625, %v2626, %v2624
    %s2628 = vtos %v2627
    %2629 = vrot.lane.b32.xlu0 %v1526, 64
    %v2630 = vpop.permute.xlu0 %2629
    %v2632 = vsub.f32 %v620, %v2630
    %v2633 = vmul.f32 %v2632, %v2632
    %2635 = vrot.lane.b32.xlu0 %v2633, 64
    %v2636 = vpop.permute.xlu0 %2635
    %v2638 = vsel %vm695, %v2636, 0.0
    %2639 = vadd.xlane.f32.xlu0 %v2638
    %v2640 = vpop.xlane.xlu0 %2639
    %v2641 = vrot.slane %v2640, 4
    %v2642 = vadd.f32 %v2640, %v2641
    %v2643 = vrot.slane %v2642, 2
    %v2644 = vadd.f32 %v2642, %v2643
    %v2645 = vrot.slane %v2644, 1
    %v2646 = vadd.f32 %v2644, %v2645
    %s2647 = vtos %v2646
    %v2648 = vstv %s2647
    %v2649 = vrsqrt.pop %v2648
    %v2650 = vmul.f32 %v2648, %v2649
    %vm2651 = vcmp.eq.f32.partialorder %v2648, inf
    %v2652 = vsel %vm2651, %v2648, %v2650
    %vm2653 = vcmp.eq.f32.partialorder %v2648, 0.0
    %v2654 = vand.u32 %v2648, 2147483648
    %v2655 = vsel %vm2653, %v2654, %v2652
    %s2656 = vtos %v2655
    %v2657 = vmul.f32 %v596, %v596
    %2659 = vrot.lane.b32.xlu0 %v2657, 64
    %v2660 = vpop.permute.xlu0 %2659
    %v2662 = vsel %vm695, %v2660, 0.0
    %2663 = vadd.xlane.f32.xlu0 %v2662
    %v2664 = vpop.xlane.xlu0 %2663
    %v2666 = vlaneseq
    %v2667 = vshrl.u32 %v2666, 7
    %v2668 = vsub.s32 %v1758, %v2667
    %v2669 = vrot.slane %v2664, %v2668
    %v2670 = vsel %vm1764, %v2669, %v2669
    %v2671 = vsel %vm1766, %v2669, %v2670
    %v2672 = vsel %vm1768, %v2669, %v2671
    %v2673 = vsel %vm1770, %v2669, %v2672
    %v2674 = vsel %vm1772, %v2669, %v2673
    %v2675 = vsel %vm1774, %v2669, %v2674
    %v2677 = vadd.f32 %v2664, %v2675
    %2679 = vrot.lane.b32.xlu0 %v596, 64
    %v2680 = vpop.permute.xlu0 %2679
    %v2681 = vsel %vm695, %v2680, 0
    %2683 = vmatprep.subr.mxu0 0.0
    %2684 = vmatpush1.xpose.msra.mxu0 0.0
    %2685 = vmatprep.subr.mxu0 0.0
    %2686 = vmatpush1.xpose.msra.mxu0 0.0
    %2687 = vmatprep.subr.mxu0 0.0
    %2688 = vmatpush1.xpose.msra.mxu0 0.0
    %2689 = vmatprep.subr.mxu0 0.0
    %2690 = vmatpush1.xpose.msra.mxu0 0.0
    %2691 = vmatprep.subr.mxu0 0.0
    %2692 = vmatpush1.xpose.msra.mxu0 0.0
    %2693 = vmatprep.subr.mxu0 0.0
    %2694 = vmatpush1.xpose.msra.mxu0 0.0
    %2695 = vmatprep.subr.mxu0 0.0
    %2696 = vmatpush1.xpose.msra.mxu0 0.0
    %2697 = vmatprep.subr.mxu0 0.0
    %2698 = vmatpush1.xpose.msra.mxu0 0.0
    %2699 = vmatprep.subr.mxu0 0.0
    %2700 = vmatpush1.xpose.msra.mxu0 0.0
    %2701 = vmatprep.subr.mxu0 0.0
    %2702 = vmatpush1.xpose.msra.mxu0 0.0
    %2703 = vmatprep.subr.mxu0 0.0
    %2704 = vmatpush1.xpose.msra.mxu0 0.0
    %2705 = vmatprep.subr.mxu0 0.0
    %2706 = vmatpush1.xpose.msra.mxu0 0.0
    %2707 = vmatprep.subr.mxu0 0.0
    %2708 = vmatpush1.xpose.msra.mxu0 0.0
    %2709 = vmatprep.subr.mxu0 0.0
    %2710 = vmatpush1.xpose.msra.mxu0 0.0
    %2711 = vmatprep.subr.mxu0 0.0
    %2712 = vmatpush1.xpose.msra.mxu0 0.0
    %2713 = vmatprep.subr.mxu0 0.0
    %2714 = vmatpush1.xpose.msra.mxu0 %v2681
    %2715 = vmatprep.subr.mxu0 0.0
    %2716 = vmatpush2.xpose.msra.mxu0 0.0
    %2717 = vmatprep.subr.mxu0 0.0
    %2718 = vmatpush2.xpose.msra.mxu0 0.0
    %2719 = vmatprep.subr.mxu0 0.0
    %2720 = vmatpush2.xpose.msra.mxu0 0.0
    %2721 = vmatprep.subr.mxu0 0.0
    %2722 = vmatpush2.xpose.msra.mxu0 0.0
    %2723 = vmatprep.subr.mxu0 0.0
    %2724 = vmatpush2.xpose.msra.mxu0 0.0
    %2725 = vmatprep.subr.mxu0 0.0
    %2726 = vmatpush2.xpose.msra.mxu0 0.0
    %2727 = vmatprep.subr.mxu0 0.0
    %2728 = vmatpush2.xpose.msra.mxu0 0.0
    %2729 = vmatprep.subr.mxu0 0.0
    %2730 = vmatpush2.xpose.msra.mxu0 0.0
    %2731 = vmatprep.subr.mxu0 0.0
    %2732 = vmatpush2.xpose.msra.mxu0 0.0
    %2733 = vmatprep.subr.mxu0 0.0
    %2734 = vmatpush2.xpose.msra.mxu0 0.0
    %2735 = vmatprep.subr.mxu0 0.0
    %2736 = vmatpush2.xpose.msra.mxu0 0.0
    %2737 = vmatprep.subr.mxu0 0.0
    %2738 = vmatpush2.xpose.msra.mxu0 0.0
    %2739 = vmatprep.subr.mxu0 0.0
    %2740 = vmatpush2.xpose.msra.mxu0 0.0
    %2741 = vmatprep.subr.mxu0 0.0
    %2742 = vmatpush2.xpose.msra.mxu0 0.0
    %2743 = vmatprep.subr.mxu0 0.0
    %2744 = vmatpush2.xpose.msra.mxu0 0.0
    %2745 = vmatprep.subr.mxu0 0.0
    %2746 = vmatpush2.xpose.msra.mxu0 0.0
    %2747 = vmatprep.mubr.f32.mxu0 0.0
    %2748 = vmatmul.mubr.f32.gmra.mxu0 %v2681
    %v2749 = vpop.f32.mrf.mxu0
    %v2750 = vadd.f32 0.0, %v2749
    %v2751 = vpop.f32.mrf.mxu0
    %2752 = vdwg.mxu0
    %v2753 = vmul.f32 %v2750, 2.0
    %v2754 = vsub.f32 %v2677, %v2753
    %v2755 = vmax.f32 %v2754, 0.0
    %v2756 = vmul.f32 %v610, %v610
    %2758 = vrot.lane.b32.xlu0 %v2756, 32
    %v2759 = vpop.permute.xlu0 %2758
    %v2761 = vsel %vm695, %v2759, 0.0
    %2762 = vadd.xlane.f32.xlu0 %v2761
    %v2763 = vpop.xlane.xlu0 %2762
    %v2765 = vlaneseq
    %v2766 = vshrl.u32 %v2765, 7
    %v2767 = vsub.s32 %v1758, %v2766
    %v2768 = vrot.slane %v2763, %v2767
    %v2769 = vsel %vm1764, %v2768, %v2768
    %v2770 = vsel %vm1766, %v2768, %v2769
    %v2771 = vsel %vm1768, %v2768, %v2770
    %v2772 = vsel %vm1770, %v2768, %v2771
    %v2773 = vsel %vm1772, %v2768, %v2772
    %v2774 = vsel %vm1774, %v2768, %v2773
    %v2776 = vadd.f32 %v2763, %v2774
    %2777 = vrot.lane.b32.xlu0 %v610, 32
    %v2778 = vpop.permute.xlu0 %2777
    %v2779 = vsel %vm695, %v2778, 0
    %2781 = vmatprep.subr.mxu0 0.0
    %2782 = vmatpush1.xpose.msra.mxu0 0.0
    %2783 = vmatprep.subr.mxu0 0.0
    %2784 = vmatpush1.xpose.msra.mxu0 0.0
    %2785 = vmatprep.subr.mxu0 0.0
    %2786 = vmatpush1.xpose.msra.mxu0 0.0
    %2787 = vmatprep.subr.mxu0 0.0
    %2788 = vmatpush1.xpose.msra.mxu0 0.0
    %2789 = vmatprep.subr.mxu0 0.0
    %2790 = vmatpush1.xpose.msra.mxu0 0.0
    %2791 = vmatprep.subr.mxu0 0.0
    %2792 = vmatpush1.xpose.msra.mxu0 0.0
    %2793 = vmatprep.subr.mxu0 0.0
    %2794 = vmatpush1.xpose.msra.mxu0 0.0
    %2795 = vmatprep.subr.mxu0 0.0
    %2796 = vmatpush1.xpose.msra.mxu0 0.0
    %2797 = vmatprep.subr.mxu0 0.0
    %2798 = vmatpush1.xpose.msra.mxu0 0.0
    %2799 = vmatprep.subr.mxu0 0.0
    %2800 = vmatpush1.xpose.msra.mxu0 0.0
    %2801 = vmatprep.subr.mxu0 0.0
    %2802 = vmatpush1.xpose.msra.mxu0 0.0
    %2803 = vmatprep.subr.mxu0 0.0
    %2804 = vmatpush1.xpose.msra.mxu0 0.0
    %2805 = vmatprep.subr.mxu0 0.0
    %2806 = vmatpush1.xpose.msra.mxu0 0.0
    %2807 = vmatprep.subr.mxu0 0.0
    %2808 = vmatpush1.xpose.msra.mxu0 0.0
    %2809 = vmatprep.subr.mxu0 0.0
    %2810 = vmatpush1.xpose.msra.mxu0 0.0
    %2811 = vmatprep.subr.mxu0 0.0
    %2812 = vmatpush1.xpose.msra.mxu0 %v2779
    %2813 = vmatprep.subr.mxu0 0.0
    %2814 = vmatpush2.xpose.msra.mxu0 0.0
    %2815 = vmatprep.subr.mxu0 0.0
    %2816 = vmatpush2.xpose.msra.mxu0 0.0
    %2817 = vmatprep.subr.mxu0 0.0
    %2818 = vmatpush2.xpose.msra.mxu0 0.0
    %2819 = vmatprep.subr.mxu0 0.0
    %2820 = vmatpush2.xpose.msra.mxu0 0.0
    %2821 = vmatprep.subr.mxu0 0.0
    %2822 = vmatpush2.xpose.msra.mxu0 0.0
    %2823 = vmatprep.subr.mxu0 0.0
    %2824 = vmatpush2.xpose.msra.mxu0 0.0
    %2825 = vmatprep.subr.mxu0 0.0
    %2826 = vmatpush2.xpose.msra.mxu0 0.0
    %2827 = vmatprep.subr.mxu0 0.0
    %2828 = vmatpush2.xpose.msra.mxu0 0.0
    %2829 = vmatprep.subr.mxu0 0.0
    %2830 = vmatpush2.xpose.msra.mxu0 0.0
    %2831 = vmatprep.subr.mxu0 0.0
    %2832 = vmatpush2.xpose.msra.mxu0 0.0
    %2833 = vmatprep.subr.mxu0 0.0
    %2834 = vmatpush2.xpose.msra.mxu0 0.0
    %2835 = vmatprep.subr.mxu0 0.0
    %2836 = vmatpush2.xpose.msra.mxu0 0.0
    %2837 = vmatprep.subr.mxu0 0.0
    %2838 = vmatpush2.xpose.msra.mxu0 0.0
    %2839 = vmatprep.subr.mxu0 0.0
    %2840 = vmatpush2.xpose.msra.mxu0 0.0
    %2841 = vmatprep.subr.mxu0 0.0
    %2842 = vmatpush2.xpose.msra.mxu0 0.0
    %2843 = vmatprep.subr.mxu0 0.0
    %2844 = vmatpush2.xpose.msra.mxu0 0.0
    %2845 = vmatprep.mubr.f32.mxu0 0.0
    %2846 = vmatmul.mubr.f32.gmra.mxu0 %v2779
    %v2847 = vpop.f32.mrf.mxu0
    %v2848 = vadd.f32 0.0, %v2847
    %v2849 = vpop.f32.mrf.mxu0
    %2850 = vdwg.mxu0
    %v2851 = vmul.f32 %v2848, 2.0
    %v2852 = vsub.f32 %v2776, %v2851
    %v2853 = vmax.f32 %v2852, 0.0
    %v2854 = vadd.f32 %v2755, %v2853
    %v2855 = vadd.f32 %v2854, 1e-06
    %v2856 = vmul.f32 %v593, %v593
    %v2857 = vsel %vm695, %v2856, 0.0
    %2858 = vadd.xlane.f32.xlu0 %v2857
    %v2859 = vpop.xlane.xlu0 %2858
    %v2861 = vlaneseq
    %v2862 = vshrl.u32 %v2861, 7
    %v2863 = vsub.s32 %v1758, %v2862
    %v2864 = vrot.slane %v2859, %v2863
    %v2865 = vsel %vm1764, %v2864, %v2864
    %v2866 = vsel %vm1766, %v2864, %v2865
    %v2867 = vsel %vm1768, %v2864, %v2866
    %v2868 = vsel %vm1770, %v2864, %v2867
    %v2869 = vsel %vm1772, %v2864, %v2868
    %v2870 = vsel %vm1774, %v2864, %v2869
    %v2872 = vadd.f32 %v2859, %v2870
    %v2874 = vsel %vm695, %v593, 0
    %2876 = vmatprep.subr.mxu0 0.0
    %2877 = vmatpush1.xpose.msra.mxu0 0.0
    %2878 = vmatprep.subr.mxu0 0.0
    %2879 = vmatpush1.xpose.msra.mxu0 0.0
    %2880 = vmatprep.subr.mxu0 0.0
    %2881 = vmatpush1.xpose.msra.mxu0 0.0
    %2882 = vmatprep.subr.mxu0 0.0
    %2883 = vmatpush1.xpose.msra.mxu0 0.0
    %2884 = vmatprep.subr.mxu0 0.0
    %2885 = vmatpush1.xpose.msra.mxu0 0.0
    %2886 = vmatprep.subr.mxu0 0.0
    %2887 = vmatpush1.xpose.msra.mxu0 0.0
    %2888 = vmatprep.subr.mxu0 0.0
    %2889 = vmatpush1.xpose.msra.mxu0 0.0
    %2890 = vmatprep.subr.mxu0 0.0
    %2891 = vmatpush1.xpose.msra.mxu0 0.0
    %2892 = vmatprep.subr.mxu0 0.0
    %2893 = vmatpush1.xpose.msra.mxu0 0.0
    %2894 = vmatprep.subr.mxu0 0.0
    %2895 = vmatpush1.xpose.msra.mxu0 0.0
    %2896 = vmatprep.subr.mxu0 0.0
    %2897 = vmatpush1.xpose.msra.mxu0 0.0
    %2898 = vmatprep.subr.mxu0 0.0
    %2899 = vmatpush1.xpose.msra.mxu0 0.0
    %2900 = vmatprep.subr.mxu0 0.0
    %2901 = vmatpush1.xpose.msra.mxu0 0.0
    %2902 = vmatprep.subr.mxu0 0.0
    %2903 = vmatpush1.xpose.msra.mxu0 0.0
    %2904 = vmatprep.subr.mxu0 0.0
    %2905 = vmatpush1.xpose.msra.mxu0 0.0
    %2906 = vmatprep.subr.mxu0 0.0
    %2907 = vmatpush1.xpose.msra.mxu0 %v2874
    %2908 = vmatprep.subr.mxu0 0.0
    %2909 = vmatpush2.xpose.msra.mxu0 0.0
    %2910 = vmatprep.subr.mxu0 0.0
    %2911 = vmatpush2.xpose.msra.mxu0 0.0
    %2912 = vmatprep.subr.mxu0 0.0
    %2913 = vmatpush2.xpose.msra.mxu0 0.0
    %2914 = vmatprep.subr.mxu0 0.0
    %2915 = vmatpush2.xpose.msra.mxu0 0.0
    %2916 = vmatprep.subr.mxu0 0.0
    %2917 = vmatpush2.xpose.msra.mxu0 0.0
    %2918 = vmatprep.subr.mxu0 0.0
    %2919 = vmatpush2.xpose.msra.mxu0 0.0
    %2920 = vmatprep.subr.mxu0 0.0
    %2921 = vmatpush2.xpose.msra.mxu0 0.0
    %2922 = vmatprep.subr.mxu0 0.0
    %2923 = vmatpush2.xpose.msra.mxu0 0.0
    %2924 = vmatprep.subr.mxu0 0.0
    %2925 = vmatpush2.xpose.msra.mxu0 0.0
    %2926 = vmatprep.subr.mxu0 0.0
    %2927 = vmatpush2.xpose.msra.mxu0 0.0
    %2928 = vmatprep.subr.mxu0 0.0
    %2929 = vmatpush2.xpose.msra.mxu0 0.0
    %2930 = vmatprep.subr.mxu0 0.0
    %2931 = vmatpush2.xpose.msra.mxu0 0.0
    %2932 = vmatprep.subr.mxu0 0.0
    %2933 = vmatpush2.xpose.msra.mxu0 0.0
    %2934 = vmatprep.subr.mxu0 0.0
    %2935 = vmatpush2.xpose.msra.mxu0 0.0
    %2936 = vmatprep.subr.mxu0 0.0
    %2937 = vmatpush2.xpose.msra.mxu0 0.0
    %2938 = vmatprep.subr.mxu0 0.0
    %2939 = vmatpush2.xpose.msra.mxu0 0.0
    %2940 = vmatprep.mubr.f32.mxu0 0.0
    %2941 = vmatmul.mubr.f32.gmra.mxu0 %v2874
    %v2942 = vpop.f32.mrf.mxu0
    %v2943 = vadd.f32 0.0, %v2942
    %v2944 = vpop.f32.mrf.mxu0
    %2945 = vdwg.mxu0
    %v2946 = vmul.f32 %v2943, 2.0
    %v2947 = vsub.f32 %v2872, %v2946
    %v2948 = vmax.f32 %v2947, 0.0
    %v2949 = vmul.f32 %v601, %v601
    %2951 = vrot.lane.b32.xlu0 %v2949, 96
    %v2952 = vpop.permute.xlu0 %2951
    %v2954 = vsel %vm695, %v2952, 0.0
    %2955 = vadd.xlane.f32.xlu0 %v2954
    %v2956 = vpop.xlane.xlu0 %2955
    %v2958 = vlaneseq
    %v2959 = vshrl.u32 %v2958, 7
    %v2960 = vsub.s32 %v1758, %v2959
    %v2961 = vrot.slane %v2956, %v2960
    %v2962 = vsel %vm1764, %v2961, %v2961
    %v2963 = vsel %vm1766, %v2961, %v2962
    %v2964 = vsel %vm1768, %v2961, %v2963
    %v2965 = vsel %vm1770, %v2961, %v2964
    %v2966 = vsel %vm1772, %v2961, %v2965
    %v2967 = vsel %vm1774, %v2961, %v2966
    %v2969 = vadd.f32 %v2956, %v2967
    %v2970 = vsel %vm695, %v604, 0
    %2972 = vmatprep.subr.mxu0 0.0
    %2973 = vmatpush1.xpose.msra.mxu0 0.0
    %2974 = vmatprep.subr.mxu0 0.0
    %2975 = vmatpush1.xpose.msra.mxu0 0.0
    %2976 = vmatprep.subr.mxu0 0.0
    %2977 = vmatpush1.xpose.msra.mxu0 0.0
    %2978 = vmatprep.subr.mxu0 0.0
    %2979 = vmatpush1.xpose.msra.mxu0 0.0
    %2980 = vmatprep.subr.mxu0 0.0
    %2981 = vmatpush1.xpose.msra.mxu0 0.0
    %2982 = vmatprep.subr.mxu0 0.0
    %2983 = vmatpush1.xpose.msra.mxu0 0.0
    %2984 = vmatprep.subr.mxu0 0.0
    %2985 = vmatpush1.xpose.msra.mxu0 0.0
    %2986 = vmatprep.subr.mxu0 0.0
    %2987 = vmatpush1.xpose.msra.mxu0 0.0
    %2988 = vmatprep.subr.mxu0 0.0
    %2989 = vmatpush1.xpose.msra.mxu0 0.0
    %2990 = vmatprep.subr.mxu0 0.0
    %2991 = vmatpush1.xpose.msra.mxu0 0.0
    %2992 = vmatprep.subr.mxu0 0.0
    %2993 = vmatpush1.xpose.msra.mxu0 0.0
    %2994 = vmatprep.subr.mxu0 0.0
    %2995 = vmatpush1.xpose.msra.mxu0 0.0
    %2996 = vmatprep.subr.mxu0 0.0
    %2997 = vmatpush1.xpose.msra.mxu0 0.0
    %2998 = vmatprep.subr.mxu0 0.0
    %2999 = vmatpush1.xpose.msra.mxu0 0.0
    %3000 = vmatprep.subr.mxu0 0.0
    %3001 = vmatpush1.xpose.msra.mxu0 0.0
    %3002 = vmatprep.subr.mxu0 0.0
    %3003 = vmatpush1.xpose.msra.mxu0 %v2970
    %3004 = vmatprep.subr.mxu0 0.0
    %3005 = vmatpush2.xpose.msra.mxu0 0.0
    %3006 = vmatprep.subr.mxu0 0.0
    %3007 = vmatpush2.xpose.msra.mxu0 0.0
    %3008 = vmatprep.subr.mxu0 0.0
    %3009 = vmatpush2.xpose.msra.mxu0 0.0
    %3010 = vmatprep.subr.mxu0 0.0
    %3011 = vmatpush2.xpose.msra.mxu0 0.0
    %3012 = vmatprep.subr.mxu0 0.0
    %3013 = vmatpush2.xpose.msra.mxu0 0.0
    %3014 = vmatprep.subr.mxu0 0.0
    %3015 = vmatpush2.xpose.msra.mxu0 0.0
    %3016 = vmatprep.subr.mxu0 0.0
    %3017 = vmatpush2.xpose.msra.mxu0 0.0
    %3018 = vmatprep.subr.mxu0 0.0
    %3019 = vmatpush2.xpose.msra.mxu0 0.0
    %3020 = vmatprep.subr.mxu0 0.0
    %3021 = vmatpush2.xpose.msra.mxu0 0.0
    %3022 = vmatprep.subr.mxu0 0.0
    %3023 = vmatpush2.xpose.msra.mxu0 0.0
    %3024 = vmatprep.subr.mxu0 0.0
    %3025 = vmatpush2.xpose.msra.mxu0 0.0
    %3026 = vmatprep.subr.mxu0 0.0
    %3027 = vmatpush2.xpose.msra.mxu0 0.0
    %3028 = vmatprep.subr.mxu0 0.0
    %3029 = vmatpush2.xpose.msra.mxu0 0.0
    %3030 = vmatprep.subr.mxu0 0.0
    %3031 = vmatpush2.xpose.msra.mxu0 0.0
    %3032 = vmatprep.subr.mxu0 0.0
    %3033 = vmatpush2.xpose.msra.mxu0 0.0
    %3034 = vmatprep.subr.mxu0 0.0
    %3035 = vmatpush2.xpose.msra.mxu0 0.0
    %3036 = vmatprep.mubr.f32.mxu0 0.0
    %3037 = vmatmul.mubr.f32.gmra.mxu0 %v2970
    %v3038 = vpop.f32.mrf.mxu0
    %v3039 = vadd.f32 0.0, %v3038
    %v3040 = vpop.f32.mrf.mxu0
    %3041 = vdwg.mxu0
    %v3042 = vmul.f32 %v3039, 2.0
    %v3043 = vsub.f32 %v2969, %v3042
    %v3044 = vmax.f32 %v3043, 0.0
    %v3045 = vadd.f32 %v2948, %v3044
    %v3046 = vadd.f32 %v3045, 1e-06
    %v3047 = vadd.f32 %v2664, %v2870
    %3048 = vmatprep.subr.mxu0 0.0
    %3049 = vmatpush1.xpose.msra.mxu0 0.0
    %3050 = vmatprep.subr.mxu0 0.0
    %3051 = vmatpush1.xpose.msra.mxu0 0.0
    %3052 = vmatprep.subr.mxu0 0.0
    %3053 = vmatpush1.xpose.msra.mxu0 0.0
    %3054 = vmatprep.subr.mxu0 0.0
    %3055 = vmatpush1.xpose.msra.mxu0 0.0
    %3056 = vmatprep.subr.mxu0 0.0
    %3057 = vmatpush1.xpose.msra.mxu0 0.0
    %3058 = vmatprep.subr.mxu0 0.0
    %3059 = vmatpush1.xpose.msra.mxu0 0.0
    %3060 = vmatprep.subr.mxu0 0.0
    %3061 = vmatpush1.xpose.msra.mxu0 0.0
    %3062 = vmatprep.subr.mxu0 0.0
    %3063 = vmatpush1.xpose.msra.mxu0 0.0
    %3064 = vmatprep.subr.mxu0 0.0
    %3065 = vmatpush1.xpose.msra.mxu0 0.0
    %3066 = vmatprep.subr.mxu0 0.0
    %3067 = vmatpush1.xpose.msra.mxu0 0.0
    %3068 = vmatprep.subr.mxu0 0.0
    %3069 = vmatpush1.xpose.msra.mxu0 0.0
    %3070 = vmatprep.subr.mxu0 0.0
    %3071 = vmatpush1.xpose.msra.mxu0 0.0
    %3072 = vmatprep.subr.mxu0 0.0
    %3073 = vmatpush1.xpose.msra.mxu0 0.0
    %3074 = vmatprep.subr.mxu0 0.0
    %3075 = vmatpush1.xpose.msra.mxu0 0.0
    %3076 = vmatprep.subr.mxu0 0.0
    %3077 = vmatpush1.xpose.msra.mxu0 0.0
    %3078 = vmatprep.subr.mxu0 0.0
    %3079 = vmatpush1.xpose.msra.mxu0 %v2874
    %3080 = vmatprep.subr.mxu0 0.0
    %3081 = vmatpush2.xpose.msra.mxu0 0.0
    %3082 = vmatprep.subr.mxu0 0.0
    %3083 = vmatpush2.xpose.msra.mxu0 0.0
    %3084 = vmatprep.subr.mxu0 0.0
    %3085 = vmatpush2.xpose.msra.mxu0 0.0
    %3086 = vmatprep.subr.mxu0 0.0
    %3087 = vmatpush2.xpose.msra.mxu0 0.0
    %3088 = vmatprep.subr.mxu0 0.0
    %3089 = vmatpush2.xpose.msra.mxu0 0.0
    %3090 = vmatprep.subr.mxu0 0.0
    %3091 = vmatpush2.xpose.msra.mxu0 0.0
    %3092 = vmatprep.subr.mxu0 0.0
    %3093 = vmatpush2.xpose.msra.mxu0 0.0
    %3094 = vmatprep.subr.mxu0 0.0
    %3095 = vmatpush2.xpose.msra.mxu0 0.0
    %3096 = vmatprep.subr.mxu0 0.0
    %3097 = vmatpush2.xpose.msra.mxu0 0.0
    %3098 = vmatprep.subr.mxu0 0.0
    %3099 = vmatpush2.xpose.msra.mxu0 0.0
    %3100 = vmatprep.subr.mxu0 0.0
    %3101 = vmatpush2.xpose.msra.mxu0 0.0
    %3102 = vmatprep.subr.mxu0 0.0
    %3103 = vmatpush2.xpose.msra.mxu0 0.0
    %3104 = vmatprep.subr.mxu0 0.0
    %3105 = vmatpush2.xpose.msra.mxu0 0.0
    %3106 = vmatprep.subr.mxu0 0.0
    %3107 = vmatpush2.xpose.msra.mxu0 0.0
    %3108 = vmatprep.subr.mxu0 0.0
    %3109 = vmatpush2.xpose.msra.mxu0 0.0
    %3110 = vmatprep.subr.mxu0 0.0
    %3111 = vmatpush2.xpose.msra.mxu0 0.0
    %3112 = vmatprep.mubr.f32.mxu0 0.0
    %3113 = vmatmul.mubr.f32.gmra.mxu0 %v2681
    %v3114 = vpop.f32.mrf.mxu0
    %v3115 = vadd.f32 0.0, %v3114
    %v3116 = vpop.f32.mrf.mxu0
    %3117 = vdwg.mxu0
    %v3118 = vmul.f32 %v3115, 2.0
    %v3119 = vsub.f32 %v3047, %v3118
    %v3120 = vmax.f32 %v3119, 0.0
    %v3121 = vadd.f32 %v2763, %v2967
    %3122 = vmatprep.subr.mxu0 0.0
    %3123 = vmatpush1.xpose.msra.mxu0 0.0
    %3124 = vmatprep.subr.mxu0 0.0
    %3125 = vmatpush1.xpose.msra.mxu0 0.0
    %3126 = vmatprep.subr.mxu0 0.0
    %3127 = vmatpush1.xpose.msra.mxu0 0.0
    %3128 = vmatprep.subr.mxu0 0.0
    %3129 = vmatpush1.xpose.msra.mxu0 0.0
    %3130 = vmatprep.subr.mxu0 0.0
    %3131 = vmatpush1.xpose.msra.mxu0 0.0
    %3132 = vmatprep.subr.mxu0 0.0
    %3133 = vmatpush1.xpose.msra.mxu0 0.0
    %3134 = vmatprep.subr.mxu0 0.0
    %3135 = vmatpush1.xpose.msra.mxu0 0.0
    %3136 = vmatprep.subr.mxu0 0.0
    %3137 = vmatpush1.xpose.msra.mxu0 0.0
    %3138 = vmatprep.subr.mxu0 0.0
    %3139 = vmatpush1.xpose.msra.mxu0 0.0
    %3140 = vmatprep.subr.mxu0 0.0
    %3141 = vmatpush1.xpose.msra.mxu0 0.0
    %3142 = vmatprep.subr.mxu0 0.0
    %3143 = vmatpush1.xpose.msra.mxu0 0.0
    %3144 = vmatprep.subr.mxu0 0.0
    %3145 = vmatpush1.xpose.msra.mxu0 0.0
    %3146 = vmatprep.subr.mxu0 0.0
    %3147 = vmatpush1.xpose.msra.mxu0 0.0
    %3148 = vmatprep.subr.mxu0 0.0
    %3149 = vmatpush1.xpose.msra.mxu0 0.0
    %3150 = vmatprep.subr.mxu0 0.0
    %3151 = vmatpush1.xpose.msra.mxu0 0.0
    %3152 = vmatprep.subr.mxu0 0.0
    %3153 = vmatpush1.xpose.msra.mxu0 %v2970
    %3154 = vmatprep.subr.mxu0 0.0
    %3155 = vmatpush2.xpose.msra.mxu0 0.0
    %3156 = vmatprep.subr.mxu0 0.0
    %3157 = vmatpush2.xpose.msra.mxu0 0.0
    %3158 = vmatprep.subr.mxu0 0.0
    %3159 = vmatpush2.xpose.msra.mxu0 0.0
    %3160 = vmatprep.subr.mxu0 0.0
    %3161 = vmatpush2.xpose.msra.mxu0 0.0
    %3162 = vmatprep.subr.mxu0 0.0
    %3163 = vmatpush2.xpose.msra.mxu0 0.0
    %3164 = vmatprep.subr.mxu0 0.0
    %3165 = vmatpush2.xpose.msra.mxu0 0.0
    %3166 = vmatprep.subr.mxu0 0.0
    %3167 = vmatpush2.xpose.msra.mxu0 0.0
    %3168 = vmatprep.subr.mxu0 0.0
    %3169 = vmatpush2.xpose.msra.mxu0 0.0
    %3170 = vmatprep.subr.mxu0 0.0
    %3171 = vmatpush2.xpose.msra.mxu0 0.0
    %3172 = vmatprep.subr.mxu0 0.0
    %3173 = vmatpush2.xpose.msra.mxu0 0.0
    %3174 = vmatprep.subr.mxu0 0.0
    %3175 = vmatpush2.xpose.msra.mxu0 0.0
    %3176 = vmatprep.subr.mxu0 0.0
    %3177 = vmatpush2.xpose.msra.mxu0 0.0
    %3178 = vmatprep.subr.mxu0 0.0
    %3179 = vmatpush2.xpose.msra.mxu0 0.0
    %3180 = vmatprep.subr.mxu0 0.0
    %3181 = vmatpush2.xpose.msra.mxu0 0.0
    %3182 = vmatprep.subr.mxu0 0.0
    %3183 = vmatpush2.xpose.msra.mxu0 0.0
    %3184 = vmatprep.subr.mxu0 0.0
    %3185 = vmatpush2.xpose.msra.mxu0 0.0
    %3186 = vmatprep.mubr.f32.mxu0 0.0
    %3187 = vmatmul.mubr.f32.gmra.mxu0 %v2779
    %v3188 = vpop.f32.mrf.mxu0
    %v3189 = vadd.f32 0.0, %v3188
    %v3190 = vpop.f32.mrf.mxu0
    %3191 = vdwg.mxu0
    %v3192 = vmul.f32 %v3189, 2.0
    %v3193 = vsub.f32 %v3121, %v3192
    %v3194 = vmax.f32 %v3193, 0.0
    %v3195 = vadd.f32 %v3120, %v3194
    %v3196 = vadd.f32 %v3195, 1e-06
    loop: start=0, step=1, limit=10
    $region62: #{tpu_custom_call.1} parent=1 // loop_pre_header
      _
    $region63: #{tpu_custom_call.1} parent=1 // loop_header
      %s3198 = sphi 0, %s3202
      %p3199 = scmp.ge.s32.totalorder %s3198, 10
      %v3203 = vphi 0.015625, %v3493
      %v3204 = vphi 0.125, %v3481
    $region64: #{tpu_custom_call.1} parent=1 // loop_header_branch
      %3201 = sbr.rel (%p3199) target = $region68
    $region65: #{tpu_custom_call.1} parent=1 // loop_body
      %v3205 = vmul.f32 %v2855, %v2855
      %vm3206 = vcmask 64512
      %v3207 = vsel %vm3206, %v3205, 0.0
      %3208 = vadd.xlane.f32.xlu0 %v3207
      %v3209 = vpop.xlane.xlu0 %3208
      %v3210 = vrcp.pop 8.0
      %v3211 = vmul.f32 %v3209, %v3210
      %v3212 = vmul.f32 %v3046, %v3046
      %v3213 = vsel %vm3206, %v3212, 0.0
      %3214 = vadd.xlane.f32.xlu0 %v3213
      %v3215 = vpop.xlane.xlu0 %3214
      %v3216 = vmul.f32 %v3215, %v3210
      %v3218 = vsel %vm3206, %v2855, 0
      %3220 = vmatprep.subr.mxu0 0.0
      %3221 = vmatpush1.msra.mxu0 0.0
      %3222 = vmatprep.subr.mxu0 0.0
      %3223 = vmatpush1.msra.mxu0 0.0
      %3224 = vmatprep.subr.mxu0 0.0
      %3225 = vmatpush1.msra.mxu0 0.0
      %3226 = vmatprep.subr.mxu0 0.0
      %3227 = vmatpush1.msra.mxu0 0.0
      %3228 = vmatprep.subr.mxu0 0.0
      %3229 = vmatpush1.msra.mxu0 0.0
      %3230 = vmatprep.subr.mxu0 0.0
      %3231 = vmatpush1.msra.mxu0 0.0
      %3232 = vmatprep.subr.mxu0 0.0
      %3233 = vmatpush1.msra.mxu0 0.0
      %3234 = vmatprep.subr.mxu0 0.0
      %3235 = vmatpush1.msra.mxu0 0.0
      %3236 = vmatprep.subr.mxu0 0.0
      %3237 = vmatpush1.msra.mxu0 0.0
      %3238 = vmatprep.subr.mxu0 0.0
      %3239 = vmatpush1.msra.mxu0 0.0
      %3240 = vmatprep.subr.mxu0 0.0
      %3241 = vmatpush1.msra.mxu0 0.0
      %3242 = vmatprep.subr.mxu0 0.0
      %3243 = vmatpush1.msra.mxu0 0.0
      %3244 = vmatprep.subr.mxu0 0.0
      %3245 = vmatpush1.msra.mxu0 0.0
      %3246 = vmatprep.subr.mxu0 0.0
      %3247 = vmatpush1.msra.mxu0 0.0
      %3248 = vmatprep.subr.mxu0 0.0
      %3249 = vmatpush1.msra.mxu0 0.0
      %3250 = vmatprep.subr.mxu0 0.0
      %3251 = vmatpush1.msra.mxu0 %v3203
      %3252 = vmatprep.subr.mxu0 0.0
      %3253 = vmatpush2.msra.mxu0 0.0
      %3254 = vmatprep.subr.mxu0 0.0
      %3255 = vmatpush2.msra.mxu0 0.0
      %3256 = vmatprep.subr.mxu0 0.0
      %3257 = vmatpush2.msra.mxu0 0.0
      %3258 = vmatprep.subr.mxu0 0.0
      %3259 = vmatpush2.msra.mxu0 0.0
      %3260 = vmatprep.subr.mxu0 0.0
      %3261 = vmatpush2.msra.mxu0 0.0
      %3262 = vmatprep.subr.mxu0 0.0
      %3263 = vmatpush2.msra.mxu0 0.0
      %3264 = vmatprep.subr.mxu0 0.0
      %3265 = vmatpush2.msra.mxu0 0.0
      %3266 = vmatprep.subr.mxu0 0.0
      %3267 = vmatpush2.msra.mxu0 0.0
      %3268 = vmatprep.subr.mxu0 0.0
      %3269 = vmatpush2.msra.mxu0 0.0
      %3270 = vmatprep.subr.mxu0 0.0
      %3271 = vmatpush2.msra.mxu0 0.0
      %3272 = vmatprep.subr.mxu0 0.0
      %3273 = vmatpush2.msra.mxu0 0.0
      %3274 = vmatprep.subr.mxu0 0.0
      %3275 = vmatpush2.msra.mxu0 0.0
      %3276 = vmatprep.subr.mxu0 0.0
      %3277 = vmatpush2.msra.mxu0 0.0
      %3278 = vmatprep.subr.mxu0 0.0
      %3279 = vmatpush2.msra.mxu0 0.0
      %3280 = vmatprep.subr.mxu0 0.0
      %3281 = vmatpush2.msra.mxu0 0.0
      %3282 = vmatprep.subr.mxu0 0.0
      %3283 = vmatpush2.msra.mxu0 0.0
      %3284 = vmatprep.mubr.f32.mxu0 0.0
      %3285 = vmatmul.mubr.f32.gmra.mxu0 %v3218
      %v3286 = vpop.f32.mrf.mxu0
      %v3287 = vadd.f32 0.0, %v3286
      %v3288 = vpop.f32.mrf.mxu0
      %3289 = vdwg.mxu0
      %v3291 = vsel %vm3206, %v3287, 0
      %v3294 = vsel %vm3206, %v3046, 0
      %3296 = vmatprep.subr.mxu0 0.0
      %3297 = vmatpush1.xpose.msra.mxu0 0.0
      %3298 = vmatprep.subr.mxu0 0.0
      %3299 = vmatpush1.xpose.msra.mxu0 0.0
      %3300 = vmatprep.subr.mxu0 0.0
      %3301 = vmatpush1.xpose.msra.mxu0 0.0
      %3302 = vmatprep.subr.mxu0 0.0
      %3303 = vmatpush1.xpose.msra.mxu0 0.0
      %3304 = vmatprep.subr.mxu0 0.0
      %3305 = vmatpush1.xpose.msra.mxu0 0.0
      %3306 = vmatprep.subr.mxu0 0.0
      %3307 = vmatpush1.xpose.msra.mxu0 0.0
      %3308 = vmatprep.subr.mxu0 0.0
      %3309 = vmatpush1.xpose.msra.mxu0 0.0
      %3310 = vmatprep.subr.mxu0 0.0
      %3311 = vmatpush1.xpose.msra.mxu0 0.0
      %3312 = vmatprep.subr.mxu0 0.0
      %3313 = vmatpush1.xpose.msra.mxu0 0.0
      %3314 = vmatprep.subr.mxu0 0.0
      %3315 = vmatpush1.xpose.msra.mxu0 0.0
      %3316 = vmatprep.subr.mxu0 0.0
      %3317 = vmatpush1.xpose.msra.mxu0 0.0
      %3318 = vmatprep.subr.mxu0 0.0
      %3319 = vmatpush1.xpose.msra.mxu0 0.0
      %3320 = vmatprep.subr.mxu0 0.0
      %3321 = vmatpush1.xpose.msra.mxu0 0.0
      %3322 = vmatprep.subr.mxu0 0.0
      %3323 = vmatpush1.xpose.msra.mxu0 0.0
      %3324 = vmatprep.subr.mxu0 0.0
      %3325 = vmatpush1.xpose.msra.mxu0 0.0
      %3326 = vmatprep.subr.mxu0 0.0
      %3327 = vmatpush1.xpose.msra.mxu0 %v3294
      %3328 = vmatprep.subr.mxu0 0.0
      %3329 = vmatpush2.xpose.msra.mxu0 0.0
      %3330 = vmatprep.subr.mxu0 0.0
      %3331 = vmatpush2.xpose.msra.mxu0 0.0
      %3332 = vmatprep.subr.mxu0 0.0
      %3333 = vmatpush2.xpose.msra.mxu0 0.0
      %3334 = vmatprep.subr.mxu0 0.0
      %3335 = vmatpush2.xpose.msra.mxu0 0.0
      %3336 = vmatprep.subr.mxu0 0.0
      %3337 = vmatpush2.xpose.msra.mxu0 0.0
      %3338 = vmatprep.subr.mxu0 0.0
      %3339 = vmatpush2.xpose.msra.mxu0 0.0
      %3340 = vmatprep.subr.mxu0 0.0
      %3341 = vmatpush2.xpose.msra.mxu0 0.0
      %3342 = vmatprep.subr.mxu0 0.0
      %3343 = vmatpush2.xpose.msra.mxu0 0.0
      %3344 = vmatprep.subr.mxu0 0.0
      %3345 = vmatpush2.xpose.msra.mxu0 0.0
      %3346 = vmatprep.subr.mxu0 0.0
      %3347 = vmatpush2.xpose.msra.mxu0 0.0
      %3348 = vmatprep.subr.mxu0 0.0
      %3349 = vmatpush2.xpose.msra.mxu0 0.0
      %3350 = vmatprep.subr.mxu0 0.0
      %3351 = vmatpush2.xpose.msra.mxu0 0.0
      %3352 = vmatprep.subr.mxu0 0.0
      %3353 = vmatpush2.xpose.msra.mxu0 0.0
      %3354 = vmatprep.subr.mxu0 0.0
      %3355 = vmatpush2.xpose.msra.mxu0 0.0
      %3356 = vmatprep.subr.mxu0 0.0
      %3357 = vmatpush2.xpose.msra.mxu0 0.0
      %3358 = vmatprep.subr.mxu0 0.0
      %3359 = vmatpush2.xpose.msra.mxu0 0.0
      %3360 = vmatprep.mubr.f32.mxu0 0.0
      %3361 = vmatmul.mubr.f32.gmra.mxu0 %v3291
      %v3362 = vpop.f32.mrf.mxu0
      %v3363 = vadd.f32 0.0, %v3362
      %v3364 = vpop.f32.mrf.mxu0
      %3365 = vdwg.mxu0
      %v3367 = vlaneseq
      %v3368 = vshrl.u32 %v3367, 7
      %v3369 = vsub.s32 %v1758, %v3368
      %v3370 = vrot.slane %v3216, %v3369
      %v3371 = vsel %vm1764, %v3370, %v3370
      %v3372 = vsel %vm1766, %v3370, %v3371
      %v3373 = vsel %vm1768, %v3370, %v3372
      %v3374 = vsel %vm1770, %v3370, %v3373
      %v3375 = vsel %vm1772, %v3370, %v3374
      %v3376 = vsel %vm1774, %v3370, %v3375
      %v3378 = vadd.f32 %v3211, %v3376
      %v3379 = vmul.f32 %v3363, 2.0
      %v3380 = vsub.f32 %v3378, %v3379
      %v3381 = vmul.f32 %v3380, 0.1
      %v3382 = vmul.f32 %v3196, 0.9
      %v3383 = vadd.f32 %v3381, %v3382
      %v3384 = vand.u32 2147483647, %v3383
      %v3385 = vsel %vm3206, %v3384, -inf
      %3386 = vmax.xlane.f32.xlu0 %v3385
      %v3387 = vpop.xlane.xlu0 %3386
      %v3388 = vrot.slane %v3387, 4
      %v3389 = vmax.f32 %v3387, %v3388
      %v3390 = vrot.slane %v3389, 2
      %v3391 = vmax.f32 %v3389, %v3390
      %v3392 = vrot.slane %v3391, 1
      %v3393 = vmax.f32 %v3391, %v3392
      %s3394 = vtos %v3393
      %v3395 = vstv %s3394
      %v3396 = vrcp.pop %v3395
      %v3397 = vsub.f32 0.0, %v3383
      %v3398 = vmul.f32 %v3397, %v3396
      %v3399 = vmul.f32 %v3398, 1.442695
      %v3400 = vpow.pop %v3399
      %v3401 = vmul.f32 %v3400, %v3203
      %v3402 = vmul.f32 %v3401, %v3204
      %v3403 = vsel %vm3206, %v3402, 0.0
      %v3404 = vrot.slane %v3403, 4
      %v3405 = vadd.f32 %v3403, %v3404
      %v3406 = vrot.slane %v3405, 2
      %v3407 = vadd.f32 %v3405, %v3406
      %v3408 = vrot.slane %v3407, 1
      %v3409 = vadd.f32 %v3407, %v3408
      %v3410 = vrcp.pop %v3409
      %v3411 = vmul.f32 %v3410, 0.125
      %v3412 = vmul.f32 %v3401, %v3411
      %v3413 = vsel %vm3206, %v3412, 0.0
      %3414 = vadd.xlane.f32.xlu0 %v3413
      %v3415 = vpop.xlane.xlu0 %3414
      %v3416 = vrcp.pop %v3415
      %v3417 = vmul.f32 %v3416, 0.125
      %v3418 = vmul.f32 %v3401, %v3417
      %v3419 = vsel %vm3206, %v3418, 0.0
      %v3420 = vrot.slane %v3419, 4
      %v3421 = vadd.f32 %v3419, %v3420
      %v3422 = vrot.slane %v3421, 2
      %v3423 = vadd.f32 %v3421, %v3422
      %v3424 = vrot.slane %v3423, 1
      %v3425 = vadd.f32 %v3423, %v3424
      %v3426 = vrcp.pop %v3425
      %v3427 = vmul.f32 %v3426, 0.125
      %v3428 = vmul.f32 %v3401, %v3427
      %v3429 = vsel %vm3206, %v3428, 0.0
      %3430 = vadd.xlane.f32.xlu0 %v3429
      %v3431 = vpop.xlane.xlu0 %3430
      %v3432 = vrcp.pop %v3431
      %v3433 = vmul.f32 %v3432, 0.125
      %v3434 = vmul.f32 %v3401, %v3433
      %v3435 = vsel %vm3206, %v3434, 0.0
      %v3436 = vrot.slane %v3435, 4
      %v3437 = vadd.f32 %v3435, %v3436
      %v3438 = vrot.slane %v3437, 2
      %v3439 = vadd.f32 %v3437, %v3438
      %v3440 = vrot.slane %v3439, 1
      %v3441 = vadd.f32 %v3439, %v3440
      %v3442 = vrcp.pop %v3441
      %v3443 = vmul.f32 %v3442, 0.125
      %v3444 = vmul.f32 %v3401, %v3443
      %v3445 = vsel %vm3206, %v3444, 0.0
      %3446 = vadd.xlane.f32.xlu0 %v3445
      %v3447 = vpop.xlane.xlu0 %3446
      %v3448 = vrcp.pop %v3447
      %v3449 = vmul.f32 %v3448, 0.125
      %v3450 = vmul.f32 %v3401, %v3449
      %v3451 = vsel %vm3206, %v3450, 0.0
      %v3452 = vrot.slane %v3451, 4
      %v3453 = vadd.f32 %v3451, %v3452
      %v3454 = vrot.slane %v3453, 2
      %v3455 = vadd.f32 %v3453, %v3454
      %v3456 = vrot.slane %v3455, 1
      %v3457 = vadd.f32 %v3455, %v3456
      %v3458 = vrcp.pop %v3457
      %v3459 = vmul.f32 %v3458, 0.125
      %v3460 = vmul.f32 %v3401, %v3459
      %v3461 = vsel %vm3206, %v3460, 0.0
      %3462 = vadd.xlane.f32.xlu0 %v3461
      %v3463 = vpop.xlane.xlu0 %3462
      %v3464 = vrcp.pop %v3463
      %v3465 = vmul.f32 %v3464, 0.125
      %v3466 = vmul.f32 %v3401, %v3465
      %v3467 = vsel %vm3206, %v3466, 0.0
      %v3468 = vrot.slane %v3467, 4
      %v3469 = vadd.f32 %v3467, %v3468
      %v3470 = vrot.slane %v3469, 2
      %v3471 = vadd.f32 %v3469, %v3470
      %v3472 = vrot.slane %v3471, 1
      %v3473 = vadd.f32 %v3471, %v3472
      %v3474 = vrcp.pop %v3473
      %v3475 = vmul.f32 %v3474, 0.125
      %v3476 = vmul.f32 %v3401, %v3475
      %v3477 = vsel %vm3206, %v3476, 0.0
      %3478 = vadd.xlane.f32.xlu0 %v3477
      %v3479 = vpop.xlane.xlu0 %3478
      %v3480 = vrcp.pop %v3479
      %v3481 = vmul.f32 %v3480, 0.125
      %v3482 = vmul.f32 %v3401, %v3481
      %v3483 = vsel %vm3206, %v3482, 0.0
      %v3484 = vrot.slane %v3483, 4
      %v3485 = vadd.f32 %v3483, %v3484
      %v3486 = vrot.slane %v3485, 2
      %v3487 = vadd.f32 %v3485, %v3486
      %v3488 = vrot.slane %v3487, 1
      %v3489 = vadd.f32 %v3487, %v3488
      %v3490 = vrcp.pop %v3489
      %v3491 = vmul.f32 %v3490, 0.125
      %v3492 = vmul.f32 %v3481, %v3491
      %v3493 = vmul.f32 %v3492, %v3401
    $region66: #{tpu_custom_call.1} parent=1 // loop_footer
      %s3202 = sadd.s32 1, %s3198
    $region67: #{tpu_custom_call.1} parent=1 // loop_footer_branch
      %3197 = sbr.rel target = $region63
    $region68: #{tpu_custom_call.1} parent=1 // loop_exit
      _
    %vm3494 = vcmp.ne.f32.partialorder %v3203, %v3203
    %v3495 = vsel %vm3494, 1.0, 0.0
    %vm3496 = vcmask 64512
    %v3497 = vsel %vm3496, %v3495, 0.0
    %3498 = vadd.xlane.f32.xlu0 %v3497
    %v3499 = vpop.xlane.xlu0 %3498
    %v3500 = vrot.slane %v3499, 4
    %v3501 = vadd.f32 %v3499, %v3500
    %v3502 = vrot.slane %v3501, 2
    %v3503 = vadd.f32 %v3501, %v3502
    %v3504 = vrot.slane %v3503, 1
    %v3505 = vadd.f32 %v3503, %v3504
    %s3506 = vtos %v3505
    %p3507 = scmp.gt.f32.partialorder %s3506, 0.0
    %s3508 = scalar_select %p3507, 1, 0
    %v3509 = vstv %s3508
    %vm3510 = vcmp.eq.s32.totalorder %v3509, 1
    %v3511 = vsel %vm3510, 0.015625, %v3203
    %v3512 = vmul.f32 %v2855, %v2855
    %v3513 = vsel %vm3496, %v3512, 0.0
    %3514 = vadd.xlane.f32.xlu0 %v3513
    %v3515 = vpop.xlane.xlu0 %3514
    %v3516 = vrcp.pop 8.0
    %v3517 = vmul.f32 %v3515, %v3516
    %v3518 = vmul.f32 %v3046, %v3046
    %v3519 = vsel %vm3496, %v3518, 0.0
    %3520 = vadd.xlane.f32.xlu0 %v3519
    %v3521 = vpop.xlane.xlu0 %3520
    %v3522 = vmul.f32 %v3521, %v3516
    %v3524 = vsel %vm3496, %v2855, 0
    %3526 = vmatprep.subr.mxu0 0.0
    %3527 = vmatpush1.msra.mxu0 0.0
    %3528 = vmatprep.subr.mxu0 0.0
    %3529 = vmatpush1.msra.mxu0 0.0
    %3530 = vmatprep.subr.mxu0 0.0
    %3531 = vmatpush1.msra.mxu0 0.0
    %3532 = vmatprep.subr.mxu0 0.0
    %3533 = vmatpush1.msra.mxu0 0.0
    %3534 = vmatprep.subr.mxu0 0.0
    %3535 = vmatpush1.msra.mxu0 0.0
    %3536 = vmatprep.subr.mxu0 0.0
    %3537 = vmatpush1.msra.mxu0 0.0
    %3538 = vmatprep.subr.mxu0 0.0
    %3539 = vmatpush1.msra.mxu0 0.0
    %3540 = vmatprep.subr.mxu0 0.0
    %3541 = vmatpush1.msra.mxu0 0.0
    %3542 = vmatprep.subr.mxu0 0.0
    %3543 = vmatpush1.msra.mxu0 0.0
    %3544 = vmatprep.subr.mxu0 0.0
    %3545 = vmatpush1.msra.mxu0 0.0
    %3546 = vmatprep.subr.mxu0 0.0
    %3547 = vmatpush1.msra.mxu0 0.0
    %3548 = vmatprep.subr.mxu0 0.0
    %3549 = vmatpush1.msra.mxu0 0.0
    %3550 = vmatprep.subr.mxu0 0.0
    %3551 = vmatpush1.msra.mxu0 0.0
    %3552 = vmatprep.subr.mxu0 0.0
    %3553 = vmatpush1.msra.mxu0 0.0
    %3554 = vmatprep.subr.mxu0 0.0
    %3555 = vmatpush1.msra.mxu0 0.0
    %3556 = vmatprep.subr.mxu0 0.0
    %3557 = vmatpush1.msra.mxu0 %v3511
    %3558 = vmatprep.subr.mxu0 0.0
    %3559 = vmatpush2.msra.mxu0 0.0
    %3560 = vmatprep.subr.mxu0 0.0
    %3561 = vmatpush2.msra.mxu0 0.0
    %3562 = vmatprep.subr.mxu0 0.0
    %3563 = vmatpush2.msra.mxu0 0.0
    %3564 = vmatprep.subr.mxu0 0.0
    %3565 = vmatpush2.msra.mxu0 0.0
    %3566 = vmatprep.subr.mxu0 0.0
    %3567 = vmatpush2.msra.mxu0 0.0
    %3568 = vmatprep.subr.mxu0 0.0
    %3569 = vmatpush2.msra.mxu0 0.0
    %3570 = vmatprep.subr.mxu0 0.0
    %3571 = vmatpush2.msra.mxu0 0.0
    %3572 = vmatprep.subr.mxu0 0.0
    %3573 = vmatpush2.msra.mxu0 0.0
    %3574 = vmatprep.subr.mxu0 0.0
    %3575 = vmatpush2.msra.mxu0 0.0
    %3576 = vmatprep.subr.mxu0 0.0
    %3577 = vmatpush2.msra.mxu0 0.0
    %3578 = vmatprep.subr.mxu0 0.0
    %3579 = vmatpush2.msra.mxu0 0.0
    %3580 = vmatprep.subr.mxu0 0.0
    %3581 = vmatpush2.msra.mxu0 0.0
    %3582 = vmatprep.subr.mxu0 0.0
    %3583 = vmatpush2.msra.mxu0 0.0
    %3584 = vmatprep.subr.mxu0 0.0
    %3585 = vmatpush2.msra.mxu0 0.0
    %3586 = vmatprep.subr.mxu0 0.0
    %3587 = vmatpush2.msra.mxu0 0.0
    %3588 = vmatprep.subr.mxu0 0.0
    %3589 = vmatpush2.msra.mxu0 0.0
    %3590 = vmatprep.mubr.f32.mxu0 0.0
    %3591 = vmatmul.mubr.f32.gmra.mxu0 %v3524
    %v3592 = vpop.f32.mrf.mxu0
    %v3593 = vadd.f32 0.0, %v3592
    %v3594 = vpop.f32.mrf.mxu0
    %3595 = vdwg.mxu0
    %v3597 = vsel %vm3496, %v3593, 0
    %v3600 = vsel %vm3496, %v3046, 0
    %3602 = vmatprep.subr.mxu0 0.0
    %3603 = vmatpush1.xpose.msra.mxu0 0.0
    %3604 = vmatprep.subr.mxu0 0.0
    %3605 = vmatpush1.xpose.msra.mxu0 0.0
    %3606 = vmatprep.subr.mxu0 0.0
    %3607 = vmatpush1.xpose.msra.mxu0 0.0
    %3608 = vmatprep.subr.mxu0 0.0
    %3609 = vmatpush1.xpose.msra.mxu0 0.0
    %3610 = vmatprep.subr.mxu0 0.0
    %3611 = vmatpush1.xpose.msra.mxu0 0.0
    %3612 = vmatprep.subr.mxu0 0.0
    %3613 = vmatpush1.xpose.msra.mxu0 0.0
    %3614 = vmatprep.subr.mxu0 0.0
    %3615 = vmatpush1.xpose.msra.mxu0 0.0
    %3616 = vmatprep.subr.mxu0 0.0
    %3617 = vmatpush1.xpose.msra.mxu0 0.0
    %3618 = vmatprep.subr.mxu0 0.0
    %3619 = vmatpush1.xpose.msra.mxu0 0.0
    %3620 = vmatprep.subr.mxu0 0.0
    %3621 = vmatpush1.xpose.msra.mxu0 0.0
    %3622 = vmatprep.subr.mxu0 0.0
    %3623 = vmatpush1.xpose.msra.mxu0 0.0
    %3624 = vmatprep.subr.mxu0 0.0
    %3625 = vmatpush1.xpose.msra.mxu0 0.0
    %3626 = vmatprep.subr.mxu0 0.0
    %3627 = vmatpush1.xpose.msra.mxu0 0.0
    %3628 = vmatprep.subr.mxu0 0.0
    %3629 = vmatpush1.xpose.msra.mxu0 0.0
    %3630 = vmatprep.subr.mxu0 0.0
    %3631 = vmatpush1.xpose.msra.mxu0 0.0
    %3632 = vmatprep.subr.mxu0 0.0
    %3633 = vmatpush1.xpose.msra.mxu0 %v3600
    %3634 = vmatprep.subr.mxu0 0.0
    %3635 = vmatpush2.xpose.msra.mxu0 0.0
    %3636 = vmatprep.subr.mxu0 0.0
    %3637 = vmatpush2.xpose.msra.mxu0 0.0
    %3638 = vmatprep.subr.mxu0 0.0
    %3639 = vmatpush2.xpose.msra.mxu0 0.0
    %3640 = vmatprep.subr.mxu0 0.0
    %3641 = vmatpush2.xpose.msra.mxu0 0.0
    %3642 = vmatprep.subr.mxu0 0.0
    %3643 = vmatpush2.xpose.msra.mxu0 0.0
    %3644 = vmatprep.subr.mxu0 0.0
    %3645 = vmatpush2.xpose.msra.mxu0 0.0
    %3646 = vmatprep.subr.mxu0 0.0
    %3647 = vmatpush2.xpose.msra.mxu0 0.0
    %3648 = vmatprep.subr.mxu0 0.0
    %3649 = vmatpush2.xpose.msra.mxu0 0.0
    %3650 = vmatprep.subr.mxu0 0.0
    %3651 = vmatpush2.xpose.msra.mxu0 0.0
    %3652 = vmatprep.subr.mxu0 0.0
    %3653 = vmatpush2.xpose.msra.mxu0 0.0
    %3654 = vmatprep.subr.mxu0 0.0
    %3655 = vmatpush2.xpose.msra.mxu0 0.0
    %3656 = vmatprep.subr.mxu0 0.0
    %3657 = vmatpush2.xpose.msra.mxu0 0.0
    %3658 = vmatprep.subr.mxu0 0.0
    %3659 = vmatpush2.xpose.msra.mxu0 0.0
    %3660 = vmatprep.subr.mxu0 0.0
    %3661 = vmatpush2.xpose.msra.mxu0 0.0
    %3662 = vmatprep.subr.mxu0 0.0
    %3663 = vmatpush2.xpose.msra.mxu0 0.0
    %3664 = vmatprep.subr.mxu0 0.0
    %3665 = vmatpush2.xpose.msra.mxu0 0.0
    %3666 = vmatprep.mubr.f32.mxu0 0.0
    %3667 = vmatmul.mubr.f32.gmra.mxu0 %v3597
    %v3668 = vpop.f32.mrf.mxu0
    %v3669 = vadd.f32 0.0, %v3668
    %v3670 = vpop.f32.mrf.mxu0
    %3671 = vdwg.mxu0
    %v3673 = vlaneseq
    %v3674 = vshrl.u32 %v3673, 7
    %v3675 = vsub.s32 %v1758, %v3674
    %v3676 = vrot.slane %v3522, %v3675
    %v3677 = vsel %vm1764, %v3676, %v3676
    %v3678 = vsel %vm1766, %v3676, %v3677
    %v3679 = vsel %vm1768, %v3676, %v3678
    %v3680 = vsel %vm1770, %v3676, %v3679
    %v3681 = vsel %vm1772, %v3676, %v3680
    %v3682 = vsel %vm1774, %v3676, %v3681
    %v3684 = vadd.f32 %v3517, %v3682
    %v3685 = vmul.f32 %v3669, 2.0
    %v3686 = vsub.f32 %v3684, %v3685
    %v3687 = vmul.f32 %v3686, 0.1
    %v3688 = vmul.f32 %v3196, 0.9
    %v3689 = vadd.f32 %v3687, %v3688
    %v3690 = vmul.f32 %v3689, %v3511
    %v3691 = vsel %vm3496, %v3690, 0.0
    %3692 = vadd.xlane.f32.xlu0 %v3691
    %v3693 = vpop.xlane.xlu0 %3692
    %v3694 = vrot.slane %v3693, 4
    %v3695 = vadd.f32 %v3693, %v3694
    %v3696 = vrot.slane %v3695, 2
    %v3697 = vadd.f32 %v3695, %v3696
    %v3698 = vrot.slane %v3697, 1
    %v3699 = vadd.f32 %v3697, %v3698
    %s3700 = vtos %v3699
    %vm3701 = vcmp.eq.s32.totalorder %v1758, 0
    %v3702 = vstv %s2083
    %v3703 = vsel %vm3701, %v3702, 0.0
    %vm3704 = vcmp.eq.s32.totalorder %v1758, 1
    %v3705 = vstv %s2603
    %v3706 = vsel %vm3704, %v3705, 0.0
    %v3707 = vadd.f32 %v3703, %v3706
    %vm3708 = vcmp.eq.s32.totalorder %v1758, 2
    %v3709 = vstv %s3700
    %v3710 = vsel %vm3708, %v3709, 0.0
    %v3711 = vadd.f32 %v3707, %v3710
    %vm3712 = vcmp.eq.s32.totalorder %v1758, 3
    %v3713 = vstv %s2628
    %v3714 = vsel %vm3712, %v3713, 0.0
    %v3715 = vadd.f32 %v3711, %v3714
    %vm3716 = vcmp.eq.s32.totalorder %v1758, 4
    %v3717 = vstv %s2656
    %v3718 = vsel %vm3716, %v3717, 0.0
    %v3719 = vadd.f32 %v3715, %v3718
    %3720 = vst [vmem:[#allocation16] sm:$0x1] %v3719
    %s3721 = smul.u32 8, 2
    %s3722 = smul.u32 %s3721, 2
    %s3723 = sshll.u32 %s3722, 4
    %3724 = dma.done [#allocation3], %s3723
    // Predicated region
    $region69: #{tpu_custom_call.1} parent=1 // pred_check
      _
    $region70: #{tpu_custom_call.1} parent=1 // pred_check_branch
      %3726 = sbr.rel (0) target = $region72
    $region71: #{tpu_custom_call.1} parent=1 // pred_region
      %s3728 = ssub.s32 128, 128
      %3729 = vsyncadd [#allocation6], %s3728
      %s3731 = sshll.u32 [#allocation15], 4
      %s3732 = int_to_ptr.vmem [resolvable:$true] %s3731
      %3734 = dma.vmem_to_hbm [thread:$0]  %s3732, 128, %s9, [#allocation6]
    $region72: #{tpu_custom_call.1} parent=1 // pred_fallthru
      _
    // Predicated region
    $region73: #{tpu_custom_call.1} parent=1 // pred_check
      _
    $region74: #{tpu_custom_call.1} parent=1 // pred_check_branch
      %3736 = sbr.rel (0) target = $region76
    $region75: #{tpu_custom_call.1} parent=1 // pred_region
      %s3738 = ssub.s32 16, 16
      %3739 = vsyncadd [#allocation17], %s3738
      %s3741 = sshll.u32 [#allocation16], 4
      %s3742 = int_to_ptr.vmem [resolvable:$true] %s3741
      %3744 = dma.vmem_to_hbm [thread:$0]  %s3742, 16, %s10, [#allocation17]
    $region76: #{tpu_custom_call.1} parent=1 // pred_fallthru
      _
    // Predicated region
    $region77: #{tpu_custom_call.1} parent=1 // pred_check
      _
    $region78: #{tpu_custom_call.1} parent=1 // pred_check_branch
      %3746 = sbr.rel (0) target = $region80
    $region79: #{tpu_custom_call.1} parent=1 // pred_region
      %3747 = dma.done [#allocation6], 128
    $region80: #{tpu_custom_call.1} parent=1 // pred_fallthru
      _
    // Predicated region
    $region81: #{tpu_custom_call.1} parent=1 // pred_check
      _
    $region82: #{tpu_custom_call.1} parent=1 // pred_check_branch
      %3749 = sbr.rel (0) target = $region84
    $region83: #{tpu_custom_call.1} parent=1 // pred_region
      %3750 = dma.done [#allocation17], 16
    $region84: #{tpu_custom_call.1} parent=1 // pred_fallthru
      _
    %3751 = vsyncpa [#allocation5], 1
    %3752 = vsyncpa [#allocation8], 1
    %3753 = vsyncpa [#allocation11], 1
    %3754 = vsyncpa [#allocation14], 1
    %3755 = vsyncpa [#allocation6], 1
    %3756 = vsyncpa [#allocation17], 1
  %3757 = vsyncmov [#allocation3]
  %s3758 = vpop.sfrf %3757
  %p3759 = scmp.eq.s32.totalorder %s3758, 0
  %p3760 = pneg %p3759
  %3762 = shalt.err (%p3760)

</llo_original>
